<compile_context>
chip_gen: v7x
topology: tpu7x:2x2x1
jax: 0.10.0
libtpu: 0.0.40
codegen_flags: <defaults>
</compile_context>

<pallas_src>
import functools

import jax
import jax.numpy as jnp
from jax.experimental import pallas as pl
from jax.experimental.pallas import tpu as pltpu


def _round_up(x, m):
    return (x + m - 1) // m * m


# ---------------------------------------------------------------------------
# Pallas kernel: one (batch, C_out-tile) grid step, fused im2col.
# ---------------------------------------------------------------------------
def _contextual_conv_kernel(x_ref, w_ref, bias_ref, o_ref, *, K, w_lane):
    # x_ref   : (C_in, (Hc + K) * w_lane)  NCHW rows flattened onto lanes,
    #           zero-padded so every shifted window below stays in bounds.
    # w_ref   : (K*K, CO_T, C_in)          w_ref[kh*K+kw] == conv_w[:, :, kh, kw]
    # bias_ref: (CO_T, 1)                  conv bias + context-MLP bias (f32)
    # o_ref   : (CO_T, Hc * w_lane)        lane-dense (128-multiple) output tile
    n = o_ref.shape[1]
    acc = jnp.zeros(o_ref.shape, jnp.float32)
    for kh in range(K):               # statically unrolled: K*K MXU matmuls
        for kw in range(K):
            off = kh * w_lane + kw
            xs = x_ref[:, off:off + n]                    # shifted window (C_in, n)
            acc = acc + jnp.dot(w_ref[kh * K + kw], xs,
                                preferred_element_type=jnp.float32)
    o_ref[...] = (acc + bias_ref[...]).astype(o_ref.dtype)


# ---------------------------------------------------------------------------
# Wrapper helpers.
# ---------------------------------------------------------------------------
def _pick_cout_tile(c_out):
    """Tile C_out only when it is large; tile must divide C_out and be 8-aligned."""
    if c_out > 256:
        for t in (256, 128):
            if c_out % t == 0:
                return t
    return c_out


def _chunk_vmem_bytes(hc, *, K, w_lane, c_in, co_t, n_co, comp_bytes, out_bytes):
    """Estimated peak VMEM for one grid step with an hc-row output chunk."""
    n = hc * w_lane
    b = 2 * c_in * (hc + K) * w_lane * comp_bytes      # input block, double-buffered
    b += 2 * co_t * n * out_bytes                       # output block, double-buffered
    b += co_t * n * 4                                   # f32 accumulator value
    b += 2 * c_in * n * comp_bytes                      # live shifted-window slices
    b += (1 if n_co == 1 else 2) * K * K * co_t * c_in * comp_bytes   # weight
    b += 2 * co_t * 4                                   # bias
    return b


# ---------------------------------------------------------------------------
# Public entry point: ContextualConv2d forward (stride=1, padding=0).
# ---------------------------------------------------------------------------
@functools.partial(
    jax.jit, static_argnames=("kernel_size", "compute_dtype", "vmem_budget_bytes"))
def contextual_conv2d(x, c, conv_w, conv_b, w1, b1, w2, b2, *,
                      kernel_size, compute_dtype=jnp.bfloat16,
                      vmem_budget_bytes=28 * 1024 * 1024):
    """x: (B, C_in, H, W), c: (B, CTX); returns (B, C_out, Hout, Wout) NCHW."""
    B, C_in, H, W = x.shape
    C_out = conv_w.shape[0]
    K = kernel_size
    Hout, Wout = H - K + 1, W - K + 1

    comp_bytes = jnp.dtype(compute_dtype).itemsize
    out_dtype = x.dtype
    out_bytes = jnp.dtype(out_dtype).itemsize

    # ---- Hoisted context processor (Linear -> ReLU -> Linear) + conv bias ---
    h = jnp.maximum(jnp.dot(c, w1) + b1, 0.0)                  # (B, HID)
    bias = jnp.dot(h, w2) + b2 + conv_b[None, :]               # (B, C_out)
    bias3 = bias.astype(jnp.float32)[:, :, None]               # (B, C_out, 1)

    # ---- Lane-padded, row-flattened input (fused im2col reads from this) ----
    w_lane = _round_up(W, 128)           # output lane width, >= W, 128-multiple
    # One extra zero row so every (kh, kw)-shifted window stays in bounds.
    x_pad = jnp.pad(x, ((0, 0), (0, 0), (0, 1), (0, w_lane - W)))
    x_pad = x_pad.astype(compute_dtype)                        # (B, C_in, H+1, w_lane)

    # ---- Conv weight rearranged so w_arr[kh*K+kw] = conv_w[:, :, kh, kw] ----
    w_arr = jnp.transpose(conv_w, (2, 3, 0, 1)).reshape(K * K, C_out, C_in)
    w_arr = w_arr.astype(compute_dtype)
    weight_bytes = K * K * C_out * C_in * comp_bytes

    # ---- C_out tiling (large channel counts) + VMEM-budgeted H chunking -----
    CO_T = _pick_cout_tile(C_out)
    n_co = C_out // CO_T
    est = functools.partial(_chunk_vmem_bytes, K=K, w_lane=w_lane, c_in=C_in,
                            co_t=CO_T, n_co=n_co, comp_bytes=comp_bytes,
                            out_bytes=out_bytes)
    hc = Hout
    while hc > 1 and est(hc) > vmem_budget_bytes:
        hc = max(1, (hc + 1) // 2)

    kern = functools.partial(_contextual_conv_kernel, K=K, w_lane=w_lane)

    chunks = []
    for r0 in range(0, Hout, hc):
        hc_i = min(hc, Hout - r0)
        n_i = hc_i * w_lane
        n_in = (hc_i + K) * w_lane
        # Rows r0 .. r0 + hc_i + K - 1 of the padded input (K-1 halo + 1 spare).
        x_chunk = x_pad[:, :, r0:r0 + hc_i + K, :].reshape(B, C_in, n_in)

        w_spec_kwargs = {}
        if n_co == 1 and weight_bytes > (1 << 20):
            # Constant block index: a single resident copy is enough.
            w_spec_kwargs = dict(pipeline_mode=pl.Buffered(1))

        limit = int(min(56 * 1024 * 1024, max(32 * 1024 * 1024, 2 * est(hc_i))))
        cost = pl.CostEstimate(
            flops=2 * B * C_out * C_in * K * K * n_i,
            transcendentals=0,
            bytes_accessed=(B * C_in * n_in * comp_bytes
                            + K * K * C_out * C_in * comp_bytes
                            + B * C_out * 4
                            + B * C_out * n_i * out_bytes))

        out = pl.pallas_call(
            kern,
            out_shape=jax.ShapeDtypeStruct((B, C_out, n_i), out_dtype),
            grid_spec=pltpu.PrefetchScalarGridSpec(
                num_scalar_prefetch=0,
                grid=(B, n_co),        # co innermost: input slab fetched once per b
                in_specs=[
                    # Per-batch row-flattened input chunk (streamed once).
                    pl.BlockSpec((pl.Squeezed(), C_in, n_in),
                                 lambda b, co: (b, 0, 0)),
                    # Rearranged conv weight, tiled over C_out.
                    pl.BlockSpec((K * K, CO_T, C_in),
                                 lambda b, co: (0, co, 0), **w_spec_kwargs),
                    # Fused per-(batch, channel) bias.
                    pl.BlockSpec((pl.Squeezed(), CO_T, 1),
                                 lambda b, co: (b, co, 0)),
                ],
                # Lane-dense (128-multiple) NCHW-flat output tile.
                out_specs=pl.BlockSpec((pl.Squeezed(), CO_T, n_i),
                                       lambda b, co: (b, co, 0)),
            ),
            compiler_params=pltpu.CompilerParams(
                dimension_semantics=("parallel", "parallel"),
                vmem_limit_bytes=limit),
            cost_estimate=cost,
        )(x_chunk, w_arr, bias3)

        chunks.append(out.reshape(B, C_out, hc_i, w_lane))

    out_full = chunks[0] if len(chunks) == 1 else jnp.concatenate(chunks, axis=2)
    # (B, C_out, Hout, w_lane) -> drop lane padding; no transpose pass needed.
    return out_full[:, :, :, :Wout]


# ---------------------------------------------------------------------------
# Pure-JAX reference for correctness checking.
# ---------------------------------------------------------------------------
def _reference(x, c, conv_w, conv_b, w1, b1, w2, b2):
    conv = jax.lax.conv_general_dilated(
        x, conv_w, window_strides=(1, 1), padding="VALID",
        dimension_numbers=("NCHW", "OIHW", "NCHW"))
    conv = conv + conv_b.reshape(1, -1, 1, 1)
    h = jnp.maximum(c @ w1 + b1, 0.0)
    bias = h @ w2 + b2
    return conv + bias[:, :, None, None]


if __name__ == "__main__":
    B, C_in, C_out, K = 2, 4, 8, 3
    H = W = 16
    CTX, HID = 8, 16

    key = jax.random.PRNGKey(0)
    keys = jax.random.split(key, 9)
    x = jax.random.normal(keys[0], (B, C_in, H, W), jnp.float32)
    c = jax.random.normal(keys[1], (B, CTX), jnp.float32)
    conv_w = 0.1 * jax.random.normal(keys[2], (C_out, C_in, K, K), jnp.float32)
    conv_b = 0.1 * jax.random.normal(keys[3], (C_out,), jnp.float32)
    w1 = 0.1 * jax.random.normal(keys[4], (CTX, HID), jnp.float32)
    b1 = 0.1 * jax.random.normal(keys[5], (HID,), jnp.float32)
    w2 = 0.1 * jax.random.normal(keys[6], (HID, C_out), jnp.float32)
    b2 = 0.1 * jax.random.normal(keys[7], (C_out,), jnp.float32)

    ref = _reference(x, c, conv_w, conv_b, w1, b1, w2, b2)

    # 1) f32 compute path: bit-tight parity with the reference.
    out_f32 = jax.block_until_ready(
        contextual_conv2d(x, c, conv_w, conv_b, w1, b1, w2, b2,
                          kernel_size=K, compute_dtype=jnp.float32))
    assert out_f32.shape == (B, C_out, H - K + 1, W - K + 1), out_f32.shape
    assert jnp.allclose(out_f32, ref, atol=1e-4, rtol=1e-4), \
        float(jnp.max(jnp.abs(out_f32 - ref)))

    # 2) Default bf16 streaming path (f32 accumulation): looser tolerance.
    out_bf16 = jax.block_until_ready(
        contextual_conv2d(x, c, conv_w, conv_b, w1, b1, w2, b2, kernel_size=K))
    assert out_bf16.shape == ref.shape
    assert jnp.allclose(out_bf16, ref, atol=5e-2, rtol=5e-2), \
        float(jnp.max(jnp.abs(out_bf16 - ref)))

    # 3) Force the VMEM-budgeted H-chunking path (tiny budget -> 1-row chunks).
    out_chunked = jax.block_until_ready(
        contextual_conv2d(x, c, conv_w, conv_b, w1, b1, w2, b2,
                          kernel_size=K, compute_dtype=jnp.float32,
                          vmem_budget_bytes=1))
    assert jnp.allclose(out_chunked, ref, atol=1e-4, rtol=1e-4), \
        float(jnp.max(jnp.abs(out_chunked - ref)))

    # 4) Exercise the C_out-tiling path (C_out > 256 -> CO_T = 256, n_co = 2).
    C_big = 512
    kb = jax.random.split(keys[8], 3)
    conv_w_b = 0.1 * jax.random.normal(kb[0], (C_big, C_in, K, K), jnp.float32)
    conv_b_b = 0.1 * jax.random.normal(kb[1], (C_big,), jnp.float32)
    w2_b = 0.1 * jax.random.normal(kb[2], (HID, C_big), jnp.float32)
    b2_b = jnp.zeros((C_big,), jnp.float32)
    ref_b = _reference(x, c, conv_w_b, conv_b_b, w1, b1, w2_b, b2_b)
    out_b = jax.block_until_ready(
        contextual_conv2d(x, c, conv_w_b, conv_b_b, w1, b1, w2_b, b2_b,
                          kernel_size=K, compute_dtype=jnp.float32))
    assert jnp.allclose(out_b, ref_b, atol=1e-4, rtol=1e-4), \
        float(jnp.max(jnp.abs(out_b - ref_b)))

    print("KERNEL_OK")
</pallas_src>

<mosaic_0001>
module attributes {stable_mosaic.version = 11 : i64} {
  func.func @_contextual_conv_kernel(%arg0: i32, %arg1: i32, %arg2: memref<1x4x2176xf32, #tpu.memory_space<vmem>>, %arg3: memref<9x8x4xf32, #tpu.memory_space<vmem>>, %arg4: memref<1x8x1xf32, #tpu.memory_space<vmem>>, %arg5: memref<1x8x1792xf32, #tpu.memory_space<vmem>>) attributes {dimension_semantics = [#tpu.dimension_semantics<parallel>, #tpu.dimension_semantics<parallel>], iteration_bounds = array<i64: 2, 1>, scalar_prefetch = 0 : i64, scratch_operands = 0 : i64, tpu.core_type = #tpu.core_type<tc>, window_params = [{transform_indices = @transform_0, window_bounds = array<i64: 1, 4, 2176>}, {transform_indices = @transform_1, window_bounds = array<i64: 9, 8, 4>}, {transform_indices = @transform_2, window_bounds = array<i64: 1, 8, 1>}, {transform_indices = @transform_3, window_bounds = array<i64: 1, 8, 1792>}]} {
    %cst = arith.constant 0.000000e+00 : f32
    %0 = vector.broadcast %cst : f32 to vector<8x1792xf32>
    %c0 = arith.constant 0 : index
    %c0_0 = arith.constant 0 : index
    %c0_1 = arith.constant 0 : index
    %1 = vector.load %arg2[%c0, %c0_0, %c0_1] : memref<1x4x2176xf32, #tpu.memory_space<vmem>>, vector<1x4x1792xf32>
    %2 = vector.shape_cast %1 : vector<1x4x1792xf32> to vector<4x1792xf32>
    %c0_2 = arith.constant 0 : index
    %c0_3 = arith.constant 0 : index
    %c0_4 = arith.constant 0 : index
    %3 = vector.load %arg3[%c0_2, %c0_3, %c0_4] : memref<9x8x4xf32, #tpu.memory_space<vmem>>, vector<1x8x4xf32>
    %4 = vector.shape_cast %3 : vector<1x8x4xf32> to vector<8x4xf32>
    %cst_5 = arith.constant dense<0.000000e+00> : vector<8x1792xf32>
    %5 = tpu.matmul %4, %2, %cst_5 {dimension_numbers = #tpu.dot_dimension_numbers<[1], [0], [0], [1], [0, 0, 1, 1], [], []>} : vector<8x4xf32>, vector<4x1792xf32>, vector<8x1792xf32> -> vector<8x1792xf32>
    %6 = arith.addf %0, %5 : vector<8x1792xf32>
    %c0_6 = arith.constant 0 : index
    %c0_7 = arith.constant 0 : index
    %c1 = arith.constant 1 : index
    %7 = vector.load %arg2[%c0_6, %c0_7, %c1] : memref<1x4x2176xf32, #tpu.memory_space<vmem>>, vector<1x4x1792xf32>
    %8 = vector.shape_cast %7 : vector<1x4x1792xf32> to vector<4x1792xf32>
    %c1_8 = arith.constant 1 : index
    %c0_9 = arith.constant 0 : index
    %c0_10 = arith.constant 0 : index
    %9 = vector.load %arg3[%c1_8, %c0_9, %c0_10] : memref<9x8x4xf32, #tpu.memory_space<vmem>>, vector<1x8x4xf32>
    %10 = vector.shape_cast %9 : vector<1x8x4xf32> to vector<8x4xf32>
    %cst_11 = arith.constant dense<0.000000e+00> : vector<8x1792xf32>
    %11 = tpu.matmul %10, %8, %cst_11 {dimension_numbers = #tpu.dot_dimension_numbers<[1], [0], [0], [1], [0, 0, 1, 1], [], []>} : vector<8x4xf32>, vector<4x1792xf32>, vector<8x1792xf32> -> vector<8x1792xf32>
    %12 = arith.addf %6, %11 : vector<8x1792xf32>
    %c0_12 = arith.constant 0 : index
    %c0_13 = arith.constant 0 : index
    %c2 = arith.constant 2 : index
    %13 = vector.load %arg2[%c0_12, %c0_13, %c2] : memref<1x4x2176xf32, #tpu.memory_space<vmem>>, vector<1x4x1792xf32>
    %14 = vector.shape_cast %13 : vector<1x4x1792xf32> to vector<4x1792xf32>
    %c2_14 = arith.constant 2 : index
    %c0_15 = arith.constant 0 : index
    %c0_16 = arith.constant 0 : index
    %15 = vector.load %arg3[%c2_14, %c0_15, %c0_16] : memref<9x8x4xf32, #tpu.memory_space<vmem>>, vector<1x8x4xf32>
    %16 = vector.shape_cast %15 : vector<1x8x4xf32> to vector<8x4xf32>
    %cst_17 = arith.constant dense<0.000000e+00> : vector<8x1792xf32>
    %17 = tpu.matmul %16, %14, %cst_17 {dimension_numbers = #tpu.dot_dimension_numbers<[1], [0], [0], [1], [0, 0, 1, 1], [], []>} : vector<8x4xf32>, vector<4x1792xf32>, vector<8x1792xf32> -> vector<8x1792xf32>
    %18 = arith.addf %12, %17 : vector<8x1792xf32>
    %c0_18 = arith.constant 0 : index
    %c0_19 = arith.constant 0 : index
    %c128 = arith.constant 128 : index
    %19 = vector.load %arg2[%c0_18, %c0_19, %c128] : memref<1x4x2176xf32, #tpu.memory_space<vmem>>, vector<1x4x1792xf32>
    %20 = vector.shape_cast %19 : vector<1x4x1792xf32> to vector<4x1792xf32>
    %c3 = arith.constant 3 : index
    %c0_20 = arith.constant 0 : index
    %c0_21 = arith.constant 0 : index
    %21 = vector.load %arg3[%c3, %c0_20, %c0_21] : memref<9x8x4xf32, #tpu.memory_space<vmem>>, vector<1x8x4xf32>
    %22 = vector.shape_cast %21 : vector<1x8x4xf32> to vector<8x4xf32>
    %cst_22 = arith.constant dense<0.000000e+00> : vector<8x1792xf32>
    %23 = tpu.matmul %22, %20, %cst_22 {dimension_numbers = #tpu.dot_dimension_numbers<[1], [0], [0], [1], [0, 0, 1, 1], [], []>} : vector<8x4xf32>, vector<4x1792xf32>, vector<8x1792xf32> -> vector<8x1792xf32>
    %24 = arith.addf %18, %23 : vector<8x1792xf32>
    %c0_23 = arith.constant 0 : index
    %c0_24 = arith.constant 0 : index
    %c129 = arith.constant 129 : index
    %25 = vector.load %arg2[%c0_23, %c0_24, %c129] : memref<1x4x2176xf32, #tpu.memory_space<vmem>>, vector<1x4x1792xf32>
    %26 = vector.shape_cast %25 : vector<1x4x1792xf32> to vector<4x1792xf32>
    %c4 = arith.constant 4 : index
    %c0_25 = arith.constant 0 : index
    %c0_26 = arith.constant 0 : index
    %27 = vector.load %arg3[%c4, %c0_25, %c0_26] : memref<9x8x4xf32, #tpu.memory_space<vmem>>, vector<1x8x4xf32>
    %28 = vector.shape_cast %27 : vector<1x8x4xf32> to vector<8x4xf32>
    %cst_27 = arith.constant dense<0.000000e+00> : vector<8x1792xf32>
    %29 = tpu.matmul %28, %26, %cst_27 {dimension_numbers = #tpu.dot_dimension_numbers<[1], [0], [0], [1], [0, 0, 1, 1], [], []>} : vector<8x4xf32>, vector<4x1792xf32>, vector<8x1792xf32> -> vector<8x1792xf32>
    %30 = arith.addf %24, %29 : vector<8x1792xf32>
    %c0_28 = arith.constant 0 : index
    %c0_29 = arith.constant 0 : index
    %c130 = arith.constant 130 : index
    %31 = vector.load %arg2[%c0_28, %c0_29, %c130] : memref<1x4x2176xf32, #tpu.memory_space<vmem>>, vector<1x4x1792xf32>
    %32 = vector.shape_cast %31 : vector<1x4x1792xf32> to vector<4x1792xf32>
    %c5 = arith.constant 5 : index
    %c0_30 = arith.constant 0 : index
    %c0_31 = arith.constant 0 : index
    %33 = vector.load %arg3[%c5, %c0_30, %c0_31] : memref<9x8x4xf32, #tpu.memory_space<vmem>>, vector<1x8x4xf32>
    %34 = vector.shape_cast %33 : vector<1x8x4xf32> to vector<8x4xf32>
    %cst_32 = arith.constant dense<0.000000e+00> : vector<8x1792xf32>
    %35 = tpu.matmul %34, %32, %cst_32 {dimension_numbers = #tpu.dot_dimension_numbers<[1], [0], [0], [1], [0, 0, 1, 1], [], []>} : vector<8x4xf32>, vector<4x1792xf32>, vector<8x1792xf32> -> vector<8x1792xf32>
    %36 = arith.addf %30, %35 : vector<8x1792xf32>
    %c0_33 = arith.constant 0 : index
    %c0_34 = arith.constant 0 : index
    %c256 = arith.constant 256 : index
    %37 = vector.load %arg2[%c0_33, %c0_34, %c256] : memref<1x4x2176xf32, #tpu.memory_space<vmem>>, vector<1x4x1792xf32>
    %38 = vector.shape_cast %37 : vector<1x4x1792xf32> to vector<4x1792xf32>
    %c6 = arith.constant 6 : index
    %c0_35 = arith.constant 0 : index
    %c0_36 = arith.constant 0 : index
    %39 = vector.load %arg3[%c6, %c0_35, %c0_36] : memref<9x8x4xf32, #tpu.memory_space<vmem>>, vector<1x8x4xf32>
    %40 = vector.shape_cast %39 : vector<1x8x4xf32> to vector<8x4xf32>
    %cst_37 = arith.constant dense<0.000000e+00> : vector<8x1792xf32>
    %41 = tpu.matmul %40, %38, %cst_37 {dimension_numbers = #tpu.dot_dimension_numbers<[1], [0], [0], [1], [0, 0, 1, 1], [], []>} : vector<8x4xf32>, vector<4x1792xf32>, vector<8x1792xf32> -> vector<8x1792xf32>
    %42 = arith.addf %36, %41 : vector<8x1792xf32>
    %c0_38 = arith.constant 0 : index
    %c0_39 = arith.constant 0 : index
    %c257 = arith.constant 257 : index
    %43 = vector.load %arg2[%c0_38, %c0_39, %c257] : memref<1x4x2176xf32, #tpu.memory_space<vmem>>, vector<1x4x1792xf32>
    %44 = vector.shape_cast %43 : vector<1x4x1792xf32> to vector<4x1792xf32>
    %c7 = arith.constant 7 : index
    %c0_40 = arith.constant 0 : index
    %c0_41 = arith.constant 0 : index
    %45 = vector.load %arg3[%c7, %c0_40, %c0_41] : memref<9x8x4xf32, #tpu.memory_space<vmem>>, vector<1x8x4xf32>
    %46 = vector.shape_cast %45 : vector<1x8x4xf32> to vector<8x4xf32>
    %cst_42 = arith.constant dense<0.000000e+00> : vector<8x1792xf32>
    %47 = tpu.matmul %46, %44, %cst_42 {dimension_numbers = #tpu.dot_dimension_numbers<[1], [0], [0], [1], [0, 0, 1, 1], [], []>} : vector<8x4xf32>, vector<4x1792xf32>, vector<8x1792xf32> -> vector<8x1792xf32>
    %48 = arith.addf %42, %47 : vector<8x1792xf32>
    %c0_43 = arith.constant 0 : index
    %c0_44 = arith.constant 0 : index
    %c258 = arith.constant 258 : index
    %49 = vector.load %arg2[%c0_43, %c0_44, %c258] : memref<1x4x2176xf32, #tpu.memory_space<vmem>>, vector<1x4x1792xf32>
    %50 = vector.shape_cast %49 : vector<1x4x1792xf32> to vector<4x1792xf32>
    %c8 = arith.constant 8 : index
    %c0_45 = arith.constant 0 : index
    %c0_46 = arith.constant 0 : index
    %51 = vector.load %arg3[%c8, %c0_45, %c0_46] : memref<9x8x4xf32, #tpu.memory_space<vmem>>, vector<1x8x4xf32>
    %52 = vector.shape_cast %51 : vector<1x8x4xf32> to vector<8x4xf32>
    %cst_47 = arith.constant dense<0.000000e+00> : vector<8x1792xf32>
    %53 = tpu.matmul %52, %50, %cst_47 {dimension_numbers = #tpu.dot_dimension_numbers<[1], [0], [0], [1], [0, 0, 1, 1], [], []>} : vector<8x4xf32>, vector<4x1792xf32>, vector<8x1792xf32> -> vector<8x1792xf32>
    %54 = arith.addf %48, %53 : vector<8x1792xf32>
    %c0_48 = arith.constant 0 : index
    %c0_49 = arith.constant 0 : index
    %c0_50 = arith.constant 0 : index
    %55 = vector.load %arg4[%c0_48, %c0_49, %c0_50] : memref<1x8x1xf32, #tpu.memory_space<vmem>>, vector<1x8x1xf32>
    %56 = vector.shape_cast %55 : vector<1x8x1xf32> to vector<8x1xf32>
    %57 = vector.broadcast %56 : vector<8x1xf32> to vector<8x1792xf32>
    %58 = arith.addf %54, %57 : vector<8x1792xf32>
    %c0_51 = arith.constant 0 : index
    %c0_52 = arith.constant 0 : index
    %c0_53 = arith.constant 0 : index
    %59 = vector.load %arg5[%c0_51, %c0_52, %c0_53] : memref<1x8x1792xf32, #tpu.memory_space<vmem>>, vector<1x8x1792xf32>
    %60 = vector.shape_cast %59 : vector<1x8x1792xf32> to vector<8x1792xf32>
    %61 = vector.shape_cast %58 : vector<8x1792xf32> to vector<1x8x1792xf32>
    tpu.vector_store %arg5[%c0_51, %c0_52, %c0_53], %61 {strides = array<i32>} : memref<1x8x1792xf32, #tpu.memory_space<vmem>>, vector<1x8x1792xf32>,
    return
  }
  func.func @transform_0(%arg0: i32, %arg1: i32) -> (i32, i32, i32) {
    %c0_i32 = arith.constant 0 : i32
    %c0_i32_0 = arith.constant 0 : i32
    %c0_i32_1 = arith.constant 0 : i32
    return %arg0, %c0_i32, %c0_i32_0 : i32, i32, i32
  }
  func.func @transform_1(%arg0: i32, %arg1: i32) -> (i32, i32, i32) {
    %c0_i32 = arith.constant 0 : i32
    %c0_i32_0 = arith.constant 0 : i32
    %c0_i32_1 = arith.constant 0 : i32
    return %c0_i32, %arg1, %c0_i32_0 : i32, i32, i32
  }
  func.func @transform_2(%arg0: i32, %arg1: i32) -> (i32, i32, i32) {
    %c0_i32 = arith.constant 0 : i32
    %c0_i32_0 = arith.constant 0 : i32
    return %arg0, %arg1, %c0_i32 : i32, i32, i32
  }
  func.func @transform_3(%arg0: i32, %arg1: i32) -> (i32, i32, i32) {
    %c0_i32 = arith.constant 0 : i32
    %c0_i32_0 = arith.constant 0 : i32
    return %arg0, %arg1, %c0_i32 : i32, i32, i32
  }
}

</mosaic_0001>

<llo_original>
// kernel: contextual_conv2d.1
$region0: #{contextual_conv2d.1}
  #allocation0 [shape = 'u32[]', space=smem, size = 0x4, offset = 0x4, fixed_abs, tag = 'smem constant byte address 0x4 - core index']
  #allocation1 [shape = 'u32[144,128]{1,0:T(1,128)}', space=vmem, size = 0x12000, scoped, tag = 'internal scratch']
  %s0 = inlined_call_operand.vmem [shape: f32[2,4,2176], index: 0, kind: input, shape index: {}]
  %s1 = inlined_call_operand.vmem [shape: f32[9,8,4], index: 1, kind: input, shape index: {}]
  %s2 = inlined_call_operand.vmem [shape: f32[2,8,1], index: 2, kind: input, shape index: {}]
  %s3 = inlined_call_operand.hbm [shape: f32[2,8,1792], index: 3, kind: output, shape index: {}]
  %s4 = sld [smem:[#allocation0]]
  $region45: #{contextual_conv2d.1} parent=0
    _
  %s6 = ssub.s32 1, %s4
  %s7 = scalar_select 0, %s6, %s4
  $region1: #{contextual_conv2d.1} parent=0
    #allocation2 [shape = 'u8[114688]{0}', space=vmem, size = 0x1c000, scoped, tag = 'output window, operand 0']
    #allocation3 [shape = 's32[2]{0}', space=sflag, size = 0x8, scoped, tag = 'scoped memory for contextual_conv2d.1']
    %8 = vsyncpa [#allocation3], 0
    %s9 = scalar_lea.sflag [#allocation3], 1
    %10 = vsyncpa %s9, 0
    loop: start=0, step=1, limit=4
    $region2: #{contextual_conv2d.1} parent=1 // loop_pre_header
      _
    $region3: #{contextual_conv2d.1} parent=1 // loop_header
      %s12 = sphi 0, %s16
      %p13 = scmp.ge.s32.totalorder %s12, 4
      %s19 = sphi 0, %s31
      %s20 = sphi 0, %s27
      %s21 = sphi 0, %s19
      %s22 = sphi 0, %s20
      %s23 = sphi 0, %s21
      %s24 = sphi 0, %s22
      %s34 = sphi 0, %s36
      %s37 = sphi 0, %s34
      %s38 = sphi 0, %s37
      %s54 = sphi 0, %s38
      %s60 = sphi 0, %s62
      %s63 = sphi 0, %s60
      %s64 = sphi 0, %s63
      %s80 = sphi 0, %s64
      %s88 = sphi 0, %s90
      %s91 = sphi 0, %s88
      %s92 = sphi 0, %s91
      %s108 = sphi 0, %s92
      %s116 = sphi 0, %s118
      %s119 = sphi 0, %s116
      %s120 = sphi 0, %s119
      %s136 = sphi 0, %s120
    $region4: #{contextual_conv2d.1} parent=1 // loop_header_branch
      %15 = sbr.rel (%p13) target = $region8
    $region5: #{contextual_conv2d.1} parent=1 // loop_body
      %s17 = ssub.s32 %s12, 1
      %s18 = ssub.s32 %s12, 2
      %s25 = sadd.s32 1, %s20
      %p26 = scmp.ge.s32.totalorder %s25, 1
      %s27 = scalar_select %p26, 0, %s25
      %s28 = sadd.s32 1, %s19
      %s29 = scalar_select %p26, %s28, %s19
      %p30 = scmp.ge.s32.totalorder %s29, 2
      %s31 = scalar_select %p30, 0, %s29
      %s32 = ssub.s32 %s19, %s31
      %p33 = scmp.eq.s32.totalorder %s32, 0
      %s35 = sadd.s32 %s34, 1
      %s36 = scalar_select %p33, %s34, %s35
      %p39 = pneg %p33
      %p40 = scmp.eq.s32.totalorder %s12, 1
      %p41 = por %p39, %p40
      %p42 = scmp.ne.s32.totalorder %s34, %s37
      %p43 = scmp.eq.s32.totalorder %s12, 0
      %p44 = por %p42, %p43
      %p45 = scmp.ne.s32.totalorder %s34, %s37
      %p46 = scmp.eq.s32.totalorder %s17, 1
      %p47 = por %p45, %p46
      %p48 = scmp.ne.s32.totalorder %s37, %s38
      %p49 = scmp.eq.s32.totalorder %s17, 0
      %p50 = por %p48, %p49
      %p51 = scmp.ne.s32.totalorder %s37, %s38
      %p52 = scmp.eq.s32.totalorder %s18, 1
      %p53 = por %p51, %p52
      %p55 = scmp.ne.s32.totalorder %s38, %s54
      %p56 = scmp.eq.s32.totalorder %s18, 0
      %p57 = por %p55, %p56
      %s58 = ssub.s32 %s20, %s27
      %p59 = scmp.eq.s32.totalorder %s58, 0
      %s61 = sadd.s32 %s60, 1
      %s62 = scalar_select %p59, %s60, %s61
      %p65 = pneg %p59
      %p66 = scmp.eq.s32.totalorder %s12, 1
      %p67 = por %p65, %p66
      %p68 = scmp.ne.s32.totalorder %s60, %s63
      %p69 = scmp.eq.s32.totalorder %s12, 0
      %p70 = por %p68, %p69
      %p71 = scmp.ne.s32.totalorder %s60, %s63
      %p72 = scmp.eq.s32.totalorder %s17, 1
      %p73 = por %p71, %p72
      %p74 = scmp.ne.s32.totalorder %s63, %s64
      %p75 = scmp.eq.s32.totalorder %s17, 0
      %p76 = por %p74, %p75
      %p77 = scmp.ne.s32.totalorder %s63, %s64
      %p78 = scmp.eq.s32.totalorder %s18, 1
      %p79 = por %p77, %p78
      %p81 = scmp.ne.s32.totalorder %s64, %s80
      %p82 = scmp.eq.s32.totalorder %s18, 0
      %p83 = por %p81, %p82
      %s84 = ssub.s32 %s19, %s31
      %s85 = ssub.s32 %s20, %s27
      %s86 = sor.u32 %s84, %s85
      %p87 = scmp.eq.s32.totalorder %s86, 0
      %s89 = sadd.s32 %s88, 1
      %s90 = scalar_select %p87, %s88, %s89
      %p93 = pneg %p87
      %p94 = scmp.eq.s32.totalorder %s12, 1
      %p95 = por %p93, %p94
      %p96 = scmp.ne.s32.totalorder %s88, %s91
      %p97 = scmp.eq.s32.totalorder %s12, 0
      %p98 = por %p96, %p97
      %p99 = scmp.ne.s32.totalorder %s88, %s91
      %p100 = scmp.eq.s32.totalorder %s17, 1
      %p101 = por %p99, %p100
      %p102 = scmp.ne.s32.totalorder %s91, %s92
      %p103 = scmp.eq.s32.totalorder %s17, 0
      %p104 = por %p102, %p103
      %p105 = scmp.ne.s32.totalorder %s91, %s92
      %p106 = scmp.eq.s32.totalorder %s18, 1
      %p107 = por %p105, %p106
      %p109 = scmp.ne.s32.totalorder %s92, %s108
      %p110 = scmp.eq.s32.totalorder %s18, 0
      %p111 = por %p109, %p110
      %s112 = ssub.s32 %s19, %s31
      %s113 = ssub.s32 %s20, %s27
      %s114 = sor.u32 %s112, %s113
      %p115 = scmp.eq.s32.totalorder %s114, 0
      %s117 = sadd.s32 %s116, 1
      %s118 = scalar_select %p115, %s116, %s117
      %p121 = pneg %p115
      %p122 = scmp.eq.s32.totalorder %s12, 1
      %p123 = por %p121, %p122
      %p124 = scmp.ne.s32.totalorder %s116, %s119
      %p125 = scmp.eq.s32.totalorder %s12, 0
      %p126 = por %p124, %p125
      %p127 = scmp.ne.s32.totalorder %s116, %s119
      %p128 = scmp.eq.s32.totalorder %s17, 1
      %p129 = por %p127, %p128
      %p130 = scmp.ne.s32.totalorder %s119, %s120
      %p131 = scmp.eq.s32.totalorder %s17, 0
      %p132 = por %p130, %p131
      %p133 = scmp.ne.s32.totalorder %s119, %s120
      %p134 = scmp.eq.s32.totalorder %s18, 1
      %p135 = por %p133, %p134
      %p137 = scmp.ne.s32.totalorder %s120, %s136
      %p138 = scmp.eq.s32.totalorder %s18, 0
      %p139 = por %p137, %p138
      %p140 = scmp.le.s32.totalorder 1, %s12
      %p141 = scmp.lt.s32.totalorder %s12, 3
      %p142 = pnand %p140, %p141
      %p143 = pneg %p142
      // Predicated region
      $region9: #{contextual_conv2d.1} parent=5 // pred_check
        _
      $region10: #{contextual_conv2d.1} parent=5 // pred_check_branch
        %145 = sbr.rel (%p142) target = $region12
      $region11: #{contextual_conv2d.1} parent=5 // pred_region
        %s146 = ssub.s32 %s12, 1
        // Predicated region
        $region13: #{contextual_conv2d.1} parent=11 // pred_check
          %p147 = pneg %p76
        $region14: #{contextual_conv2d.1} parent=11 // pred_check_branch
          %149 = sbr.rel (%p147) target = $region16
        $region15: #{contextual_conv2d.1} parent=11 // pred_region
          %p150 = scmp.lt.s32.totalorder %s22, 0
          %s151 = scalar_select %p150, %s22, 0
          %s152 = smul.addr %s151, 8
          %s153 = scalar_lea.vmem %s1, %s152
        $region16: #{contextual_conv2d.1} parent=11 // pred_fallthru
          _
      $region12: #{contextual_conv2d.1} parent=5 // pred_fallthru
        _
      %p154 = scmp.lt.s32.totalorder %s12, 2
      // Predicated region
      $region17: #{contextual_conv2d.1} parent=5 // pred_check
        %p155 = pneg %p154
      $region18: #{contextual_conv2d.1} parent=5 // pred_check_branch
        %157 = sbr.rel (%p155) target = $region20
      $region19: #{contextual_conv2d.1} parent=5 // pred_region
        // Predicated region
        $region21: #{contextual_conv2d.1} parent=19 // pred_check
          %p158 = pneg %p44
        $region22: #{contextual_conv2d.1} parent=19 // pred_check_branch
          %160 = sbr.rel (%p158) target = $region24
        $region23: #{contextual_conv2d.1} parent=19 // pred_region
          %p161 = scmp.lt.s32.totalorder %s19, 1
          %s162 = scalar_select %p161, %s19, 1
          %s163 = smul.addr %s162, 17
          %s164 = smul.addr %s163, 4
          %s165 = scalar_lea.vmem %s0, %s164
        $region24: #{contextual_conv2d.1} parent=19 // pred_fallthru
          _
        // Predicated region
        $region25: #{contextual_conv2d.1} parent=19 // pred_check
          %p166 = pneg %p98
        $region26: #{contextual_conv2d.1} parent=19 // pred_check_branch
          %168 = sbr.rel (%p166) target = $region28
        $region27: #{contextual_conv2d.1} parent=19 // pred_region
          %p169 = scmp.lt.s32.totalorder %s19, 1
          %s170 = scalar_select %p169, %s19, 1
          %p171 = scmp.lt.s32.totalorder %s20, 0
          %s172 = scalar_select %p171, %s20, 0
          %s173 = sadd.s32 %s172, %s170
          %s174 = smul.addr %s173, 8
          %s175 = scalar_lea.vmem %s2, %s174
        $region28: #{contextual_conv2d.1} parent=19 // pred_fallthru
          _
      $region20: #{contextual_conv2d.1} parent=5 // pred_fallthru
        _
      %p176 = scmp.le.s32.totalorder 1, %s12
      %p177 = scmp.lt.s32.totalorder %s12, 3
      %p178 = pnand %p176, %p177
      %p179 = pneg %p178
      // Predicated region
      $region29: #{contextual_conv2d.1} parent=5 // pred_check
        _
      $region30: #{contextual_conv2d.1} parent=5 // pred_check_branch
        %181 = sbr.rel (%p178) target = $region32
      $region31: #{contextual_conv2d.1} parent=5 // pred_region
        %s182 = ssub.s32 %s12, 1
        %p183 = scmp.lt.s32.totalorder %s21, 1
        %s184 = scalar_select %p183, %s21, 1
        %s185 = smul.addr %s184, 17
        %s186 = smul.addr %s185, 4
        %s187 = scalar_lea.vmem %s0, %s186
        %p188 = pneg %p50
        %p189 = pneg %p47
        %p190 = scmp.lt.s32.totalorder %s22, 0
        %s191 = scalar_select %p190, %s22, 0
        %s192 = smul.addr %s191, 8
        %s193 = scalar_lea.vmem %s1, %s192
        %p194 = pneg %p76
        %p195 = pneg %p73
        %p196 = scmp.lt.s32.totalorder %s21, 1
        %s197 = scalar_select %p196, %s21, 1
        %p198 = scmp.lt.s32.totalorder %s22, 0
        %s199 = scalar_select %p198, %s22, 0
        %s200 = sadd.s32 %s199, %s197
        %s201 = smul.addr %s200, 8
        %s202 = scalar_lea.vmem %s2, %s201
        %p203 = pneg %p104
        %p204 = pneg %p101
        %p205 = pneg %p132
        %p206 = pneg %p129
        %s207 = sand.u32 %s119, 1
        %s208 = scalar_lea.sflag [#allocation3], %s207
        %s209 = sand.u32 %s119, 1
        %s210 = smul.addr %s209, 112
        %s211 = scalar_lea.vmem [#allocation2], %s210
        %p212 = scmp.lt.s32.totalorder %s21, 1
        %s213 = scalar_select %p212, %s21, 1
        %s214 = smul.addr %s213, 17
        %s215 = smul.addr %s214, 4
        %s216 = scalar_lea.vmem %s0, %s215
        %p217 = scmp.lt.s32.totalorder %s22, 0
        %s218 = scalar_select %p217, %s22, 0
        %s219 = smul.addr %s218, 8
        %s220 = scalar_lea.vmem %s1, %s219
        %p221 = scmp.lt.s32.totalorder %s21, 1
        %s222 = scalar_select %p221, %s21, 1
        %p223 = scmp.lt.s32.totalorder %s22, 0
        %s224 = scalar_select %p223, %s22, 0
        %s225 = sadd.s32 %s224, %s222
        %s226 = smul.addr %s225, 8
        %s227 = scalar_lea.vmem %s2, %s226
        %v228 = vld [vmem:[%s216] sm:$0xff]
        %v229 = vld [vmem:[%s216 + $0x8] sm:$0xff]
        %v230 = vld [vmem:[%s216 + $0x10] sm:$0xff]
        %v231 = vld [vmem:[%s216 + $0x18] sm:$0xff]
        %v232 = vld [vmem:[%s216 + $0x20] sm:$0xff]
        %v233 = vld [vmem:[%s216 + $0x28] sm:$0xff]
        %v234 = vld [vmem:[%s216 + $0x30] sm:$0xff]
        %v235 = vld [vmem:[%s220] sm:$0xff]
        %v236 = vld [vmem:[%s216 + $0x38] sm:$0xf]
        %s237 = scalar_lea.vmem %s220, 8
        %v238 = vld [vmem:[%s237] sm:$0xff]
        %v247 = vcombine.high %v228, %v228
        %v248 = vcombine.high %v229, %v229
        %v249 = vcombine.high %v230, %v230
        %v250 = vcombine.high %v231, %v231
        %v251 = vcombine.high %v232, %v232
        %v252 = vcombine.high %v233, %v233
        %v253 = vcombine.high %v234, %v234
        %254 = vrot.lane.b32.xlu0 %v228, 127
        %v255 = vpop.permute.xlu0 %254
        %256 = vrot.lane.b32.xlu0 %v247, 127
        %v257 = vpop.permute.xlu0 %256
        %258 = vrot.lane.b32.xlu0 %v229, 127
        %v259 = vpop.permute.xlu0 %258
        %260 = vrot.lane.b32.xlu0 %v248, 127
        %v261 = vpop.permute.xlu0 %260
        %262 = vrot.lane.b32.xlu0 %v230, 127
        %v263 = vpop.permute.xlu0 %262
        %264 = vrot.lane.b32.xlu0 %v249, 127
        %v265 = vpop.permute.xlu0 %264
        %266 = vrot.lane.b32.xlu0 %v231, 127
        %v267 = vpop.permute.xlu0 %266
        %268 = vrot.lane.b32.xlu0 %v250, 127
        %v269 = vpop.permute.xlu0 %268
        %270 = vrot.lane.b32.xlu0 %v232, 127
        %v271 = vpop.permute.xlu0 %270
        %272 = vrot.lane.b32.xlu0 %v251, 127
        %v273 = vpop.permute.xlu0 %272
        %274 = vrot.lane.b32.xlu0 %v233, 127
        %v275 = vpop.permute.xlu0 %274
        %276 = vrot.lane.b32.xlu0 %v252, 127
        %v277 = vpop.permute.xlu0 %276
        %278 = vrot.lane.b32.xlu0 %v234, 127
        %v279 = vpop.permute.xlu0 %278
        %280 = vrot.lane.b32.xlu0 %v253, 127
        %v281 = vpop.permute.xlu0 %280
        %282 = vrot.lane.b32.xlu0 %v236, 127
        %v283 = vpop.permute.xlu0 %282
        %vm284 = vcmask 1039360
        %v285 = vsel %vm284, %v255, %v257
        %v286 = vsel %vm284, %v257, %v259
        %v287 = vsel %vm284, %v259, %v261
        %v288 = vsel %vm284, %v261, %v263
        %v289 = vsel %vm284, %v263, %v265
        %v290 = vsel %vm284, %v265, %v267
        %v291 = vsel %vm284, %v267, %v269
        %v292 = vsel %vm284, %v269, %v271
        %v293 = vsel %vm284, %v271, %v273
        %v294 = vsel %vm284, %v273, %v275
        %v295 = vsel %vm284, %v275, %v277
        %v296 = vsel %vm284, %v277, %v279
        %v297 = vsel %vm284, %v279, %v281
        %v298 = vsel %vm284, %v281, %v283
        %vm299 = vcmask 31744
        %v301 = vsel %vm299, %v238, 0
        %vm303 = vcmask 1043456
        %v304 = vsel %vm303, %v285, 0
        %v306 = vsel %vm303, %v286, 0
        %v308 = vsel %vm303, %v287, 0
        %v310 = vsel %vm303, %v288, 0
        %v312 = vsel %vm303, %v289, 0
        %v314 = vsel %vm303, %v290, 0
        %v316 = vsel %vm303, %v291, 0
        %v318 = vsel %vm303, %v292, 0
        %v320 = vsel %vm303, %v293, 0
        %v322 = vsel %vm303, %v294, 0
        %v324 = vsel %vm303, %v295, 0
        %v326 = vsel %vm303, %v296, 0
        %v328 = vsel %vm303, %v297, 0
        %v330 = vsel %vm303, %v298, 0
        %332 = vmatprep.subr.mxu0 %v306
        %333 = vmatpush1.msra.mxu0 %v304
        %334 = vmatprep.subr.mxu0 0.0
        %335 = vmatpush1.msra.mxu0 0.0
        %336 = vmatprep.subr.mxu0 0.0
        %337 = vmatpush1.msra.mxu0 0.0
        %338 = vmatprep.subr.mxu0 0.0
        %339 = vmatpush1.msra.mxu0 0.0
        %340 = vmatprep.subr.mxu0 0.0
        %341 = vmatpush1.msra.mxu0 0.0
        %342 = vmatprep.subr.mxu0 0.0
        %343 = vmatpush1.msra.mxu0 0.0
        %344 = vmatprep.subr.mxu0 0.0
        %345 = vmatpush1.msra.mxu0 0.0
        %346 = vmatprep.subr.mxu0 0.0
        %347 = vmatpush1.msra.mxu0 0.0
        %348 = vmatprep.subr.mxu0 0.0
        %349 = vmatpush1.msra.mxu0 0.0
        %350 = vmatprep.subr.mxu0 0.0
        %351 = vmatpush1.msra.mxu0 0.0
        %352 = vmatprep.subr.mxu0 0.0
        %353 = vmatpush1.msra.mxu0 0.0
        %354 = vmatprep.subr.mxu0 0.0
        %355 = vmatpush1.msra.mxu0 0.0
        %356 = vmatprep.subr.mxu0 0.0
        %357 = vmatpush1.msra.mxu0 0.0
        %358 = vmatprep.subr.mxu0 0.0
        %359 = vmatpush1.msra.mxu0 0.0
        %360 = vmatprep.subr.mxu0 0.0
        %361 = vmatpush1.msra.mxu0 0.0
        %362 = vmatprep.subr.mxu0 0.0
        %363 = vmatpush1.msra.mxu0 0.0
        %364 = vmatprep.subr.mxu0 0.0
        %365 = vmatpush1.msra.mxu0 0.0
        %366 = vmatprep.subr.mxu0 0.0
        %367 = vmatpush1.msra.mxu0 0.0
        %368 = vmatprep.subr.mxu0 0.0
        %369 = vmatpush1.msra.mxu0 0.0
        %370 = vmatprep.subr.mxu0 0.0
        %371 = vmatpush1.msra.mxu0 0.0
        %372 = vmatprep.subr.mxu0 0.0
        %373 = vmatpush1.msra.mxu0 0.0
        %374 = vmatprep.subr.mxu0 0.0
        %375 = vmatpush1.msra.mxu0 0.0
        %376 = vmatprep.subr.mxu0 0.0
        %377 = vmatpush1.msra.mxu0 0.0
        %378 = vmatprep.subr.mxu0 0.0
        %379 = vmatpush1.msra.mxu0 0.0
        %380 = vmatprep.subr.mxu0 0.0
        %381 = vmatpush1.msra.mxu0 0.0
        %382 = vmatprep.subr.mxu0 0.0
        %383 = vmatpush1.msra.mxu0 0.0
        %384 = vmatprep.subr.mxu0 0.0
        %385 = vmatpush1.msra.mxu0 0.0
        %386 = vmatprep.subr.mxu0 0.0
        %387 = vmatpush1.msra.mxu0 0.0
        %388 = vmatprep.subr.mxu0 0.0
        %389 = vmatpush1.msra.mxu0 0.0
        %390 = vmatprep.subr.mxu0 0.0
        %391 = vmatpush1.msra.mxu0 0.0
        %392 = vmatprep.subr.mxu0 0.0
        %393 = vmatpush1.msra.mxu0 0.0
        %394 = vmatprep.subr.mxu0 0.0
        %395 = vmatpush1.msra.mxu0 0.0
        %396 = vmatprep.mubr.f32.mxu0 0.0
        %397 = vmatmul.mubr.f32.gmra.mrb[0].mxu0 %v301
        %v398 = vpop.f32.mrb[0].mxu0
        %v399 = vadd.f32 0.0, %v398
        %v400 = vpop.f32.mrb[0].mxu0
        %v401 = vadd.f32 0.0, %v400
        %402 = vdwg.mxu0
        %403 = vmatprep.subr.mxu0 %v310
        %404 = vmatpush1.msra.mxu0 %v308
        %405 = vmatprep.subr.mxu0 0.0
        %406 = vmatpush1.msra.mxu0 0.0
        %407 = vmatprep.subr.mxu0 0.0
        %408 = vmatpush1.msra.mxu0 0.0
        %409 = vmatprep.subr.mxu0 0.0
        %410 = vmatpush1.msra.mxu0 0.0
        %411 = vmatprep.subr.mxu0 0.0
        %412 = vmatpush1.msra.mxu0 0.0
        %413 = vmatprep.subr.mxu0 0.0
        %414 = vmatpush1.msra.mxu0 0.0
        %415 = vmatprep.subr.mxu0 0.0
        %416 = vmatpush1.msra.mxu0 0.0
        %417 = vmatprep.subr.mxu0 0.0
        %418 = vmatpush1.msra.mxu0 0.0
        %419 = vmatprep.subr.mxu0 0.0
        %420 = vmatpush1.msra.mxu0 0.0
        %421 = vmatprep.subr.mxu0 0.0
        %422 = vmatpush1.msra.mxu0 0.0
        %423 = vmatprep.subr.mxu0 0.0
        %424 = vmatpush1.msra.mxu0 0.0
        %425 = vmatprep.subr.mxu0 0.0
        %426 = vmatpush1.msra.mxu0 0.0
        %427 = vmatprep.subr.mxu0 0.0
        %428 = vmatpush1.msra.mxu0 0.0
        %429 = vmatprep.subr.mxu0 0.0
        %430 = vmatpush1.msra.mxu0 0.0
        %431 = vmatprep.subr.mxu0 0.0
        %432 = vmatpush1.msra.mxu0 0.0
        %433 = vmatprep.subr.mxu0 0.0
        %434 = vmatpush1.msra.mxu0 0.0
        %435 = vmatprep.subr.mxu0 0.0
        %436 = vmatpush1.msra.mxu0 0.0
        %437 = vmatprep.subr.mxu0 0.0
        %438 = vmatpush1.msra.mxu0 0.0
        %439 = vmatprep.subr.mxu0 0.0
        %440 = vmatpush1.msra.mxu0 0.0
        %441 = vmatprep.subr.mxu0 0.0
        %442 = vmatpush1.msra.mxu0 0.0
        %443 = vmatprep.subr.mxu0 0.0
        %444 = vmatpush1.msra.mxu0 0.0
        %445 = vmatprep.subr.mxu0 0.0
        %446 = vmatpush1.msra.mxu0 0.0
        %447 = vmatprep.subr.mxu0 0.0
        %448 = vmatpush1.msra.mxu0 0.0
        %449 = vmatprep.subr.mxu0 0.0
        %450 = vmatpush1.msra.mxu0 0.0
        %451 = vmatprep.subr.mxu0 0.0
        %452 = vmatpush1.msra.mxu0 0.0
        %453 = vmatprep.subr.mxu0 0.0
        %454 = vmatpush1.msra.mxu0 0.0
        %455 = vmatprep.subr.mxu0 0.0
        %456 = vmatpush1.msra.mxu0 0.0
        %457 = vmatprep.subr.mxu0 0.0
        %458 = vmatpush1.msra.mxu0 0.0
        %459 = vmatprep.subr.mxu0 0.0
        %460 = vmatpush1.msra.mxu0 0.0
        %461 = vmatprep.subr.mxu0 0.0
        %462 = vmatpush1.msra.mxu0 0.0
        %463 = vmatprep.subr.mxu0 0.0
        %464 = vmatpush1.msra.mxu0 0.0
        %465 = vmatprep.subr.mxu0 0.0
        %466 = vmatpush1.msra.mxu0 0.0
        %467 = vmatprep.mubr.f32.mxu0 0.0
        %468 = vmatmul.mubr.f32.gmra.mrb[0].mxu0 %v301
        %v469 = vpop.f32.mrb[0].mxu0
        %v470 = vadd.f32 0.0, %v469
        %v471 = vpop.f32.mrb[0].mxu0
        %v472 = vadd.f32 0.0, %v471
        %473 = vdwg.mxu0
        %474 = vmatprep.subr.mxu0 %v314
        %475 = vmatpush1.msra.mxu0 %v312
        %476 = vmatprep.subr.mxu0 0.0
        %477 = vmatpush1.msra.mxu0 0.0
        %478 = vmatprep.subr.mxu0 0.0
        %479 = vmatpush1.msra.mxu0 0.0
        %480 = vmatprep.subr.mxu0 0.0
        %481 = vmatpush1.msra.mxu0 0.0
        %482 = vmatprep.subr.mxu0 0.0
        %483 = vmatpush1.msra.mxu0 0.0
        %484 = vmatprep.subr.mxu0 0.0
        %485 = vmatpush1.msra.mxu0 0.0
        %486 = vmatprep.subr.mxu0 0.0
        %487 = vmatpush1.msra.mxu0 0.0
        %488 = vmatprep.subr.mxu0 0.0
        %489 = vmatpush1.msra.mxu0 0.0
        %490 = vmatprep.subr.mxu0 0.0
        %491 = vmatpush1.msra.mxu0 0.0
        %492 = vmatprep.subr.mxu0 0.0
        %493 = vmatpush1.msra.mxu0 0.0
        %494 = vmatprep.subr.mxu0 0.0
        %495 = vmatpush1.msra.mxu0 0.0
        %496 = vmatprep.subr.mxu0 0.0
        %497 = vmatpush1.msra.mxu0 0.0
        %498 = vmatprep.subr.mxu0 0.0
        %499 = vmatpush1.msra.mxu0 0.0
        %500 = vmatprep.subr.mxu0 0.0
        %501 = vmatpush1.msra.mxu0 0.0
        %502 = vmatprep.subr.mxu0 0.0
        %503 = vmatpush1.msra.mxu0 0.0
        %504 = vmatprep.subr.mxu0 0.0
        %505 = vmatpush1.msra.mxu0 0.0
        %506 = vmatprep.subr.mxu0 0.0
        %507 = vmatpush1.msra.mxu0 0.0
        %508 = vmatprep.subr.mxu0 0.0
        %509 = vmatpush1.msra.mxu0 0.0
        %510 = vmatprep.subr.mxu0 0.0
        %511 = vmatpush1.msra.mxu0 0.0
        %512 = vmatprep.subr.mxu0 0.0
        %513 = vmatpush1.msra.mxu0 0.0
        %514 = vmatprep.subr.mxu0 0.0
        %515 = vmatpush1.msra.mxu0 0.0
        %516 = vmatprep.subr.mxu0 0.0
        %517 = vmatpush1.msra.mxu0 0.0
        %518 = vmatprep.subr.mxu0 0.0
        %519 = vmatpush1.msra.mxu0 0.0
        %520 = vmatprep.subr.mxu0 0.0
        %521 = vmatpush1.msra.mxu0 0.0
        %522 = vmatprep.subr.mxu0 0.0
        %523 = vmatpush1.msra.mxu0 0.0
        %524 = vmatprep.subr.mxu0 0.0
        %525 = vmatpush1.msra.mxu0 0.0
        %526 = vmatprep.subr.mxu0 0.0
        %527 = vmatpush1.msra.mxu0 0.0
        %528 = vmatprep.subr.mxu0 0.0
        %529 = vmatpush1.msra.mxu0 0.0
        %530 = vmatprep.subr.mxu0 0.0
        %531 = vmatpush1.msra.mxu0 0.0
        %532 = vmatprep.subr.mxu0 0.0
        %533 = vmatpush1.msra.mxu0 0.0
        %534 = vmatprep.subr.mxu0 0.0
        %535 = vmatpush1.msra.mxu0 0.0
        %536 = vmatprep.subr.mxu0 0.0
        %537 = vmatpush1.msra.mxu0 0.0
        %538 = vmatprep.mubr.f32.mxu0 0.0
        %539 = vmatmul.mubr.f32.gmra.mrb[0].mxu0 %v301
        %v540 = vpop.f32.mrb[0].mxu0
        %v541 = vadd.f32 0.0, %v540
        %v542 = vpop.f32.mrb[0].mxu0
        %v543 = vadd.f32 0.0, %v542
        %544 = vdwg.mxu0
        %545 = vmatprep.subr.mxu0 %v318
        %546 = vmatpush1.msra.mxu0 %v316
        %547 = vmatprep.subr.mxu0 0.0
        %548 = vmatpush1.msra.mxu0 0.0
        %549 = vmatprep.subr.mxu0 0.0
        %550 = vmatpush1.msra.mxu0 0.0
        %551 = vmatprep.subr.mxu0 0.0
        %552 = vmatpush1.msra.mxu0 0.0
        %553 = vmatprep.subr.mxu0 0.0
        %554 = vmatpush1.msra.mxu0 0.0
        %555 = vmatprep.subr.mxu0 0.0
        %556 = vmatpush1.msra.mxu0 0.0
        %557 = vmatprep.subr.mxu0 0.0
        %558 = vmatpush1.msra.mxu0 0.0
        %559 = vmatprep.subr.mxu0 0.0
        %560 = vmatpush1.msra.mxu0 0.0
        %561 = vmatprep.subr.mxu0 0.0
        %562 = vmatpush1.msra.mxu0 0.0
        %563 = vmatprep.subr.mxu0 0.0
        %564 = vmatpush1.msra.mxu0 0.0
        %565 = vmatprep.subr.mxu0 0.0
        %566 = vmatpush1.msra.mxu0 0.0
        %567 = vmatprep.subr.mxu0 0.0
        %568 = vmatpush1.msra.mxu0 0.0
        %569 = vmatprep.subr.mxu0 0.0
        %570 = vmatpush1.msra.mxu0 0.0
        %571 = vmatprep.subr.mxu0 0.0
        %572 = vmatpush1.msra.mxu0 0.0
        %573 = vmatprep.subr.mxu0 0.0
        %574 = vmatpush1.msra.mxu0 0.0
        %575 = vmatprep.subr.mxu0 0.0
        %576 = vmatpush1.msra.mxu0 0.0
        %577 = vmatprep.subr.mxu0 0.0
        %578 = vmatpush1.msra.mxu0 0.0
        %579 = vmatprep.subr.mxu0 0.0
        %580 = vmatpush1.msra.mxu0 0.0
        %581 = vmatprep.subr.mxu0 0.0
        %582 = vmatpush1.msra.mxu0 0.0
        %583 = vmatprep.subr.mxu0 0.0
        %584 = vmatpush1.msra.mxu0 0.0
        %585 = vmatprep.subr.mxu0 0.0
        %586 = vmatpush1.msra.mxu0 0.0
        %587 = vmatprep.subr.mxu0 0.0
        %588 = vmatpush1.msra.mxu0 0.0
        %589 = vmatprep.subr.mxu0 0.0
        %590 = vmatpush1.msra.mxu0 0.0
        %591 = vmatprep.subr.mxu0 0.0
        %592 = vmatpush1.msra.mxu0 0.0
        %593 = vmatprep.subr.mxu0 0.0
        %594 = vmatpush1.msra.mxu0 0.0
        %595 = vmatprep.subr.mxu0 0.0
        %596 = vmatpush1.msra.mxu0 0.0
        %597 = vmatprep.subr.mxu0 0.0
        %598 = vmatpush1.msra.mxu0 0.0
        %599 = vmatprep.subr.mxu0 0.0
        %600 = vmatpush1.msra.mxu0 0.0
        %601 = vmatprep.subr.mxu0 0.0
        %602 = vmatpush1.msra.mxu0 0.0
        %603 = vmatprep.subr.mxu0 0.0
        %604 = vmatpush1.msra.mxu0 0.0
        %605 = vmatprep.subr.mxu0 0.0
        %606 = vmatpush1.msra.mxu0 0.0
        %607 = vmatprep.subr.mxu0 0.0
        %608 = vmatpush1.msra.mxu0 0.0
        %609 = vmatprep.mubr.f32.mxu0 0.0
        %610 = vmatmul.mubr.f32.gmra.mrb[0].mxu0 %v301
        %v611 = vpop.f32.mrb[0].mxu0
        %v612 = vadd.f32 0.0, %v611
        %v613 = vpop.f32.mrb[0].mxu0
        %v614 = vadd.f32 0.0, %v613
        %615 = vdwg.mxu0
        %616 = vmatprep.subr.mxu0 %v322
        %617 = vmatpush1.msra.mxu0 %v320
        %618 = vmatprep.subr.mxu0 0.0
        %619 = vmatpush1.msra.mxu0 0.0
        %620 = vmatprep.subr.mxu0 0.0
        %621 = vmatpush1.msra.mxu0 0.0
        %622 = vmatprep.subr.mxu0 0.0
        %623 = vmatpush1.msra.mxu0 0.0
        %624 = vmatprep.subr.mxu0 0.0
        %625 = vmatpush1.msra.mxu0 0.0
        %626 = vmatprep.subr.mxu0 0.0
        %627 = vmatpush1.msra.mxu0 0.0
        %628 = vmatprep.subr.mxu0 0.0
        %629 = vmatpush1.msra.mxu0 0.0
        %630 = vmatprep.subr.mxu0 0.0
        %631 = vmatpush1.msra.mxu0 0.0
        %632 = vmatprep.subr.mxu0 0.0
        %633 = vmatpush1.msra.mxu0 0.0
        %634 = vmatprep.subr.mxu0 0.0
        %635 = vmatpush1.msra.mxu0 0.0
        %636 = vmatprep.subr.mxu0 0.0
        %637 = vmatpush1.msra.mxu0 0.0
        %638 = vmatprep.subr.mxu0 0.0
        %639 = vmatpush1.msra.mxu0 0.0
        %640 = vmatprep.subr.mxu0 0.0
        %641 = vmatpush1.msra.mxu0 0.0
        %642 = vmatprep.subr.mxu0 0.0
        %643 = vmatpush1.msra.mxu0 0.0
        %644 = vmatprep.subr.mxu0 0.0
        %645 = vmatpush1.msra.mxu0 0.0
        %646 = vmatprep.subr.mxu0 0.0
        %647 = vmatpush1.msra.mxu0 0.0
        %648 = vmatprep.subr.mxu0 0.0
        %649 = vmatpush1.msra.mxu0 0.0
        %650 = vmatprep.subr.mxu0 0.0
        %651 = vmatpush1.msra.mxu0 0.0
        %652 = vmatprep.subr.mxu0 0.0
        %653 = vmatpush1.msra.mxu0 0.0
        %654 = vmatprep.subr.mxu0 0.0
        %655 = vmatpush1.msra.mxu0 0.0
        %656 = vmatprep.subr.mxu0 0.0
        %657 = vmatpush1.msra.mxu0 0.0
        %658 = vmatprep.subr.mxu0 0.0
        %659 = vmatpush1.msra.mxu0 0.0
        %660 = vmatprep.subr.mxu0 0.0
        %661 = vmatpush1.msra.mxu0 0.0
        %662 = vmatprep.subr.mxu0 0.0
        %663 = vmatpush1.msra.mxu0 0.0
        %664 = vmatprep.subr.mxu0 0.0
        %665 = vmatpush1.msra.mxu0 0.0
        %666 = vmatprep.subr.mxu0 0.0
        %667 = vmatpush1.msra.mxu0 0.0
        %668 = vmatprep.subr.mxu0 0.0
        %669 = vmatpush1.msra.mxu0 0.0
        %670 = vmatprep.subr.mxu0 0.0
        %671 = vmatpush1.msra.mxu0 0.0
        %672 = vmatprep.subr.mxu0 0.0
        %673 = vmatpush1.msra.mxu0 0.0
        %674 = vmatprep.subr.mxu0 0.0
        %675 = vmatpush1.msra.mxu0 0.0
        %676 = vmatprep.subr.mxu0 0.0
        %677 = vmatpush1.msra.mxu0 0.0
        %678 = vmatprep.subr.mxu0 0.0
        %679 = vmatpush1.msra.mxu0 0.0
        %680 = vmatprep.mubr.f32.mxu0 0.0
        %681 = vmatmul.mubr.f32.gmra.mrb[0].mxu0 %v301
        %v682 = vpop.f32.mrb[0].mxu0
        %v683 = vadd.f32 0.0, %v682
        %v684 = vpop.f32.mrb[0].mxu0
        %v685 = vadd.f32 0.0, %v684
        %686 = vdwg.mxu0
        %687 = vmatprep.subr.mxu0 %v326
        %688 = vmatpush1.msra.mxu0 %v324
        %689 = vmatprep.subr.mxu0 0.0
        %690 = vmatpush1.msra.mxu0 0.0
        %691 = vmatprep.subr.mxu0 0.0
        %692 = vmatpush1.msra.mxu0 0.0
        %693 = vmatprep.subr.mxu0 0.0
        %694 = vmatpush1.msra.mxu0 0.0
        %695 = vmatprep.subr.mxu0 0.0
        %696 = vmatpush1.msra.mxu0 0.0
        %697 = vmatprep.subr.mxu0 0.0
        %698 = vmatpush1.msra.mxu0 0.0
        %699 = vmatprep.subr.mxu0 0.0
        %700 = vmatpush1.msra.mxu0 0.0
        %701 = vmatprep.subr.mxu0 0.0
        %702 = vmatpush1.msra.mxu0 0.0
        %703 = vmatprep.subr.mxu0 0.0
        %704 = vmatpush1.msra.mxu0 0.0
        %705 = vmatprep.subr.mxu0 0.0
        %706 = vmatpush1.msra.mxu0 0.0
        %707 = vmatprep.subr.mxu0 0.0
        %708 = vmatpush1.msra.mxu0 0.0
        %709 = vmatprep.subr.mxu0 0.0
        %710 = vmatpush1.msra.mxu0 0.0
        %711 = vmatprep.subr.mxu0 0.0
        %712 = vmatpush1.msra.mxu0 0.0
        %713 = vmatprep.subr.mxu0 0.0
        %714 = vmatpush1.msra.mxu0 0.0
        %715 = vmatprep.subr.mxu0 0.0
        %716 = vmatpush1.msra.mxu0 0.0
        %717 = vmatprep.subr.mxu0 0.0
        %718 = vmatpush1.msra.mxu0 0.0
        %719 = vmatprep.subr.mxu0 0.0
        %720 = vmatpush1.msra.mxu0 0.0
        %721 = vmatprep.subr.mxu0 0.0
        %722 = vmatpush1.msra.mxu0 0.0
        %723 = vmatprep.subr.mxu0 0.0
        %724 = vmatpush1.msra.mxu0 0.0
        %725 = vmatprep.subr.mxu0 0.0
        %726 = vmatpush1.msra.mxu0 0.0
        %727 = vmatprep.subr.mxu0 0.0
        %728 = vmatpush1.msra.mxu0 0.0
        %729 = vmatprep.subr.mxu0 0.0
        %730 = vmatpush1.msra.mxu0 0.0
        %731 = vmatprep.subr.mxu0 0.0
        %732 = vmatpush1.msra.mxu0 0.0
        %733 = vmatprep.subr.mxu0 0.0
        %734 = vmatpush1.msra.mxu0 0.0
        %735 = vmatprep.subr.mxu0 0.0
        %736 = vmatpush1.msra.mxu0 0.0
        %737 = vmatprep.subr.mxu0 0.0
        %738 = vmatpush1.msra.mxu0 0.0
        %739 = vmatprep.subr.mxu0 0.0
        %740 = vmatpush1.msra.mxu0 0.0
        %741 = vmatprep.subr.mxu0 0.0
        %742 = vmatpush1.msra.mxu0 0.0
        %743 = vmatprep.subr.mxu0 0.0
        %744 = vmatpush1.msra.mxu0 0.0
        %745 = vmatprep.subr.mxu0 0.0
        %746 = vmatpush1.msra.mxu0 0.0
        %747 = vmatprep.subr.mxu0 0.0
        %748 = vmatpush1.msra.mxu0 0.0
        %749 = vmatprep.subr.mxu0 0.0
        %750 = vmatpush1.msra.mxu0 0.0
        %751 = vmatprep.mubr.f32.mxu0 0.0
        %752 = vmatmul.mubr.f32.gmra.mrb[0].mxu0 %v301
        %v753 = vpop.f32.mrb[0].mxu0
        %v754 = vadd.f32 0.0, %v753
        %v755 = vpop.f32.mrb[0].mxu0
        %v756 = vadd.f32 0.0, %v755
        %757 = vdwg.mxu0
        %758 = vmatprep.subr.mxu0 %v330
        %759 = vmatpush1.msra.mxu0 %v328
        %760 = vmatprep.subr.mxu0 0.0
        %761 = vmatpush1.msra.mxu0 0.0
        %762 = vmatprep.subr.mxu0 0.0
        %763 = vmatpush1.msra.mxu0 0.0
        %764 = vmatprep.subr.mxu0 0.0
        %765 = vmatpush1.msra.mxu0 0.0
        %766 = vmatprep.subr.mxu0 0.0
        %767 = vmatpush1.msra.mxu0 0.0
        %768 = vmatprep.subr.mxu0 0.0
        %769 = vmatpush1.msra.mxu0 0.0
        %770 = vmatprep.subr.mxu0 0.0
        %771 = vmatpush1.msra.mxu0 0.0
        %772 = vmatprep.subr.mxu0 0.0
        %773 = vmatpush1.msra.mxu0 0.0
        %774 = vmatprep.subr.mxu0 0.0
        %775 = vmatpush1.msra.mxu0 0.0
        %776 = vmatprep.subr.mxu0 0.0
        %777 = vmatpush1.msra.mxu0 0.0
        %778 = vmatprep.subr.mxu0 0.0
        %779 = vmatpush1.msra.mxu0 0.0
        %780 = vmatprep.subr.mxu0 0.0
        %781 = vmatpush1.msra.mxu0 0.0
        %782 = vmatprep.subr.mxu0 0.0
        %783 = vmatpush1.msra.mxu0 0.0
        %784 = vmatprep.subr.mxu0 0.0
        %785 = vmatpush1.msra.mxu0 0.0
        %786 = vmatprep.subr.mxu0 0.0
        %787 = vmatpush1.msra.mxu0 0.0
        %788 = vmatprep.subr.mxu0 0.0
        %789 = vmatpush1.msra.mxu0 0.0
        %790 = vmatprep.subr.mxu0 0.0
        %791 = vmatpush1.msra.mxu0 0.0
        %792 = vmatprep.subr.mxu0 0.0
        %793 = vmatpush1.msra.mxu0 0.0
        %794 = vmatprep.subr.mxu0 0.0
        %795 = vmatpush1.msra.mxu0 0.0
        %796 = vmatprep.subr.mxu0 0.0
        %797 = vmatpush1.msra.mxu0 0.0
        %798 = vmatprep.subr.mxu0 0.0
        %799 = vmatpush1.msra.mxu0 0.0
        %800 = vmatprep.subr.mxu0 0.0
        %801 = vmatpush1.msra.mxu0 0.0
        %802 = vmatprep.subr.mxu0 0.0
        %803 = vmatpush1.msra.mxu0 0.0
        %804 = vmatprep.subr.mxu0 0.0
        %805 = vmatpush1.msra.mxu0 0.0
        %806 = vmatprep.subr.mxu0 0.0
        %807 = vmatpush1.msra.mxu0 0.0
        %808 = vmatprep.subr.mxu0 0.0
        %809 = vmatpush1.msra.mxu0 0.0
        %810 = vmatprep.subr.mxu0 0.0
        %811 = vmatpush1.msra.mxu0 0.0
        %812 = vmatprep.subr.mxu0 0.0
        %813 = vmatpush1.msra.mxu0 0.0
        %814 = vmatprep.subr.mxu0 0.0
        %815 = vmatpush1.msra.mxu0 0.0
        %816 = vmatprep.subr.mxu0 0.0
        %817 = vmatpush1.msra.mxu0 0.0
        %818 = vmatprep.subr.mxu0 0.0
        %819 = vmatpush1.msra.mxu0 0.0
        %820 = vmatprep.subr.mxu0 0.0
        %821 = vmatpush1.msra.mxu0 0.0
        %822 = vmatprep.mubr.f32.mxu0 0.0
        %823 = vmatmul.mubr.f32.gmra.mrb[0].mxu0 %v301
        %v824 = vpop.f32.mrb[0].mxu0
        %v825 = vadd.f32 0.0, %v824
        %v826 = vpop.f32.mrb[0].mxu0
        %v827 = vadd.f32 0.0, %v826
        %828 = vdwg.mxu0
        %v830 = vsel %vm299, %v235, 0
        %v832 = vsel %vm303, %v228, 0
        %v834 = vsel %vm303, %v247, 0
        %v836 = vsel %vm303, %v229, 0
        %v838 = vsel %vm303, %v248, 0
        %v840 = vsel %vm303, %v230, 0
        %v842 = vsel %vm303, %v249, 0
        %v844 = vsel %vm303, %v231, 0
        %v846 = vsel %vm303, %v250, 0
        %v848 = vsel %vm303, %v232, 0
        %v850 = vsel %vm303, %v251, 0
        %v852 = vsel %vm303, %v233, 0
        %v854 = vsel %vm303, %v252, 0
        %v856 = vsel %vm303, %v234, 0
        %v858 = vsel %vm303, %v253, 0
        %860 = vmatprep.subr.mxu0 %v834
        %861 = vmatpush1.msra.mxu0 %v832
        %862 = vmatprep.subr.mxu0 0.0
        %863 = vmatpush1.msra.mxu0 0.0
        %864 = vmatprep.subr.mxu0 0.0
        %865 = vmatpush1.msra.mxu0 0.0
        %866 = vmatprep.subr.mxu0 0.0
        %867 = vmatpush1.msra.mxu0 0.0
        %868 = vmatprep.subr.mxu0 0.0
        %869 = vmatpush1.msra.mxu0 0.0
        %870 = vmatprep.subr.mxu0 0.0
        %871 = vmatpush1.msra.mxu0 0.0
        %872 = vmatprep.subr.mxu0 0.0
        %873 = vmatpush1.msra.mxu0 0.0
        %874 = vmatprep.subr.mxu0 0.0
        %875 = vmatpush1.msra.mxu0 0.0
        %876 = vmatprep.subr.mxu0 0.0
        %877 = vmatpush1.msra.mxu0 0.0
        %878 = vmatprep.subr.mxu0 0.0
        %879 = vmatpush1.msra.mxu0 0.0
        %880 = vmatprep.subr.mxu0 0.0
        %881 = vmatpush1.msra.mxu0 0.0
        %882 = vmatprep.subr.mxu0 0.0
        %883 = vmatpush1.msra.mxu0 0.0
        %884 = vmatprep.subr.mxu0 0.0
        %885 = vmatpush1.msra.mxu0 0.0
        %886 = vmatprep.subr.mxu0 0.0
        %887 = vmatpush1.msra.mxu0 0.0
        %888 = vmatprep.subr.mxu0 0.0
        %889 = vmatpush1.msra.mxu0 0.0
        %890 = vmatprep.subr.mxu0 0.0
        %891 = vmatpush1.msra.mxu0 0.0
        %892 = vmatprep.subr.mxu0 0.0
        %893 = vmatpush1.msra.mxu0 0.0
        %894 = vmatprep.subr.mxu0 0.0
        %895 = vmatpush1.msra.mxu0 0.0
        %896 = vmatprep.subr.mxu0 0.0
        %897 = vmatpush1.msra.mxu0 0.0
        %898 = vmatprep.subr.mxu0 0.0
        %899 = vmatpush1.msra.mxu0 0.0
        %900 = vmatprep.subr.mxu0 0.0
        %901 = vmatpush1.msra.mxu0 0.0
        %902 = vmatprep.subr.mxu0 0.0
        %903 = vmatpush1.msra.mxu0 0.0
        %904 = vmatprep.subr.mxu0 0.0
        %905 = vmatpush1.msra.mxu0 0.0
        %906 = vmatprep.subr.mxu0 0.0
        %907 = vmatpush1.msra.mxu0 0.0
        %908 = vmatprep.subr.mxu0 0.0
        %909 = vmatpush1.msra.mxu0 0.0
        %910 = vmatprep.subr.mxu0 0.0
        %911 = vmatpush1.msra.mxu0 0.0
        %912 = vmatprep.subr.mxu0 0.0
        %913 = vmatpush1.msra.mxu0 0.0
        %914 = vmatprep.subr.mxu0 0.0
        %915 = vmatpush1.msra.mxu0 0.0
        %916 = vmatprep.subr.mxu0 0.0
        %917 = vmatpush1.msra.mxu0 0.0
        %918 = vmatprep.subr.mxu0 0.0
        %919 = vmatpush1.msra.mxu0 0.0
        %920 = vmatprep.subr.mxu0 0.0
        %921 = vmatpush1.msra.mxu0 0.0
        %922 = vmatprep.subr.mxu0 0.0
        %923 = vmatpush1.msra.mxu0 0.0
        %924 = vmatprep.mubr.f32.mxu0 0.0
        %925 = vmatmul.mubr.f32.gmra.mrb[0].mxu0 %v830
        %v926 = vpop.f32.mrb[0].mxu0
        %v927 = vadd.f32 %v399, %v926
        %v928 = vpop.f32.mrb[0].mxu0
        %v929 = vadd.f32 %v401, %v928
        %930 = vdwg.mxu0
        %931 = vmatprep.subr.mxu0 %v838
        %932 = vmatpush1.msra.mxu0 %v836
        %933 = vmatprep.subr.mxu0 0.0
        %934 = vmatpush1.msra.mxu0 0.0
        %935 = vmatprep.subr.mxu0 0.0
        %936 = vmatpush1.msra.mxu0 0.0
        %937 = vmatprep.subr.mxu0 0.0
        %938 = vmatpush1.msra.mxu0 0.0
        %939 = vmatprep.subr.mxu0 0.0
        %940 = vmatpush1.msra.mxu0 0.0
        %941 = vmatprep.subr.mxu0 0.0
        %942 = vmatpush1.msra.mxu0 0.0
        %943 = vmatprep.subr.mxu0 0.0
        %944 = vmatpush1.msra.mxu0 0.0
        %945 = vmatprep.subr.mxu0 0.0
        %946 = vmatpush1.msra.mxu0 0.0
        %947 = vmatprep.subr.mxu0 0.0
        %948 = vmatpush1.msra.mxu0 0.0
        %949 = vmatprep.subr.mxu0 0.0
        %950 = vmatpush1.msra.mxu0 0.0
        %951 = vmatprep.subr.mxu0 0.0
        %952 = vmatpush1.msra.mxu0 0.0
        %953 = vmatprep.subr.mxu0 0.0
        %954 = vmatpush1.msra.mxu0 0.0
        %955 = vmatprep.subr.mxu0 0.0
        %956 = vmatpush1.msra.mxu0 0.0
        %957 = vmatprep.subr.mxu0 0.0
        %958 = vmatpush1.msra.mxu0 0.0
        %959 = vmatprep.subr.mxu0 0.0
        %960 = vmatpush1.msra.mxu0 0.0
        %961 = vmatprep.subr.mxu0 0.0
        %962 = vmatpush1.msra.mxu0 0.0
        %963 = vmatprep.subr.mxu0 0.0
        %964 = vmatpush1.msra.mxu0 0.0
        %965 = vmatprep.subr.mxu0 0.0
        %966 = vmatpush1.msra.mxu0 0.0
        %967 = vmatprep.subr.mxu0 0.0
        %968 = vmatpush1.msra.mxu0 0.0
        %969 = vmatprep.subr.mxu0 0.0
        %970 = vmatpush1.msra.mxu0 0.0
        %971 = vmatprep.subr.mxu0 0.0
        %972 = vmatpush1.msra.mxu0 0.0
        %973 = vmatprep.subr.mxu0 0.0
        %974 = vmatpush1.msra.mxu0 0.0
        %975 = vmatprep.subr.mxu0 0.0
        %976 = vmatpush1.msra.mxu0 0.0
        %977 = vmatprep.subr.mxu0 0.0
        %978 = vmatpush1.msra.mxu0 0.0
        %979 = vmatprep.subr.mxu0 0.0
        %980 = vmatpush1.msra.mxu0 0.0
        %981 = vmatprep.subr.mxu0 0.0
        %982 = vmatpush1.msra.mxu0 0.0
        %983 = vmatprep.subr.mxu0 0.0
        %984 = vmatpush1.msra.mxu0 0.0
        %985 = vmatprep.subr.mxu0 0.0
        %986 = vmatpush1.msra.mxu0 0.0
        %987 = vmatprep.subr.mxu0 0.0
        %988 = vmatpush1.msra.mxu0 0.0
        %989 = vmatprep.subr.mxu0 0.0
        %990 = vmatpush1.msra.mxu0 0.0
        %991 = vmatprep.subr.mxu0 0.0
        %992 = vmatpush1.msra.mxu0 0.0
        %993 = vmatprep.subr.mxu0 0.0
        %994 = vmatpush1.msra.mxu0 0.0
        %995 = vmatprep.mubr.f32.mxu0 0.0
        %996 = vmatmul.mubr.f32.gmra.mrb[0].mxu0 %v830
        %v997 = vpop.f32.mrb[0].mxu0
        %v998 = vadd.f32 %v470, %v997
        %v999 = vpop.f32.mrb[0].mxu0
        %v1000 = vadd.f32 %v472, %v999
        %1001 = vdwg.mxu0
        %1002 = vmatprep.subr.mxu0 %v842
        %1003 = vmatpush1.msra.mxu0 %v840
        %1004 = vmatprep.subr.mxu0 0.0
        %1005 = vmatpush1.msra.mxu0 0.0
        %1006 = vmatprep.subr.mxu0 0.0
        %1007 = vmatpush1.msra.mxu0 0.0
        %1008 = vmatprep.subr.mxu0 0.0
        %1009 = vmatpush1.msra.mxu0 0.0
        %1010 = vmatprep.subr.mxu0 0.0
        %1011 = vmatpush1.msra.mxu0 0.0
        %1012 = vmatprep.subr.mxu0 0.0
        %1013 = vmatpush1.msra.mxu0 0.0
        %1014 = vmatprep.subr.mxu0 0.0
        %1015 = vmatpush1.msra.mxu0 0.0
        %1016 = vmatprep.subr.mxu0 0.0
        %1017 = vmatpush1.msra.mxu0 0.0
        %1018 = vmatprep.subr.mxu0 0.0
        %1019 = vmatpush1.msra.mxu0 0.0
        %1020 = vmatprep.subr.mxu0 0.0
        %1021 = vmatpush1.msra.mxu0 0.0
        %1022 = vmatprep.subr.mxu0 0.0
        %1023 = vmatpush1.msra.mxu0 0.0
        %1024 = vmatprep.subr.mxu0 0.0
        %1025 = vmatpush1.msra.mxu0 0.0
        %1026 = vmatprep.subr.mxu0 0.0
        %1027 = vmatpush1.msra.mxu0 0.0
        %1028 = vmatprep.subr.mxu0 0.0
        %1029 = vmatpush1.msra.mxu0 0.0
        %1030 = vmatprep.subr.mxu0 0.0
        %1031 = vmatpush1.msra.mxu0 0.0
        %1032 = vmatprep.subr.mxu0 0.0
        %1033 = vmatpush1.msra.mxu0 0.0
        %1034 = vmatprep.subr.mxu0 0.0
        %1035 = vmatpush1.msra.mxu0 0.0
        %1036 = vmatprep.subr.mxu0 0.0
        %1037 = vmatpush1.msra.mxu0 0.0
        %1038 = vmatprep.subr.mxu0 0.0
        %1039 = vmatpush1.msra.mxu0 0.0
        %1040 = vmatprep.subr.mxu0 0.0
        %1041 = vmatpush1.msra.mxu0 0.0
        %1042 = vmatprep.subr.mxu0 0.0
        %1043 = vmatpush1.msra.mxu0 0.0
        %1044 = vmatprep.subr.mxu0 0.0
        %1045 = vmatpush1.msra.mxu0 0.0
        %1046 = vmatprep.subr.mxu0 0.0
        %1047 = vmatpush1.msra.mxu0 0.0
        %1048 = vmatprep.subr.mxu0 0.0
        %1049 = vmatpush1.msra.mxu0 0.0
        %1050 = vmatprep.subr.mxu0 0.0
        %1051 = vmatpush1.msra.mxu0 0.0
        %1052 = vmatprep.subr.mxu0 0.0
        %1053 = vmatpush1.msra.mxu0 0.0
        %1054 = vmatprep.subr.mxu0 0.0
        %1055 = vmatpush1.msra.mxu0 0.0
        %1056 = vmatprep.subr.mxu0 0.0
        %1057 = vmatpush1.msra.mxu0 0.0
        %1058 = vmatprep.subr.mxu0 0.0
        %1059 = vmatpush1.msra.mxu0 0.0
        %1060 = vmatprep.subr.mxu0 0.0
        %1061 = vmatpush1.msra.mxu0 0.0
        %1062 = vmatprep.subr.mxu0 0.0
        %1063 = vmatpush1.msra.mxu0 0.0
        %1064 = vmatprep.subr.mxu0 0.0
        %1065 = vmatpush1.msra.mxu0 0.0
        %1066 = vmatprep.mubr.f32.mxu0 0.0
        %1067 = vmatmul.mubr.f32.gmra.mrb[0].mxu0 %v830
        %v1068 = vpop.f32.mrb[0].mxu0
        %v1069 = vadd.f32 %v541, %v1068
        %v1070 = vpop.f32.mrb[0].mxu0
        %v1071 = vadd.f32 %v543, %v1070
        %1072 = vdwg.mxu0
        %1073 = vmatprep.subr.mxu0 %v846
        %1074 = vmatpush1.msra.mxu0 %v844
        %1075 = vmatprep.subr.mxu0 0.0
        %1076 = vmatpush1.msra.mxu0 0.0
        %1077 = vmatprep.subr.mxu0 0.0
        %1078 = vmatpush1.msra.mxu0 0.0
        %1079 = vmatprep.subr.mxu0 0.0
        %1080 = vmatpush1.msra.mxu0 0.0
        %1081 = vmatprep.subr.mxu0 0.0
        %1082 = vmatpush1.msra.mxu0 0.0
        %1083 = vmatprep.subr.mxu0 0.0
        %1084 = vmatpush1.msra.mxu0 0.0
        %1085 = vmatprep.subr.mxu0 0.0
        %1086 = vmatpush1.msra.mxu0 0.0
        %1087 = vmatprep.subr.mxu0 0.0
        %1088 = vmatpush1.msra.mxu0 0.0
        %1089 = vmatprep.subr.mxu0 0.0
        %1090 = vmatpush1.msra.mxu0 0.0
        %1091 = vmatprep.subr.mxu0 0.0
        %1092 = vmatpush1.msra.mxu0 0.0
        %1093 = vmatprep.subr.mxu0 0.0
        %1094 = vmatpush1.msra.mxu0 0.0
        %1095 = vmatprep.subr.mxu0 0.0
        %1096 = vmatpush1.msra.mxu0 0.0
        %1097 = vmatprep.subr.mxu0 0.0
        %1098 = vmatpush1.msra.mxu0 0.0
        %1099 = vmatprep.subr.mxu0 0.0
        %1100 = vmatpush1.msra.mxu0 0.0
        %1101 = vmatprep.subr.mxu0 0.0
        %1102 = vmatpush1.msra.mxu0 0.0
        %1103 = vmatprep.subr.mxu0 0.0
        %1104 = vmatpush1.msra.mxu0 0.0
        %1105 = vmatprep.subr.mxu0 0.0
        %1106 = vmatpush1.msra.mxu0 0.0
        %1107 = vmatprep.subr.mxu0 0.0
        %1108 = vmatpush1.msra.mxu0 0.0
        %1109 = vmatprep.subr.mxu0 0.0
        %1110 = vmatpush1.msra.mxu0 0.0
        %1111 = vmatprep.subr.mxu0 0.0
        %1112 = vmatpush1.msra.mxu0 0.0
        %1113 = vmatprep.subr.mxu0 0.0
        %1114 = vmatpush1.msra.mxu0 0.0
        %1115 = vmatprep.subr.mxu0 0.0
        %1116 = vmatpush1.msra.mxu0 0.0
        %1117 = vmatprep.subr.mxu0 0.0
        %1118 = vmatpush1.msra.mxu0 0.0
        %1119 = vmatprep.subr.mxu0 0.0
        %1120 = vmatpush1.msra.mxu0 0.0
        %1121 = vmatprep.subr.mxu0 0.0
        %1122 = vmatpush1.msra.mxu0 0.0
        %1123 = vmatprep.subr.mxu0 0.0
        %1124 = vmatpush1.msra.mxu0 0.0
        %1125 = vmatprep.subr.mxu0 0.0
        %1126 = vmatpush1.msra.mxu0 0.0
        %1127 = vmatprep.subr.mxu0 0.0
        %1128 = vmatpush1.msra.mxu0 0.0
        %1129 = vmatprep.subr.mxu0 0.0
        %1130 = vmatpush1.msra.mxu0 0.0
        %1131 = vmatprep.subr.mxu0 0.0
        %1132 = vmatpush1.msra.mxu0 0.0
        %1133 = vmatprep.subr.mxu0 0.0
        %1134 = vmatpush1.msra.mxu0 0.0
        %1135 = vmatprep.subr.mxu0 0.0
        %1136 = vmatpush1.msra.mxu0 0.0
        %1137 = vmatprep.mubr.f32.mxu0 0.0
        %1138 = vmatmul.mubr.f32.gmra.mrb[0].mxu0 %v830
        %v1139 = vpop.f32.mrb[0].mxu0
        %v1140 = vadd.f32 %v612, %v1139
        %v1141 = vpop.f32.mrb[0].mxu0
        %v1142 = vadd.f32 %v614, %v1141
        %1143 = vdwg.mxu0
        %1144 = vmatprep.subr.mxu0 %v850
        %1145 = vmatpush1.msra.mxu0 %v848
        %1146 = vmatprep.subr.mxu0 0.0
        %1147 = vmatpush1.msra.mxu0 0.0
        %1148 = vmatprep.subr.mxu0 0.0
        %1149 = vmatpush1.msra.mxu0 0.0
        %1150 = vmatprep.subr.mxu0 0.0
        %1151 = vmatpush1.msra.mxu0 0.0
        %1152 = vmatprep.subr.mxu0 0.0
        %1153 = vmatpush1.msra.mxu0 0.0
        %1154 = vmatprep.subr.mxu0 0.0
        %1155 = vmatpush1.msra.mxu0 0.0
        %1156 = vmatprep.subr.mxu0 0.0
        %1157 = vmatpush1.msra.mxu0 0.0
        %1158 = vmatprep.subr.mxu0 0.0
        %1159 = vmatpush1.msra.mxu0 0.0
        %1160 = vmatprep.subr.mxu0 0.0
        %1161 = vmatpush1.msra.mxu0 0.0
        %1162 = vmatprep.subr.mxu0 0.0
        %1163 = vmatpush1.msra.mxu0 0.0
        %1164 = vmatprep.subr.mxu0 0.0
        %1165 = vmatpush1.msra.mxu0 0.0
        %1166 = vmatprep.subr.mxu0 0.0
        %1167 = vmatpush1.msra.mxu0 0.0
        %1168 = vmatprep.subr.mxu0 0.0
        %1169 = vmatpush1.msra.mxu0 0.0
        %1170 = vmatprep.subr.mxu0 0.0
        %1171 = vmatpush1.msra.mxu0 0.0
        %1172 = vmatprep.subr.mxu0 0.0
        %1173 = vmatpush1.msra.mxu0 0.0
        %1174 = vmatprep.subr.mxu0 0.0
        %1175 = vmatpush1.msra.mxu0 0.0
        %1176 = vmatprep.subr.mxu0 0.0
        %1177 = vmatpush1.msra.mxu0 0.0
        %1178 = vmatprep.subr.mxu0 0.0
        %1179 = vmatpush1.msra.mxu0 0.0
        %1180 = vmatprep.subr.mxu0 0.0
        %1181 = vmatpush1.msra.mxu0 0.0
        %1182 = vmatprep.subr.mxu0 0.0
        %1183 = vmatpush1.msra.mxu0 0.0
        %1184 = vmatprep.subr.mxu0 0.0
        %1185 = vmatpush1.msra.mxu0 0.0
        %1186 = vmatprep.subr.mxu0 0.0
        %1187 = vmatpush1.msra.mxu0 0.0
        %1188 = vmatprep.subr.mxu0 0.0
        %1189 = vmatpush1.msra.mxu0 0.0
        %1190 = vmatprep.subr.mxu0 0.0
        %1191 = vmatpush1.msra.mxu0 0.0
        %1192 = vmatprep.subr.mxu0 0.0
        %1193 = vmatpush1.msra.mxu0 0.0
        %1194 = vmatprep.subr.mxu0 0.0
        %1195 = vmatpush1.msra.mxu0 0.0
        %1196 = vmatprep.subr.mxu0 0.0
        %1197 = vmatpush1.msra.mxu0 0.0
        %1198 = vmatprep.subr.mxu0 0.0
        %1199 = vmatpush1.msra.mxu0 0.0
        %1200 = vmatprep.subr.mxu0 0.0
        %1201 = vmatpush1.msra.mxu0 0.0
        %1202 = vmatprep.subr.mxu0 0.0
        %1203 = vmatpush1.msra.mxu0 0.0
        %1204 = vmatprep.subr.mxu0 0.0
        %1205 = vmatpush1.msra.mxu0 0.0
        %1206 = vmatprep.subr.mxu0 0.0
        %1207 = vmatpush1.msra.mxu0 0.0
        %1208 = vmatprep.mubr.f32.mxu0 0.0
        %1209 = vmatmul.mubr.f32.gmra.mrb[0].mxu0 %v830
        %v1210 = vpop.f32.mrb[0].mxu0
        %v1211 = vadd.f32 %v683, %v1210
        %v1212 = vpop.f32.mrb[0].mxu0
        %v1213 = vadd.f32 %v685, %v1212
        %1214 = vdwg.mxu0
        %1215 = vmatprep.subr.mxu0 %v854
        %1216 = vmatpush1.msra.mxu0 %v852
        %1217 = vmatprep.subr.mxu0 0.0
        %1218 = vmatpush1.msra.mxu0 0.0
        %1219 = vmatprep.subr.mxu0 0.0
        %1220 = vmatpush1.msra.mxu0 0.0
        %1221 = vmatprep.subr.mxu0 0.0
        %1222 = vmatpush1.msra.mxu0 0.0
        %1223 = vmatprep.subr.mxu0 0.0
        %1224 = vmatpush1.msra.mxu0 0.0
        %1225 = vmatprep.subr.mxu0 0.0
        %1226 = vmatpush1.msra.mxu0 0.0
        %1227 = vmatprep.subr.mxu0 0.0
        %1228 = vmatpush1.msra.mxu0 0.0
        %1229 = vmatprep.subr.mxu0 0.0
        %1230 = vmatpush1.msra.mxu0 0.0
        %1231 = vmatprep.subr.mxu0 0.0
        %1232 = vmatpush1.msra.mxu0 0.0
        %1233 = vmatprep.subr.mxu0 0.0
        %1234 = vmatpush1.msra.mxu0 0.0
        %1235 = vmatprep.subr.mxu0 0.0
        %1236 = vmatpush1.msra.mxu0 0.0
        %1237 = vmatprep.subr.mxu0 0.0
        %1238 = vmatpush1.msra.mxu0 0.0
        %1239 = vmatprep.subr.mxu0 0.0
        %1240 = vmatpush1.msra.mxu0 0.0
        %1241 = vmatprep.subr.mxu0 0.0
        %1242 = vmatpush1.msra.mxu0 0.0
        %1243 = vmatprep.subr.mxu0 0.0
        %1244 = vmatpush1.msra.mxu0 0.0
        %1245 = vmatprep.subr.mxu0 0.0
        %1246 = vmatpush1.msra.mxu0 0.0
        %1247 = vmatprep.subr.mxu0 0.0
        %1248 = vmatpush1.msra.mxu0 0.0
        %1249 = vmatprep.subr.mxu0 0.0
        %1250 = vmatpush1.msra.mxu0 0.0
        %1251 = vmatprep.subr.mxu0 0.0
        %1252 = vmatpush1.msra.mxu0 0.0
        %1253 = vmatprep.subr.mxu0 0.0
        %1254 = vmatpush1.msra.mxu0 0.0
        %1255 = vmatprep.subr.mxu0 0.0
        %1256 = vmatpush1.msra.mxu0 0.0
        %1257 = vmatprep.subr.mxu0 0.0
        %1258 = vmatpush1.msra.mxu0 0.0
        %1259 = vmatprep.subr.mxu0 0.0
        %1260 = vmatpush1.msra.mxu0 0.0
        %1261 = vmatprep.subr.mxu0 0.0
        %1262 = vmatpush1.msra.mxu0 0.0
        %1263 = vmatprep.subr.mxu0 0.0
        %1264 = vmatpush1.msra.mxu0 0.0
        %1265 = vmatprep.subr.mxu0 0.0
        %1266 = vmatpush1.msra.mxu0 0.0
        %1267 = vmatprep.subr.mxu0 0.0
        %1268 = vmatpush1.msra.mxu0 0.0
        %1269 = vmatprep.subr.mxu0 0.0
        %1270 = vmatpush1.msra.mxu0 0.0
        %1271 = vmatprep.subr.mxu0 0.0
        %1272 = vmatpush1.msra.mxu0 0.0
        %1273 = vmatprep.subr.mxu0 0.0
        %1274 = vmatpush1.msra.mxu0 0.0
        %1275 = vmatprep.subr.mxu0 0.0
        %1276 = vmatpush1.msra.mxu0 0.0
        %1277 = vmatprep.subr.mxu0 0.0
        %1278 = vmatpush1.msra.mxu0 0.0
        %1279 = vmatprep.mubr.f32.mxu0 0.0
        %1280 = vmatmul.mubr.f32.gmra.mrb[0].mxu0 %v830
        %v1281 = vpop.f32.mrb[0].mxu0
        %v1282 = vadd.f32 %v754, %v1281
        %v1283 = vpop.f32.mrb[0].mxu0
        %v1284 = vadd.f32 %v756, %v1283
        %1285 = vdwg.mxu0
        %1286 = vmatprep.subr.mxu0 %v858
        %1287 = vmatpush1.msra.mxu0 %v856
        %1288 = vmatprep.subr.mxu0 0.0
        %1289 = vmatpush1.msra.mxu0 0.0
        %1290 = vmatprep.subr.mxu0 0.0
        %1291 = vmatpush1.msra.mxu0 0.0
        %1292 = vmatprep.subr.mxu0 0.0
        %1293 = vmatpush1.msra.mxu0 0.0
        %1294 = vmatprep.subr.mxu0 0.0
        %1295 = vmatpush1.msra.mxu0 0.0
        %1296 = vmatprep.subr.mxu0 0.0
        %1297 = vmatpush1.msra.mxu0 0.0
        %1298 = vmatprep.subr.mxu0 0.0
        %1299 = vmatpush1.msra.mxu0 0.0
        %1300 = vmatprep.subr.mxu0 0.0
        %1301 = vmatpush1.msra.mxu0 0.0
        %1302 = vmatprep.subr.mxu0 0.0
        %1303 = vmatpush1.msra.mxu0 0.0
        %1304 = vmatprep.subr.mxu0 0.0
        %1305 = vmatpush1.msra.mxu0 0.0
        %1306 = vmatprep.subr.mxu0 0.0
        %1307 = vmatpush1.msra.mxu0 0.0
        %1308 = vmatprep.subr.mxu0 0.0
        %1309 = vmatpush1.msra.mxu0 0.0
        %1310 = vmatprep.subr.mxu0 0.0
        %1311 = vmatpush1.msra.mxu0 0.0
        %1312 = vmatprep.subr.mxu0 0.0
        %1313 = vmatpush1.msra.mxu0 0.0
        %1314 = vmatprep.subr.mxu0 0.0
        %1315 = vmatpush1.msra.mxu0 0.0
        %1316 = vmatprep.subr.mxu0 0.0
        %1317 = vmatpush1.msra.mxu0 0.0
        %1318 = vmatprep.subr.mxu0 0.0
        %1319 = vmatpush1.msra.mxu0 0.0
        %1320 = vmatprep.subr.mxu0 0.0
        %1321 = vmatpush1.msra.mxu0 0.0
        %1322 = vmatprep.subr.mxu0 0.0
        %1323 = vmatpush1.msra.mxu0 0.0
        %1324 = vmatprep.subr.mxu0 0.0
        %1325 = vmatpush1.msra.mxu0 0.0
        %1326 = vmatprep.subr.mxu0 0.0
        %1327 = vmatpush1.msra.mxu0 0.0
        %1328 = vmatprep.subr.mxu0 0.0
        %1329 = vmatpush1.msra.mxu0 0.0
        %1330 = vmatprep.subr.mxu0 0.0
        %1331 = vmatpush1.msra.mxu0 0.0
        %1332 = vmatprep.subr.mxu0 0.0
        %1333 = vmatpush1.msra.mxu0 0.0
        %1334 = vmatprep.subr.mxu0 0.0
        %1335 = vmatpush1.msra.mxu0 0.0
        %1336 = vmatprep.subr.mxu0 0.0
        %1337 = vmatpush1.msra.mxu0 0.0
        %1338 = vmatprep.subr.mxu0 0.0
        %1339 = vmatpush1.msra.mxu0 0.0
        %1340 = vmatprep.subr.mxu0 0.0
        %1341 = vmatpush1.msra.mxu0 0.0
        %1342 = vmatprep.subr.mxu0 0.0
        %1343 = vmatpush1.msra.mxu0 0.0
        %1344 = vmatprep.subr.mxu0 0.0
        %1345 = vmatpush1.msra.mxu0 0.0
        %1346 = vmatprep.subr.mxu0 0.0
        %1347 = vmatpush1.msra.mxu0 0.0
        %1348 = vmatprep.subr.mxu0 0.0
        %1349 = vmatpush1.msra.mxu0 0.0
        %1350 = vmatprep.mubr.f32.mxu0 0.0
        %1351 = vmatmul.mubr.f32.gmra.mrb[0].mxu0 %v830
        %v1352 = vpop.f32.mrb[0].mxu0
        %v1353 = vadd.f32 %v825, %v1352
        %v1354 = vpop.f32.mrb[0].mxu0
        %v1355 = vadd.f32 %v827, %v1354
        %1356 = vdwg.mxu0
        %v1357 = vld [vmem:[%s216] sm:$0xff]
        %v1358 = vld [vmem:[%s216 + $0x8] sm:$0xff]
        %v1359 = vld [vmem:[%s216 + $0x10] sm:$0xff]
        %v1360 = vld [vmem:[%s216 + $0x18] sm:$0xff]
        %v1361 = vld [vmem:[%s216 + $0x20] sm:$0xff]
        %v1362 = vld [vmem:[%s216 + $0x28] sm:$0xff]
        %v1363 = vld [vmem:[%s216 + $0x30] sm:$0xff]
        %v1364 = vld [vmem:[%s216 + $0x38] sm:$0xf]
        %s1365 = scalar_lea.vmem %s220, 16
        %v1366 = vld [vmem:[%s1365] sm:$0xff]
        %v1375 = vcombine.high %v1357, %v1357
        %v1376 = vcombine.high %v1358, %v1358
        %v1377 = vcombine.high %v1359, %v1359
        %v1378 = vcombine.high %v1360, %v1360
        %v1379 = vcombine.high %v1361, %v1361
        %v1380 = vcombine.high %v1362, %v1362
        %v1381 = vcombine.high %v1363, %v1363
        %1382 = vrot.lane.b32.xlu0 %v1357, 126
        %v1383 = vpop.permute.xlu0 %1382
        %1384 = vrot.lane.b32.xlu0 %v1375, 126
        %v1385 = vpop.permute.xlu0 %1384
        %1386 = vrot.lane.b32.xlu0 %v1358, 126
        %v1387 = vpop.permute.xlu0 %1386
        %1388 = vrot.lane.b32.xlu0 %v1376, 126
        %v1389 = vpop.permute.xlu0 %1388
        %1390 = vrot.lane.b32.xlu0 %v1359, 126
        %v1391 = vpop.permute.xlu0 %1390
        %1392 = vrot.lane.b32.xlu0 %v1377, 126
        %v1393 = vpop.permute.xlu0 %1392
        %1394 = vrot.lane.b32.xlu0 %v1360, 126
        %v1395 = vpop.permute.xlu0 %1394
        %1396 = vrot.lane.b32.xlu0 %v1378, 126
        %v1397 = vpop.permute.xlu0 %1396
        %1398 = vrot.lane.b32.xlu0 %v1361, 126
        %v1399 = vpop.permute.xlu0 %1398
        %1400 = vrot.lane.b32.xlu0 %v1379, 126
        %v1401 = vpop.permute.xlu0 %1400
        %1402 = vrot.lane.b32.xlu0 %v1362, 126
        %v1403 = vpop.permute.xlu0 %1402
        %1404 = vrot.lane.b32.xlu0 %v1380, 126
        %v1405 = vpop.permute.xlu0 %1404
        %1406 = vrot.lane.b32.xlu0 %v1363, 126
        %v1407 = vpop.permute.xlu0 %1406
        %1408 = vrot.lane.b32.xlu0 %v1381, 126
        %v1409 = vpop.permute.xlu0 %1408
        %1410 = vrot.lane.b32.xlu0 %v1364, 126
        %v1411 = vpop.permute.xlu0 %1410
        %vm1412 = vcmask 1031168
        %v1413 = vsel %vm1412, %v1383, %v1385
        %v1414 = vsel %vm1412, %v1385, %v1387
        %v1415 = vsel %vm1412, %v1387, %v1389
        %v1416 = vsel %vm1412, %v1389, %v1391
        %v1417 = vsel %vm1412, %v1391, %v1393
        %v1418 = vsel %vm1412, %v1393, %v1395
        %v1419 = vsel %vm1412, %v1395, %v1397
        %v1420 = vsel %vm1412, %v1397, %v1399
        %v1421 = vsel %vm1412, %v1399, %v1401
        %v1422 = vsel %vm1412, %v1401, %v1403
        %v1423 = vsel %vm1412, %v1403, %v1405
        %v1424 = vsel %vm1412, %v1405, %v1407
        %v1425 = vsel %vm1412, %v1407, %v1409
        %v1426 = vsel %vm1412, %v1409, %v1411
        %v1428 = vsel %vm299, %v1366, 0
        %v1430 = vsel %vm303, %v1413, 0
        %v1432 = vsel %vm303, %v1414, 0
        %v1434 = vsel %vm303, %v1415, 0
        %v1436 = vsel %vm303, %v1416, 0
        %v1438 = vsel %vm303, %v1417, 0
        %v1440 = vsel %vm303, %v1418, 0
        %v1442 = vsel %vm303, %v1419, 0
        %v1444 = vsel %vm303, %v1420, 0
        %v1446 = vsel %vm303, %v1421, 0
        %v1448 = vsel %vm303, %v1422, 0
        %v1450 = vsel %vm303, %v1423, 0
        %v1452 = vsel %vm303, %v1424, 0
        %v1454 = vsel %vm303, %v1425, 0
        %v1456 = vsel %vm303, %v1426, 0
        %1458 = vmatprep.subr.mxu0 %v1432
        %1459 = vmatpush1.msra.mxu0 %v1430
        %1460 = vmatprep.subr.mxu0 0.0
        %1461 = vmatpush1.msra.mxu0 0.0
        %1462 = vmatprep.subr.mxu0 0.0
        %1463 = vmatpush1.msra.mxu0 0.0
        %1464 = vmatprep.subr.mxu0 0.0
        %1465 = vmatpush1.msra.mxu0 0.0
        %1466 = vmatprep.subr.mxu0 0.0
        %1467 = vmatpush1.msra.mxu0 0.0
        %1468 = vmatprep.subr.mxu0 0.0
        %1469 = vmatpush1.msra.mxu0 0.0
        %1470 = vmatprep.subr.mxu0 0.0
        %1471 = vmatpush1.msra.mxu0 0.0
        %1472 = vmatprep.subr.mxu0 0.0
        %1473 = vmatpush1.msra.mxu0 0.0
        %1474 = vmatprep.subr.mxu0 0.0
        %1475 = vmatpush1.msra.mxu0 0.0
        %1476 = vmatprep.subr.mxu0 0.0
        %1477 = vmatpush1.msra.mxu0 0.0
        %1478 = vmatprep.subr.mxu0 0.0
        %1479 = vmatpush1.msra.mxu0 0.0
        %1480 = vmatprep.subr.mxu0 0.0
        %1481 = vmatpush1.msra.mxu0 0.0
        %1482 = vmatprep.subr.mxu0 0.0
        %1483 = vmatpush1.msra.mxu0 0.0
        %1484 = vmatprep.subr.mxu0 0.0
        %1485 = vmatpush1.msra.mxu0 0.0
        %1486 = vmatprep.subr.mxu0 0.0
        %1487 = vmatpush1.msra.mxu0 0.0
        %1488 = vmatprep.subr.mxu0 0.0
        %1489 = vmatpush1.msra.mxu0 0.0
        %1490 = vmatprep.subr.mxu0 0.0
        %1491 = vmatpush1.msra.mxu0 0.0
        %1492 = vmatprep.subr.mxu0 0.0
        %1493 = vmatpush1.msra.mxu0 0.0
        %1494 = vmatprep.subr.mxu0 0.0
        %1495 = vmatpush1.msra.mxu0 0.0
        %1496 = vmatprep.subr.mxu0 0.0
        %1497 = vmatpush1.msra.mxu0 0.0
        %1498 = vmatprep.subr.mxu0 0.0
        %1499 = vmatpush1.msra.mxu0 0.0
        %1500 = vmatprep.subr.mxu0 0.0
        %1501 = vmatpush1.msra.mxu0 0.0
        %1502 = vmatprep.subr.mxu0 0.0
        %1503 = vmatpush1.msra.mxu0 0.0
        %1504 = vmatprep.subr.mxu0 0.0
        %1505 = vmatpush1.msra.mxu0 0.0
        %1506 = vmatprep.subr.mxu0 0.0
        %1507 = vmatpush1.msra.mxu0 0.0
        %1508 = vmatprep.subr.mxu0 0.0
        %1509 = vmatpush1.msra.mxu0 0.0
        %1510 = vmatprep.subr.mxu0 0.0
        %1511 = vmatpush1.msra.mxu0 0.0
        %1512 = vmatprep.subr.mxu0 0.0
        %1513 = vmatpush1.msra.mxu0 0.0
        %1514 = vmatprep.subr.mxu0 0.0
        %1515 = vmatpush1.msra.mxu0 0.0
        %1516 = vmatprep.subr.mxu0 0.0
        %1517 = vmatpush1.msra.mxu0 0.0
        %1518 = vmatprep.subr.mxu0 0.0
        %1519 = vmatpush1.msra.mxu0 0.0
        %1520 = vmatprep.subr.mxu0 0.0
        %1521 = vmatpush1.msra.mxu0 0.0
        %1522 = vmatprep.mubr.f32.mxu0 0.0
        %1523 = vmatmul.mubr.f32.gmra.mrb[0].mxu0 %v1428
        %v1524 = vpop.f32.mrb[0].mxu0
        %v1525 = vadd.f32 0.0, %v1524
        %v1526 = vpop.f32.mrb[0].mxu0
        %v1527 = vadd.f32 0.0, %v1526
        %1528 = vdwg.mxu0
        %1529 = vmatprep.subr.mxu0 %v1436
        %1530 = vmatpush1.msra.mxu0 %v1434
        %1531 = vmatprep.subr.mxu0 0.0
        %1532 = vmatpush1.msra.mxu0 0.0
        %1533 = vmatprep.subr.mxu0 0.0
        %1534 = vmatpush1.msra.mxu0 0.0
        %1535 = vmatprep.subr.mxu0 0.0
        %1536 = vmatpush1.msra.mxu0 0.0
        %1537 = vmatprep.subr.mxu0 0.0
        %1538 = vmatpush1.msra.mxu0 0.0
        %1539 = vmatprep.subr.mxu0 0.0
        %1540 = vmatpush1.msra.mxu0 0.0
        %1541 = vmatprep.subr.mxu0 0.0
        %1542 = vmatpush1.msra.mxu0 0.0
        %1543 = vmatprep.subr.mxu0 0.0
        %1544 = vmatpush1.msra.mxu0 0.0
        %1545 = vmatprep.subr.mxu0 0.0
        %1546 = vmatpush1.msra.mxu0 0.0
        %1547 = vmatprep.subr.mxu0 0.0
        %1548 = vmatpush1.msra.mxu0 0.0
        %1549 = vmatprep.subr.mxu0 0.0
        %1550 = vmatpush1.msra.mxu0 0.0
        %1551 = vmatprep.subr.mxu0 0.0
        %1552 = vmatpush1.msra.mxu0 0.0
        %1553 = vmatprep.subr.mxu0 0.0
        %1554 = vmatpush1.msra.mxu0 0.0
        %1555 = vmatprep.subr.mxu0 0.0
        %1556 = vmatpush1.msra.mxu0 0.0
        %1557 = vmatprep.subr.mxu0 0.0
        %1558 = vmatpush1.msra.mxu0 0.0
        %1559 = vmatprep.subr.mxu0 0.0
        %1560 = vmatpush1.msra.mxu0 0.0
        %1561 = vmatprep.subr.mxu0 0.0
        %1562 = vmatpush1.msra.mxu0 0.0
        %1563 = vmatprep.subr.mxu0 0.0
        %1564 = vmatpush1.msra.mxu0 0.0
        %1565 = vmatprep.subr.mxu0 0.0
        %1566 = vmatpush1.msra.mxu0 0.0
        %1567 = vmatprep.subr.mxu0 0.0
        %1568 = vmatpush1.msra.mxu0 0.0
        %1569 = vmatprep.subr.mxu0 0.0
        %1570 = vmatpush1.msra.mxu0 0.0
        %1571 = vmatprep.subr.mxu0 0.0
        %1572 = vmatpush1.msra.mxu0 0.0
        %1573 = vmatprep.subr.mxu0 0.0
        %1574 = vmatpush1.msra.mxu0 0.0
        %1575 = vmatprep.subr.mxu0 0.0
        %1576 = vmatpush1.msra.mxu0 0.0
        %1577 = vmatprep.subr.mxu0 0.0
        %1578 = vmatpush1.msra.mxu0 0.0
        %1579 = vmatprep.subr.mxu0 0.0
        %1580 = vmatpush1.msra.mxu0 0.0
        %1581 = vmatprep.subr.mxu0 0.0
        %1582 = vmatpush1.msra.mxu0 0.0
        %1583 = vmatprep.subr.mxu0 0.0
        %1584 = vmatpush1.msra.mxu0 0.0
        %1585 = vmatprep.subr.mxu0 0.0
        %1586 = vmatpush1.msra.mxu0 0.0
        %1587 = vmatprep.subr.mxu0 0.0
        %1588 = vmatpush1.msra.mxu0 0.0
        %1589 = vmatprep.subr.mxu0 0.0
        %1590 = vmatpush1.msra.mxu0 0.0
        %1591 = vmatprep.subr.mxu0 0.0
        %1592 = vmatpush1.msra.mxu0 0.0
        %1593 = vmatprep.mubr.f32.mxu0 0.0
        %1594 = vmatmul.mubr.f32.gmra.mrb[0].mxu0 %v1428
        %v1595 = vpop.f32.mrb[0].mxu0
        %v1596 = vadd.f32 0.0, %v1595
        %v1597 = vpop.f32.mrb[0].mxu0
        %v1598 = vadd.f32 0.0, %v1597
        %1599 = vdwg.mxu0
        %1600 = vmatprep.subr.mxu0 %v1440
        %1601 = vmatpush1.msra.mxu0 %v1438
        %1602 = vmatprep.subr.mxu0 0.0
        %1603 = vmatpush1.msra.mxu0 0.0
        %1604 = vmatprep.subr.mxu0 0.0
        %1605 = vmatpush1.msra.mxu0 0.0
        %1606 = vmatprep.subr.mxu0 0.0
        %1607 = vmatpush1.msra.mxu0 0.0
        %1608 = vmatprep.subr.mxu0 0.0
        %1609 = vmatpush1.msra.mxu0 0.0
        %1610 = vmatprep.subr.mxu0 0.0
        %1611 = vmatpush1.msra.mxu0 0.0
        %1612 = vmatprep.subr.mxu0 0.0
        %1613 = vmatpush1.msra.mxu0 0.0
        %1614 = vmatprep.subr.mxu0 0.0
        %1615 = vmatpush1.msra.mxu0 0.0
        %1616 = vmatprep.subr.mxu0 0.0
        %1617 = vmatpush1.msra.mxu0 0.0
        %1618 = vmatprep.subr.mxu0 0.0
        %1619 = vmatpush1.msra.mxu0 0.0
        %1620 = vmatprep.subr.mxu0 0.0
        %1621 = vmatpush1.msra.mxu0 0.0
        %1622 = vmatprep.subr.mxu0 0.0
        %1623 = vmatpush1.msra.mxu0 0.0
        %1624 = vmatprep.subr.mxu0 0.0
        %1625 = vmatpush1.msra.mxu0 0.0
        %1626 = vmatprep.subr.mxu0 0.0
        %1627 = vmatpush1.msra.mxu0 0.0
        %1628 = vmatprep.subr.mxu0 0.0
        %1629 = vmatpush1.msra.mxu0 0.0
        %1630 = vmatprep.subr.mxu0 0.0
        %1631 = vmatpush1.msra.mxu0 0.0
        %1632 = vmatprep.subr.mxu0 0.0
        %1633 = vmatpush1.msra.mxu0 0.0
        %1634 = vmatprep.subr.mxu0 0.0
        %1635 = vmatpush1.msra.mxu0 0.0
        %1636 = vmatprep.subr.mxu0 0.0
        %1637 = vmatpush1.msra.mxu0 0.0
        %1638 = vmatprep.subr.mxu0 0.0
        %1639 = vmatpush1.msra.mxu0 0.0
        %1640 = vmatprep.subr.mxu0 0.0
        %1641 = vmatpush1.msra.mxu0 0.0
        %1642 = vmatprep.subr.mxu0 0.0
        %1643 = vmatpush1.msra.mxu0 0.0
        %1644 = vmatprep.subr.mxu0 0.0
        %1645 = vmatpush1.msra.mxu0 0.0
        %1646 = vmatprep.subr.mxu0 0.0
        %1647 = vmatpush1.msra.mxu0 0.0
        %1648 = vmatprep.subr.mxu0 0.0
        %1649 = vmatpush1.msra.mxu0 0.0
        %1650 = vmatprep.subr.mxu0 0.0
        %1651 = vmatpush1.msra.mxu0 0.0
        %1652 = vmatprep.subr.mxu0 0.0
        %1653 = vmatpush1.msra.mxu0 0.0
        %1654 = vmatprep.subr.mxu0 0.0
        %1655 = vmatpush1.msra.mxu0 0.0
        %1656 = vmatprep.subr.mxu0 0.0
        %1657 = vmatpush1.msra.mxu0 0.0
        %1658 = vmatprep.subr.mxu0 0.0
        %1659 = vmatpush1.msra.mxu0 0.0
        %1660 = vmatprep.subr.mxu0 0.0
        %1661 = vmatpush1.msra.mxu0 0.0
        %1662 = vmatprep.subr.mxu0 0.0
        %1663 = vmatpush1.msra.mxu0 0.0
        %1664 = vmatprep.mubr.f32.mxu0 0.0
        %1665 = vmatmul.mubr.f32.gmra.mrb[0].mxu0 %v1428
        %v1666 = vpop.f32.mrb[0].mxu0
        %v1667 = vadd.f32 0.0, %v1666
        %v1668 = vpop.f32.mrb[0].mxu0
        %v1669 = vadd.f32 0.0, %v1668
        %1670 = vdwg.mxu0
        %1671 = vmatprep.subr.mxu0 %v1444
        %1672 = vmatpush1.msra.mxu0 %v1442
        %1673 = vmatprep.subr.mxu0 0.0
        %1674 = vmatpush1.msra.mxu0 0.0
        %1675 = vmatprep.subr.mxu0 0.0
        %1676 = vmatpush1.msra.mxu0 0.0
        %1677 = vmatprep.subr.mxu0 0.0
        %1678 = vmatpush1.msra.mxu0 0.0
        %1679 = vmatprep.subr.mxu0 0.0
        %1680 = vmatpush1.msra.mxu0 0.0
        %1681 = vmatprep.subr.mxu0 0.0
        %1682 = vmatpush1.msra.mxu0 0.0
        %1683 = vmatprep.subr.mxu0 0.0
        %1684 = vmatpush1.msra.mxu0 0.0
        %1685 = vmatprep.subr.mxu0 0.0
        %1686 = vmatpush1.msra.mxu0 0.0
        %1687 = vmatprep.subr.mxu0 0.0
        %1688 = vmatpush1.msra.mxu0 0.0
        %1689 = vmatprep.subr.mxu0 0.0
        %1690 = vmatpush1.msra.mxu0 0.0
        %1691 = vmatprep.subr.mxu0 0.0
        %1692 = vmatpush1.msra.mxu0 0.0
        %1693 = vmatprep.subr.mxu0 0.0
        %1694 = vmatpush1.msra.mxu0 0.0
        %1695 = vmatprep.subr.mxu0 0.0
        %1696 = vmatpush1.msra.mxu0 0.0
        %1697 = vmatprep.subr.mxu0 0.0
        %1698 = vmatpush1.msra.mxu0 0.0
        %1699 = vmatprep.subr.mxu0 0.0
        %1700 = vmatpush1.msra.mxu0 0.0
        %1701 = vmatprep.subr.mxu0 0.0
        %1702 = vmatpush1.msra.mxu0 0.0
        %1703 = vmatprep.subr.mxu0 0.0
        %1704 = vmatpush1.msra.mxu0 0.0
        %1705 = vmatprep.subr.mxu0 0.0
        %1706 = vmatpush1.msra.mxu0 0.0
        %1707 = vmatprep.subr.mxu0 0.0
        %1708 = vmatpush1.msra.mxu0 0.0
        %1709 = vmatprep.subr.mxu0 0.0
        %1710 = vmatpush1.msra.mxu0 0.0
        %1711 = vmatprep.subr.mxu0 0.0
        %1712 = vmatpush1.msra.mxu0 0.0
        %1713 = vmatprep.subr.mxu0 0.0
        %1714 = vmatpush1.msra.mxu0 0.0
        %1715 = vmatprep.subr.mxu0 0.0
        %1716 = vmatpush1.msra.mxu0 0.0
        %1717 = vmatprep.subr.mxu0 0.0
        %1718 = vmatpush1.msra.mxu0 0.0
        %1719 = vmatprep.subr.mxu0 0.0
        %1720 = vmatpush1.msra.mxu0 0.0
        %1721 = vmatprep.subr.mxu0 0.0
        %1722 = vmatpush1.msra.mxu0 0.0
        %1723 = vmatprep.subr.mxu0 0.0
        %1724 = vmatpush1.msra.mxu0 0.0
        %1725 = vmatprep.subr.mxu0 0.0
        %1726 = vmatpush1.msra.mxu0 0.0
        %1727 = vmatprep.subr.mxu0 0.0
        %1728 = vmatpush1.msra.mxu0 0.0
        %1729 = vmatprep.subr.mxu0 0.0
        %1730 = vmatpush1.msra.mxu0 0.0
        %1731 = vmatprep.subr.mxu0 0.0
        %1732 = vmatpush1.msra.mxu0 0.0
        %1733 = vmatprep.subr.mxu0 0.0
        %1734 = vmatpush1.msra.mxu0 0.0
        %1735 = vmatprep.mubr.f32.mxu0 0.0
        %1736 = vmatmul.mubr.f32.gmra.mrb[0].mxu0 %v1428
        %v1737 = vpop.f32.mrb[0].mxu0
        %v1738 = vadd.f32 0.0, %v1737
        %v1739 = vpop.f32.mrb[0].mxu0
        %v1740 = vadd.f32 0.0, %v1739
        %1741 = vdwg.mxu0
        %1742 = vmatprep.subr.mxu0 %v1448
        %1743 = vmatpush1.msra.mxu0 %v1446
        %1744 = vmatprep.subr.mxu0 0.0
        %1745 = vmatpush1.msra.mxu0 0.0
        %1746 = vmatprep.subr.mxu0 0.0
        %1747 = vmatpush1.msra.mxu0 0.0
        %1748 = vmatprep.subr.mxu0 0.0
        %1749 = vmatpush1.msra.mxu0 0.0
        %1750 = vmatprep.subr.mxu0 0.0
        %1751 = vmatpush1.msra.mxu0 0.0
        %1752 = vmatprep.subr.mxu0 0.0
        %1753 = vmatpush1.msra.mxu0 0.0
        %1754 = vmatprep.subr.mxu0 0.0
        %1755 = vmatpush1.msra.mxu0 0.0
        %1756 = vmatprep.subr.mxu0 0.0
        %1757 = vmatpush1.msra.mxu0 0.0
        %1758 = vmatprep.subr.mxu0 0.0
        %1759 = vmatpush1.msra.mxu0 0.0
        %1760 = vmatprep.subr.mxu0 0.0
        %1761 = vmatpush1.msra.mxu0 0.0
        %1762 = vmatprep.subr.mxu0 0.0
        %1763 = vmatpush1.msra.mxu0 0.0
        %1764 = vmatprep.subr.mxu0 0.0
        %1765 = vmatpush1.msra.mxu0 0.0
        %1766 = vmatprep.subr.mxu0 0.0
        %1767 = vmatpush1.msra.mxu0 0.0
        %1768 = vmatprep.subr.mxu0 0.0
        %1769 = vmatpush1.msra.mxu0 0.0
        %1770 = vmatprep.subr.mxu0 0.0
        %1771 = vmatpush1.msra.mxu0 0.0
        %1772 = vmatprep.subr.mxu0 0.0
        %1773 = vmatpush1.msra.mxu0 0.0
        %1774 = vmatprep.subr.mxu0 0.0
        %1775 = vmatpush1.msra.mxu0 0.0
        %1776 = vmatprep.subr.mxu0 0.0
        %1777 = vmatpush1.msra.mxu0 0.0
        %1778 = vmatprep.subr.mxu0 0.0
        %1779 = vmatpush1.msra.mxu0 0.0
        %1780 = vmatprep.subr.mxu0 0.0
        %1781 = vmatpush1.msra.mxu0 0.0
        %1782 = vmatprep.subr.mxu0 0.0
        %1783 = vmatpush1.msra.mxu0 0.0
        %1784 = vmatprep.subr.mxu0 0.0
        %1785 = vmatpush1.msra.mxu0 0.0
        %1786 = vmatprep.subr.mxu0 0.0
        %1787 = vmatpush1.msra.mxu0 0.0
        %1788 = vmatprep.subr.mxu0 0.0
        %1789 = vmatpush1.msra.mxu0 0.0
        %1790 = vmatprep.subr.mxu0 0.0
        %1791 = vmatpush1.msra.mxu0 0.0
        %1792 = vmatprep.subr.mxu0 0.0
        %1793 = vmatpush1.msra.mxu0 0.0
        %1794 = vmatprep.subr.mxu0 0.0
        %1795 = vmatpush1.msra.mxu0 0.0
        %1796 = vmatprep.subr.mxu0 0.0
        %1797 = vmatpush1.msra.mxu0 0.0
        %1798 = vmatprep.subr.mxu0 0.0
        %1799 = vmatpush1.msra.mxu0 0.0
        %1800 = vmatprep.subr.mxu0 0.0
        %1801 = vmatpush1.msra.mxu0 0.0
        %1802 = vmatprep.subr.mxu0 0.0
        %1803 = vmatpush1.msra.mxu0 0.0
        %1804 = vmatprep.subr.mxu0 0.0
        %1805 = vmatpush1.msra.mxu0 0.0
        %1806 = vmatprep.mubr.f32.mxu0 0.0
        %1807 = vmatmul.mubr.f32.gmra.mrb[0].mxu0 %v1428
        %v1808 = vpop.f32.mrb[0].mxu0
        %v1809 = vadd.f32 0.0, %v1808
        %v1810 = vpop.f32.mrb[0].mxu0
        %v1811 = vadd.f32 0.0, %v1810
        %1812 = vdwg.mxu0
        %1813 = vmatprep.subr.mxu0 %v1452
        %1814 = vmatpush1.msra.mxu0 %v1450
        %1815 = vmatprep.subr.mxu0 0.0
        %1816 = vmatpush1.msra.mxu0 0.0
        %1817 = vmatprep.subr.mxu0 0.0
        %1818 = vmatpush1.msra.mxu0 0.0
        %1819 = vmatprep.subr.mxu0 0.0
        %1820 = vmatpush1.msra.mxu0 0.0
        %1821 = vmatprep.subr.mxu0 0.0
        %1822 = vmatpush1.msra.mxu0 0.0
        %1823 = vmatprep.subr.mxu0 0.0
        %1824 = vmatpush1.msra.mxu0 0.0
        %1825 = vmatprep.subr.mxu0 0.0
        %1826 = vmatpush1.msra.mxu0 0.0
        %1827 = vmatprep.subr.mxu0 0.0
        %1828 = vmatpush1.msra.mxu0 0.0
        %1829 = vmatprep.subr.mxu0 0.0
        %1830 = vmatpush1.msra.mxu0 0.0
        %1831 = vmatprep.subr.mxu0 0.0
        %1832 = vmatpush1.msra.mxu0 0.0
        %1833 = vmatprep.subr.mxu0 0.0
        %1834 = vmatpush1.msra.mxu0 0.0
        %1835 = vmatprep.subr.mxu0 0.0
        %1836 = vmatpush1.msra.mxu0 0.0
        %1837 = vmatprep.subr.mxu0 0.0
        %1838 = vmatpush1.msra.mxu0 0.0
        %1839 = vmatprep.subr.mxu0 0.0
        %1840 = vmatpush1.msra.mxu0 0.0
        %1841 = vmatprep.subr.mxu0 0.0
        %1842 = vmatpush1.msra.mxu0 0.0
        %1843 = vmatprep.subr.mxu0 0.0
        %1844 = vmatpush1.msra.mxu0 0.0
        %1845 = vmatprep.subr.mxu0 0.0
        %1846 = vmatpush1.msra.mxu0 0.0
        %1847 = vmatprep.subr.mxu0 0.0
        %1848 = vmatpush1.msra.mxu0 0.0
        %1849 = vmatprep.subr.mxu0 0.0
        %1850 = vmatpush1.msra.mxu0 0.0
        %1851 = vmatprep.subr.mxu0 0.0
        %1852 = vmatpush1.msra.mxu0 0.0
        %1853 = vmatprep.subr.mxu0 0.0
        %1854 = vmatpush1.msra.mxu0 0.0
        %1855 = vmatprep.subr.mxu0 0.0
        %1856 = vmatpush1.msra.mxu0 0.0
        %1857 = vmatprep.subr.mxu0 0.0
        %1858 = vmatpush1.msra.mxu0 0.0
        %1859 = vmatprep.subr.mxu0 0.0
        %1860 = vmatpush1.msra.mxu0 0.0
        %1861 = vmatprep.subr.mxu0 0.0
        %1862 = vmatpush1.msra.mxu0 0.0
        %1863 = vmatprep.subr.mxu0 0.0
        %1864 = vmatpush1.msra.mxu0 0.0
        %1865 = vmatprep.subr.mxu0 0.0
        %1866 = vmatpush1.msra.mxu0 0.0
        %1867 = vmatprep.subr.mxu0 0.0
        %1868 = vmatpush1.msra.mxu0 0.0
        %1869 = vmatprep.subr.mxu0 0.0
        %1870 = vmatpush1.msra.mxu0 0.0
        %1871 = vmatprep.subr.mxu0 0.0
        %1872 = vmatpush1.msra.mxu0 0.0
        %1873 = vmatprep.subr.mxu0 0.0
        %1874 = vmatpush1.msra.mxu0 0.0
        %1875 = vmatprep.subr.mxu0 0.0
        %1876 = vmatpush1.msra.mxu0 0.0
        %1877 = vmatprep.mubr.f32.mxu0 0.0
        %1878 = vmatmul.mubr.f32.gmra.mrb[0].mxu0 %v1428
        %v1879 = vpop.f32.mrb[0].mxu0
        %v1880 = vadd.f32 0.0, %v1879
        %v1881 = vpop.f32.mrb[0].mxu0
        %v1882 = vadd.f32 0.0, %v1881
        %1883 = vdwg.mxu0
        %1884 = vmatprep.subr.mxu0 %v1456
        %1885 = vmatpush1.msra.mxu0 %v1454
        %1886 = vmatprep.subr.mxu0 0.0
        %1887 = vmatpush1.msra.mxu0 0.0
        %1888 = vmatprep.subr.mxu0 0.0
        %1889 = vmatpush1.msra.mxu0 0.0
        %1890 = vmatprep.subr.mxu0 0.0
        %1891 = vmatpush1.msra.mxu0 0.0
        %1892 = vmatprep.subr.mxu0 0.0
        %1893 = vmatpush1.msra.mxu0 0.0
        %1894 = vmatprep.subr.mxu0 0.0
        %1895 = vmatpush1.msra.mxu0 0.0
        %1896 = vmatprep.subr.mxu0 0.0
        %1897 = vmatpush1.msra.mxu0 0.0
        %1898 = vmatprep.subr.mxu0 0.0
        %1899 = vmatpush1.msra.mxu0 0.0
        %1900 = vmatprep.subr.mxu0 0.0
        %1901 = vmatpush1.msra.mxu0 0.0
        %1902 = vmatprep.subr.mxu0 0.0
        %1903 = vmatpush1.msra.mxu0 0.0
        %1904 = vmatprep.subr.mxu0 0.0
        %1905 = vmatpush1.msra.mxu0 0.0
        %1906 = vmatprep.subr.mxu0 0.0
        %1907 = vmatpush1.msra.mxu0 0.0
        %1908 = vmatprep.subr.mxu0 0.0
        %1909 = vmatpush1.msra.mxu0 0.0
        %1910 = vmatprep.subr.mxu0 0.0
        %1911 = vmatpush1.msra.mxu0 0.0
        %1912 = vmatprep.subr.mxu0 0.0
        %1913 = vmatpush1.msra.mxu0 0.0
        %1914 = vmatprep.subr.mxu0 0.0
        %1915 = vmatpush1.msra.mxu0 0.0
        %1916 = vmatprep.subr.mxu0 0.0
        %1917 = vmatpush1.msra.mxu0 0.0
        %1918 = vmatprep.subr.mxu0 0.0
        %1919 = vmatpush1.msra.mxu0 0.0
        %1920 = vmatprep.subr.mxu0 0.0
        %1921 = vmatpush1.msra.mxu0 0.0
        %1922 = vmatprep.subr.mxu0 0.0
        %1923 = vmatpush1.msra.mxu0 0.0
        %1924 = vmatprep.subr.mxu0 0.0
        %1925 = vmatpush1.msra.mxu0 0.0
        %1926 = vmatprep.subr.mxu0 0.0
        %1927 = vmatpush1.msra.mxu0 0.0
        %1928 = vmatprep.subr.mxu0 0.0
        %1929 = vmatpush1.msra.mxu0 0.0
        %1930 = vmatprep.subr.mxu0 0.0
        %1931 = vmatpush1.msra.mxu0 0.0
        %1932 = vmatprep.subr.mxu0 0.0
        %1933 = vmatpush1.msra.mxu0 0.0
        %1934 = vmatprep.subr.mxu0 0.0
        %1935 = vmatpush1.msra.mxu0 0.0
        %1936 = vmatprep.subr.mxu0 0.0
        %1937 = vmatpush1.msra.mxu0 0.0
        %1938 = vmatprep.subr.mxu0 0.0
        %1939 = vmatpush1.msra.mxu0 0.0
        %1940 = vmatprep.subr.mxu0 0.0
        %1941 = vmatpush1.msra.mxu0 0.0
        %1942 = vmatprep.subr.mxu0 0.0
        %1943 = vmatpush1.msra.mxu0 0.0
        %1944 = vmatprep.subr.mxu0 0.0
        %1945 = vmatpush1.msra.mxu0 0.0
        %1946 = vmatprep.subr.mxu0 0.0
        %1947 = vmatpush1.msra.mxu0 0.0
        %1948 = vmatprep.mubr.f32.mxu0 0.0
        %1949 = vmatmul.mubr.f32.gmra.mrb[0].mxu0 %v1428
        %v1950 = vpop.f32.mrb[0].mxu0
        %v1951 = vadd.f32 0.0, %v1950
        %v1952 = vpop.f32.mrb[0].mxu0
        %v1953 = vadd.f32 0.0, %v1952
        %1954 = vdwg.mxu0
        %v1955 = vadd.f32 %v927, %v1525
        %v1956 = vadd.f32 %v929, %v1527
        %v1957 = vadd.f32 %v998, %v1596
        %v1958 = vadd.f32 %v1000, %v1598
        %v1959 = vadd.f32 %v1069, %v1667
        %v1960 = vadd.f32 %v1071, %v1669
        %v1961 = vadd.f32 %v1140, %v1738
        %v1962 = vadd.f32 %v1142, %v1740
        %v1963 = vadd.f32 %v1211, %v1809
        %v1964 = vadd.f32 %v1213, %v1811
        %v1965 = vadd.f32 %v1282, %v1880
        %v1966 = vadd.f32 %v1284, %v1882
        %v1967 = vadd.f32 %v1353, %v1951
        %v1968 = vadd.f32 %v1355, %v1953
        %v1969 = vld [vmem:[%s216 + $0x4] sm:$0xff]
        %v1970 = vld [vmem:[%s216 + $0xc] sm:$0xff]
        %v1971 = vld [vmem:[%s216 + $0x14] sm:$0xff]
        %v1972 = vld [vmem:[%s216 + $0x1c] sm:$0xff]
        %v1973 = vld [vmem:[%s216 + $0x24] sm:$0xff]
        %v1974 = vld [vmem:[%s216 + $0x2c] sm:$0xff]
        %v1975 = vld [vmem:[%s216 + $0x34] sm:$0xff]
        %s1976 = scalar_lea.vmem %s220, 24
        %v1977 = vld [vmem:[%s1976] sm:$0xff]
        %v1985 = vcombine.high %v1969, %v1969
        %v1986 = vcombine.high %v1970, %v1970
        %v1987 = vcombine.high %v1971, %v1971
        %v1988 = vcombine.high %v1972, %v1972
        %v1989 = vcombine.high %v1973, %v1973
        %v1990 = vcombine.high %v1974, %v1974
        %v1991 = vcombine.high %v1975, %v1975
        %v1993 = vsel %vm299, %v1977, 0
        %v1995 = vsel %vm303, %v1969, 0
        %v1997 = vsel %vm303, %v1985, 0
        %v1999 = vsel %vm303, %v1970, 0
        %v2001 = vsel %vm303, %v1986, 0
        %v2003 = vsel %vm303, %v1971, 0
        %v2005 = vsel %vm303, %v1987, 0
        %v2007 = vsel %vm303, %v1972, 0
        %v2009 = vsel %vm303, %v1988, 0
        %v2011 = vsel %vm303, %v1973, 0
        %v2013 = vsel %vm303, %v1989, 0
        %v2015 = vsel %vm303, %v1974, 0
        %v2017 = vsel %vm303, %v1990, 0
        %v2019 = vsel %vm303, %v1975, 0
        %v2021 = vsel %vm303, %v1991, 0
        %2023 = vmatprep.subr.mxu0 %v1997
        %2024 = vmatpush1.msra.mxu0 %v1995
        %2025 = vmatprep.subr.mxu0 0.0
        %2026 = vmatpush1.msra.mxu0 0.0
        %2027 = vmatprep.subr.mxu0 0.0
        %2028 = vmatpush1.msra.mxu0 0.0
        %2029 = vmatprep.subr.mxu0 0.0
        %2030 = vmatpush1.msra.mxu0 0.0
        %2031 = vmatprep.subr.mxu0 0.0
        %2032 = vmatpush1.msra.mxu0 0.0
        %2033 = vmatprep.subr.mxu0 0.0
        %2034 = vmatpush1.msra.mxu0 0.0
        %2035 = vmatprep.subr.mxu0 0.0
        %2036 = vmatpush1.msra.mxu0 0.0
        %2037 = vmatprep.subr.mxu0 0.0
        %2038 = vmatpush1.msra.mxu0 0.0
        %2039 = vmatprep.subr.mxu0 0.0
        %2040 = vmatpush1.msra.mxu0 0.0
        %2041 = vmatprep.subr.mxu0 0.0
        %2042 = vmatpush1.msra.mxu0 0.0
        %2043 = vmatprep.subr.mxu0 0.0
        %2044 = vmatpush1.msra.mxu0 0.0
        %2045 = vmatprep.subr.mxu0 0.0
        %2046 = vmatpush1.msra.mxu0 0.0
        %2047 = vmatprep.subr.mxu0 0.0
        %2048 = vmatpush1.msra.mxu0 0.0
        %2049 = vmatprep.subr.mxu0 0.0
        %2050 = vmatpush1.msra.mxu0 0.0
        %2051 = vmatprep.subr.mxu0 0.0
        %2052 = vmatpush1.msra.mxu0 0.0
        %2053 = vmatprep.subr.mxu0 0.0
        %2054 = vmatpush1.msra.mxu0 0.0
        %2055 = vmatprep.subr.mxu0 0.0
        %2056 = vmatpush1.msra.mxu0 0.0
        %2057 = vmatprep.subr.mxu0 0.0
        %2058 = vmatpush1.msra.mxu0 0.0
        %2059 = vmatprep.subr.mxu0 0.0
        %2060 = vmatpush1.msra.mxu0 0.0
        %2061 = vmatprep.subr.mxu0 0.0
        %2062 = vmatpush1.msra.mxu0 0.0
        %2063 = vmatprep.subr.mxu0 0.0
        %2064 = vmatpush1.msra.mxu0 0.0
        %2065 = vmatprep.subr.mxu0 0.0
        %2066 = vmatpush1.msra.mxu0 0.0
        %2067 = vmatprep.subr.mxu0 0.0
        %2068 = vmatpush1.msra.mxu0 0.0
        %2069 = vmatprep.subr.mxu0 0.0
        %2070 = vmatpush1.msra.mxu0 0.0
        %2071 = vmatprep.subr.mxu0 0.0
        %2072 = vmatpush1.msra.mxu0 0.0
        %2073 = vmatprep.subr.mxu0 0.0
        %2074 = vmatpush1.msra.mxu0 0.0
        %2075 = vmatprep.subr.mxu0 0.0
        %2076 = vmatpush1.msra.mxu0 0.0
        %2077 = vmatprep.subr.mxu0 0.0
        %2078 = vmatpush1.msra.mxu0 0.0
        %2079 = vmatprep.subr.mxu0 0.0
        %2080 = vmatpush1.msra.mxu0 0.0
        %2081 = vmatprep.subr.mxu0 0.0
        %2082 = vmatpush1.msra.mxu0 0.0
        %2083 = vmatprep.subr.mxu0 0.0
        %2084 = vmatpush1.msra.mxu0 0.0
        %2085 = vmatprep.subr.mxu0 0.0
        %2086 = vmatpush1.msra.mxu0 0.0
        %2087 = vmatprep.mubr.f32.mxu0 0.0
        %2088 = vmatmul.mubr.f32.gmra.mrb[0].mxu0 %v1993
        %v2089 = vpop.f32.mrb[0].mxu0
        %v2090 = vadd.f32 0.0, %v2089
        %v2091 = vpop.f32.mrb[0].mxu0
        %v2092 = vadd.f32 0.0, %v2091
        %2093 = vdwg.mxu0
        %2094 = vmatprep.subr.mxu0 %v2001
        %2095 = vmatpush1.msra.mxu0 %v1999
        %2096 = vmatprep.subr.mxu0 0.0
        %2097 = vmatpush1.msra.mxu0 0.0
        %2098 = vmatprep.subr.mxu0 0.0
        %2099 = vmatpush1.msra.mxu0 0.0
        %2100 = vmatprep.subr.mxu0 0.0
        %2101 = vmatpush1.msra.mxu0 0.0
        %2102 = vmatprep.subr.mxu0 0.0
        %2103 = vmatpush1.msra.mxu0 0.0
        %2104 = vmatprep.subr.mxu0 0.0
        %2105 = vmatpush1.msra.mxu0 0.0
        %2106 = vmatprep.subr.mxu0 0.0
        %2107 = vmatpush1.msra.mxu0 0.0
        %2108 = vmatprep.subr.mxu0 0.0
        %2109 = vmatpush1.msra.mxu0 0.0
        %2110 = vmatprep.subr.mxu0 0.0
        %2111 = vmatpush1.msra.mxu0 0.0
        %2112 = vmatprep.subr.mxu0 0.0
        %2113 = vmatpush1.msra.mxu0 0.0
        %2114 = vmatprep.subr.mxu0 0.0
        %2115 = vmatpush1.msra.mxu0 0.0
        %2116 = vmatprep.subr.mxu0 0.0
        %2117 = vmatpush1.msra.mxu0 0.0
        %2118 = vmatprep.subr.mxu0 0.0
        %2119 = vmatpush1.msra.mxu0 0.0
        %2120 = vmatprep.subr.mxu0 0.0
        %2121 = vmatpush1.msra.mxu0 0.0
        %2122 = vmatprep.subr.mxu0 0.0
        %2123 = vmatpush1.msra.mxu0 0.0
        %2124 = vmatprep.subr.mxu0 0.0
        %2125 = vmatpush1.msra.mxu0 0.0
        %2126 = vmatprep.subr.mxu0 0.0
        %2127 = vmatpush1.msra.mxu0 0.0
        %2128 = vmatprep.subr.mxu0 0.0
        %2129 = vmatpush1.msra.mxu0 0.0
        %2130 = vmatprep.subr.mxu0 0.0
        %2131 = vmatpush1.msra.mxu0 0.0
        %2132 = vmatprep.subr.mxu0 0.0
        %2133 = vmatpush1.msra.mxu0 0.0
        %2134 = vmatprep.subr.mxu0 0.0
        %2135 = vmatpush1.msra.mxu0 0.0
        %2136 = vmatprep.subr.mxu0 0.0
        %2137 = vmatpush1.msra.mxu0 0.0
        %2138 = vmatprep.subr.mxu0 0.0
        %2139 = vmatpush1.msra.mxu0 0.0
        %2140 = vmatprep.subr.mxu0 0.0
        %2141 = vmatpush1.msra.mxu0 0.0
        %2142 = vmatprep.subr.mxu0 0.0
        %2143 = vmatpush1.msra.mxu0 0.0
        %2144 = vmatprep.subr.mxu0 0.0
        %2145 = vmatpush1.msra.mxu0 0.0
        %2146 = vmatprep.subr.mxu0 0.0
        %2147 = vmatpush1.msra.mxu0 0.0
        %2148 = vmatprep.subr.mxu0 0.0
        %2149 = vmatpush1.msra.mxu0 0.0
        %2150 = vmatprep.subr.mxu0 0.0
        %2151 = vmatpush1.msra.mxu0 0.0
        %2152 = vmatprep.subr.mxu0 0.0
        %2153 = vmatpush1.msra.mxu0 0.0
        %2154 = vmatprep.subr.mxu0 0.0
        %2155 = vmatpush1.msra.mxu0 0.0
        %2156 = vmatprep.subr.mxu0 0.0
        %2157 = vmatpush1.msra.mxu0 0.0
        %2158 = vmatprep.mubr.f32.mxu0 0.0
        %2159 = vmatmul.mubr.f32.gmra.mrb[0].mxu0 %v1993
        %v2160 = vpop.f32.mrb[0].mxu0
        %v2161 = vadd.f32 0.0, %v2160
        %v2162 = vpop.f32.mrb[0].mxu0
        %v2163 = vadd.f32 0.0, %v2162
        %2164 = vdwg.mxu0
        %2165 = vmatprep.subr.mxu0 %v2005
        %2166 = vmatpush1.msra.mxu0 %v2003
        %2167 = vmatprep.subr.mxu0 0.0
        %2168 = vmatpush1.msra.mxu0 0.0
        %2169 = vmatprep.subr.mxu0 0.0
        %2170 = vmatpush1.msra.mxu0 0.0
        %2171 = vmatprep.subr.mxu0 0.0
        %2172 = vmatpush1.msra.mxu0 0.0
        %2173 = vmatprep.subr.mxu0 0.0
        %2174 = vmatpush1.msra.mxu0 0.0
        %2175 = vmatprep.subr.mxu0 0.0
        %2176 = vmatpush1.msra.mxu0 0.0
        %2177 = vmatprep.subr.mxu0 0.0
        %2178 = vmatpush1.msra.mxu0 0.0
        %2179 = vmatprep.subr.mxu0 0.0
        %2180 = vmatpush1.msra.mxu0 0.0
        %2181 = vmatprep.subr.mxu0 0.0
        %2182 = vmatpush1.msra.mxu0 0.0
        %2183 = vmatprep.subr.mxu0 0.0
        %2184 = vmatpush1.msra.mxu0 0.0
        %2185 = vmatprep.subr.mxu0 0.0
        %2186 = vmatpush1.msra.mxu0 0.0
        %2187 = vmatprep.subr.mxu0 0.0
        %2188 = vmatpush1.msra.mxu0 0.0
        %2189 = vmatprep.subr.mxu0 0.0
        %2190 = vmatpush1.msra.mxu0 0.0
        %2191 = vmatprep.subr.mxu0 0.0
        %2192 = vmatpush1.msra.mxu0 0.0
        %2193 = vmatprep.subr.mxu0 0.0
        %2194 = vmatpush1.msra.mxu0 0.0
        %2195 = vmatprep.subr.mxu0 0.0
        %2196 = vmatpush1.msra.mxu0 0.0
        %2197 = vmatprep.subr.mxu0 0.0
        %2198 = vmatpush1.msra.mxu0 0.0
        %2199 = vmatprep.subr.mxu0 0.0
        %2200 = vmatpush1.msra.mxu0 0.0
        %2201 = vmatprep.subr.mxu0 0.0
        %2202 = vmatpush1.msra.mxu0 0.0
        %2203 = vmatprep.subr.mxu0 0.0
        %2204 = vmatpush1.msra.mxu0 0.0
        %2205 = vmatprep.subr.mxu0 0.0
        %2206 = vmatpush1.msra.mxu0 0.0
        %2207 = vmatprep.subr.mxu0 0.0
        %2208 = vmatpush1.msra.mxu0 0.0
        %2209 = vmatprep.subr.mxu0 0.0
        %2210 = vmatpush1.msra.mxu0 0.0
        %2211 = vmatprep.subr.mxu0 0.0
        %2212 = vmatpush1.msra.mxu0 0.0
        %2213 = vmatprep.subr.mxu0 0.0
        %2214 = vmatpush1.msra.mxu0 0.0
        %2215 = vmatprep.subr.mxu0 0.0
        %2216 = vmatpush1.msra.mxu0 0.0
        %2217 = vmatprep.subr.mxu0 0.0
        %2218 = vmatpush1.msra.mxu0 0.0
        %2219 = vmatprep.subr.mxu0 0.0
        %2220 = vmatpush1.msra.mxu0 0.0
        %2221 = vmatprep.subr.mxu0 0.0
        %2222 = vmatpush1.msra.mxu0 0.0
        %2223 = vmatprep.subr.mxu0 0.0
        %2224 = vmatpush1.msra.mxu0 0.0
        %2225 = vmatprep.subr.mxu0 0.0
        %2226 = vmatpush1.msra.mxu0 0.0
        %2227 = vmatprep.subr.mxu0 0.0
        %2228 = vmatpush1.msra.mxu0 0.0
        %2229 = vmatprep.mubr.f32.mxu0 0.0
        %2230 = vmatmul.mubr.f32.gmra.mrb[0].mxu0 %v1993
        %v2231 = vpop.f32.mrb[0].mxu0
        %v2232 = vadd.f32 0.0, %v2231
        %v2233 = vpop.f32.mrb[0].mxu0
        %v2234 = vadd.f32 0.0, %v2233
        %2235 = vdwg.mxu0
        %2236 = vmatprep.subr.mxu0 %v2009
        %2237 = vmatpush1.msra.mxu0 %v2007
        %2238 = vmatprep.subr.mxu0 0.0
        %2239 = vmatpush1.msra.mxu0 0.0
        %2240 = vmatprep.subr.mxu0 0.0
        %2241 = vmatpush1.msra.mxu0 0.0
        %2242 = vmatprep.subr.mxu0 0.0
        %2243 = vmatpush1.msra.mxu0 0.0
        %2244 = vmatprep.subr.mxu0 0.0
        %2245 = vmatpush1.msra.mxu0 0.0
        %2246 = vmatprep.subr.mxu0 0.0
        %2247 = vmatpush1.msra.mxu0 0.0
        %2248 = vmatprep.subr.mxu0 0.0
        %2249 = vmatpush1.msra.mxu0 0.0
        %2250 = vmatprep.subr.mxu0 0.0
        %2251 = vmatpush1.msra.mxu0 0.0
        %2252 = vmatprep.subr.mxu0 0.0
        %2253 = vmatpush1.msra.mxu0 0.0
        %2254 = vmatprep.subr.mxu0 0.0
        %2255 = vmatpush1.msra.mxu0 0.0
        %2256 = vmatprep.subr.mxu0 0.0
        %2257 = vmatpush1.msra.mxu0 0.0
        %2258 = vmatprep.subr.mxu0 0.0
        %2259 = vmatpush1.msra.mxu0 0.0
        %2260 = vmatprep.subr.mxu0 0.0
        %2261 = vmatpush1.msra.mxu0 0.0
        %2262 = vmatprep.subr.mxu0 0.0
        %2263 = vmatpush1.msra.mxu0 0.0
        %2264 = vmatprep.subr.mxu0 0.0
        %2265 = vmatpush1.msra.mxu0 0.0
        %2266 = vmatprep.subr.mxu0 0.0
        %2267 = vmatpush1.msra.mxu0 0.0
        %2268 = vmatprep.subr.mxu0 0.0
        %2269 = vmatpush1.msra.mxu0 0.0
        %2270 = vmatprep.subr.mxu0 0.0
        %2271 = vmatpush1.msra.mxu0 0.0
        %2272 = vmatprep.subr.mxu0 0.0
        %2273 = vmatpush1.msra.mxu0 0.0
        %2274 = vmatprep.subr.mxu0 0.0
        %2275 = vmatpush1.msra.mxu0 0.0
        %2276 = vmatprep.subr.mxu0 0.0
        %2277 = vmatpush1.msra.mxu0 0.0
        %2278 = vmatprep.subr.mxu0 0.0
        %2279 = vmatpush1.msra.mxu0 0.0
        %2280 = vmatprep.subr.mxu0 0.0
        %2281 = vmatpush1.msra.mxu0 0.0
        %2282 = vmatprep.subr.mxu0 0.0
        %2283 = vmatpush1.msra.mxu0 0.0
        %2284 = vmatprep.subr.mxu0 0.0
        %2285 = vmatpush1.msra.mxu0 0.0
        %2286 = vmatprep.subr.mxu0 0.0
        %2287 = vmatpush1.msra.mxu0 0.0
        %2288 = vmatprep.subr.mxu0 0.0
        %2289 = vmatpush1.msra.mxu0 0.0
        %2290 = vmatprep.subr.mxu0 0.0
        %2291 = vmatpush1.msra.mxu0 0.0
        %2292 = vmatprep.subr.mxu0 0.0
        %2293 = vmatpush1.msra.mxu0 0.0
        %2294 = vmatprep.subr.mxu0 0.0
        %2295 = vmatpush1.msra.mxu0 0.0
        %2296 = vmatprep.subr.mxu0 0.0
        %2297 = vmatpush1.msra.mxu0 0.0
        %2298 = vmatprep.subr.mxu0 0.0
        %2299 = vmatpush1.msra.mxu0 0.0
        %2300 = vmatprep.mubr.f32.mxu0 0.0
        %2301 = vmatmul.mubr.f32.gmra.mrb[0].mxu0 %v1993
        %v2302 = vpop.f32.mrb[0].mxu0
        %v2303 = vadd.f32 0.0, %v2302
        %v2304 = vpop.f32.mrb[0].mxu0
        %v2305 = vadd.f32 0.0, %v2304
        %2306 = vdwg.mxu0
        %2307 = vmatprep.subr.mxu0 %v2013
        %2308 = vmatpush1.msra.mxu0 %v2011
        %2309 = vmatprep.subr.mxu0 0.0
        %2310 = vmatpush1.msra.mxu0 0.0
        %2311 = vmatprep.subr.mxu0 0.0
        %2312 = vmatpush1.msra.mxu0 0.0
        %2313 = vmatprep.subr.mxu0 0.0
        %2314 = vmatpush1.msra.mxu0 0.0
        %2315 = vmatprep.subr.mxu0 0.0
        %2316 = vmatpush1.msra.mxu0 0.0
        %2317 = vmatprep.subr.mxu0 0.0
        %2318 = vmatpush1.msra.mxu0 0.0
        %2319 = vmatprep.subr.mxu0 0.0
        %2320 = vmatpush1.msra.mxu0 0.0
        %2321 = vmatprep.subr.mxu0 0.0
        %2322 = vmatpush1.msra.mxu0 0.0
        %2323 = vmatprep.subr.mxu0 0.0
        %2324 = vmatpush1.msra.mxu0 0.0
        %2325 = vmatprep.subr.mxu0 0.0
        %2326 = vmatpush1.msra.mxu0 0.0
        %2327 = vmatprep.subr.mxu0 0.0
        %2328 = vmatpush1.msra.mxu0 0.0
        %2329 = vmatprep.subr.mxu0 0.0
        %2330 = vmatpush1.msra.mxu0 0.0
        %2331 = vmatprep.subr.mxu0 0.0
        %2332 = vmatpush1.msra.mxu0 0.0
        %2333 = vmatprep.subr.mxu0 0.0
        %2334 = vmatpush1.msra.mxu0 0.0
        %2335 = vmatprep.subr.mxu0 0.0
        %2336 = vmatpush1.msra.mxu0 0.0
        %2337 = vmatprep.subr.mxu0 0.0
        %2338 = vmatpush1.msra.mxu0 0.0
        %2339 = vmatprep.subr.mxu0 0.0
        %2340 = vmatpush1.msra.mxu0 0.0
        %2341 = vmatprep.subr.mxu0 0.0
        %2342 = vmatpush1.msra.mxu0 0.0
        %2343 = vmatprep.subr.mxu0 0.0
        %2344 = vmatpush1.msra.mxu0 0.0
        %2345 = vmatprep.subr.mxu0 0.0
        %2346 = vmatpush1.msra.mxu0 0.0
        %2347 = vmatprep.subr.mxu0 0.0
        %2348 = vmatpush1.msra.mxu0 0.0
        %2349 = vmatprep.subr.mxu0 0.0
        %2350 = vmatpush1.msra.mxu0 0.0
        %2351 = vmatprep.subr.mxu0 0.0
        %2352 = vmatpush1.msra.mxu0 0.0
        %2353 = vmatprep.subr.mxu0 0.0
        %2354 = vmatpush1.msra.mxu0 0.0
        %2355 = vmatprep.subr.mxu0 0.0
        %2356 = vmatpush1.msra.mxu0 0.0
        %2357 = vmatprep.subr.mxu0 0.0
        %2358 = vmatpush1.msra.mxu0 0.0
        %2359 = vmatprep.subr.mxu0 0.0
        %2360 = vmatpush1.msra.mxu0 0.0
        %2361 = vmatprep.subr.mxu0 0.0
        %2362 = vmatpush1.msra.mxu0 0.0
        %2363 = vmatprep.subr.mxu0 0.0
        %2364 = vmatpush1.msra.mxu0 0.0
        %2365 = vmatprep.subr.mxu0 0.0
        %2366 = vmatpush1.msra.mxu0 0.0
        %2367 = vmatprep.subr.mxu0 0.0
        %2368 = vmatpush1.msra.mxu0 0.0
        %2369 = vmatprep.subr.mxu0 0.0
        %2370 = vmatpush1.msra.mxu0 0.0
        %2371 = vmatprep.mubr.f32.mxu0 0.0
        %2372 = vmatmul.mubr.f32.gmra.mrb[0].mxu0 %v1993
        %v2373 = vpop.f32.mrb[0].mxu0
        %v2374 = vadd.f32 0.0, %v2373
        %v2375 = vpop.f32.mrb[0].mxu0
        %v2376 = vadd.f32 0.0, %v2375
        %2377 = vdwg.mxu0
        %2378 = vmatprep.subr.mxu0 %v2017
        %2379 = vmatpush1.msra.mxu0 %v2015
        %2380 = vmatprep.subr.mxu0 0.0
        %2381 = vmatpush1.msra.mxu0 0.0
        %2382 = vmatprep.subr.mxu0 0.0
        %2383 = vmatpush1.msra.mxu0 0.0
        %2384 = vmatprep.subr.mxu0 0.0
        %2385 = vmatpush1.msra.mxu0 0.0
        %2386 = vmatprep.subr.mxu0 0.0
        %2387 = vmatpush1.msra.mxu0 0.0
        %2388 = vmatprep.subr.mxu0 0.0
        %2389 = vmatpush1.msra.mxu0 0.0
        %2390 = vmatprep.subr.mxu0 0.0
        %2391 = vmatpush1.msra.mxu0 0.0
        %2392 = vmatprep.subr.mxu0 0.0
        %2393 = vmatpush1.msra.mxu0 0.0
        %2394 = vmatprep.subr.mxu0 0.0
        %2395 = vmatpush1.msra.mxu0 0.0
        %2396 = vmatprep.subr.mxu0 0.0
        %2397 = vmatpush1.msra.mxu0 0.0
        %2398 = vmatprep.subr.mxu0 0.0
        %2399 = vmatpush1.msra.mxu0 0.0
        %2400 = vmatprep.subr.mxu0 0.0
        %2401 = vmatpush1.msra.mxu0 0.0
        %2402 = vmatprep.subr.mxu0 0.0
        %2403 = vmatpush1.msra.mxu0 0.0
        %2404 = vmatprep.subr.mxu0 0.0
        %2405 = vmatpush1.msra.mxu0 0.0
        %2406 = vmatprep.subr.mxu0 0.0
        %2407 = vmatpush1.msra.mxu0 0.0
        %2408 = vmatprep.subr.mxu0 0.0
        %2409 = vmatpush1.msra.mxu0 0.0
        %2410 = vmatprep.subr.mxu0 0.0
        %2411 = vmatpush1.msra.mxu0 0.0
        %2412 = vmatprep.subr.mxu0 0.0
        %2413 = vmatpush1.msra.mxu0 0.0
        %2414 = vmatprep.subr.mxu0 0.0
        %2415 = vmatpush1.msra.mxu0 0.0
        %2416 = vmatprep.subr.mxu0 0.0
        %2417 = vmatpush1.msra.mxu0 0.0
        %2418 = vmatprep.subr.mxu0 0.0
        %2419 = vmatpush1.msra.mxu0 0.0
        %2420 = vmatprep.subr.mxu0 0.0
        %2421 = vmatpush1.msra.mxu0 0.0
        %2422 = vmatprep.subr.mxu0 0.0
        %2423 = vmatpush1.msra.mxu0 0.0
        %2424 = vmatprep.subr.mxu0 0.0
        %2425 = vmatpush1.msra.mxu0 0.0
        %2426 = vmatprep.subr.mxu0 0.0
        %2427 = vmatpush1.msra.mxu0 0.0
        %2428 = vmatprep.subr.mxu0 0.0
        %2429 = vmatpush1.msra.mxu0 0.0
        %2430 = vmatprep.subr.mxu0 0.0
        %2431 = vmatpush1.msra.mxu0 0.0
        %2432 = vmatprep.subr.mxu0 0.0
        %2433 = vmatpush1.msra.mxu0 0.0
        %2434 = vmatprep.subr.mxu0 0.0
        %2435 = vmatpush1.msra.mxu0 0.0
        %2436 = vmatprep.subr.mxu0 0.0
        %2437 = vmatpush1.msra.mxu0 0.0
        %2438 = vmatprep.subr.mxu0 0.0
        %2439 = vmatpush1.msra.mxu0 0.0
        %2440 = vmatprep.subr.mxu0 0.0
        %2441 = vmatpush1.msra.mxu0 0.0
        %2442 = vmatprep.mubr.f32.mxu0 0.0
        %2443 = vmatmul.mubr.f32.gmra.mrb[0].mxu0 %v1993
        %v2444 = vpop.f32.mrb[0].mxu0
        %v2445 = vadd.f32 0.0, %v2444
        %v2446 = vpop.f32.mrb[0].mxu0
        %v2447 = vadd.f32 0.0, %v2446
        %2448 = vdwg.mxu0
        %2449 = vmatprep.subr.mxu0 %v2021
        %2450 = vmatpush1.msra.mxu0 %v2019
        %2451 = vmatprep.subr.mxu0 0.0
        %2452 = vmatpush1.msra.mxu0 0.0
        %2453 = vmatprep.subr.mxu0 0.0
        %2454 = vmatpush1.msra.mxu0 0.0
        %2455 = vmatprep.subr.mxu0 0.0
        %2456 = vmatpush1.msra.mxu0 0.0
        %2457 = vmatprep.subr.mxu0 0.0
        %2458 = vmatpush1.msra.mxu0 0.0
        %2459 = vmatprep.subr.mxu0 0.0
        %2460 = vmatpush1.msra.mxu0 0.0
        %2461 = vmatprep.subr.mxu0 0.0
        %2462 = vmatpush1.msra.mxu0 0.0
        %2463 = vmatprep.subr.mxu0 0.0
        %2464 = vmatpush1.msra.mxu0 0.0
        %2465 = vmatprep.subr.mxu0 0.0
        %2466 = vmatpush1.msra.mxu0 0.0
        %2467 = vmatprep.subr.mxu0 0.0
        %2468 = vmatpush1.msra.mxu0 0.0
        %2469 = vmatprep.subr.mxu0 0.0
        %2470 = vmatpush1.msra.mxu0 0.0
        %2471 = vmatprep.subr.mxu0 0.0
        %2472 = vmatpush1.msra.mxu0 0.0
        %2473 = vmatprep.subr.mxu0 0.0
        %2474 = vmatpush1.msra.mxu0 0.0
        %2475 = vmatprep.subr.mxu0 0.0
        %2476 = vmatpush1.msra.mxu0 0.0
        %2477 = vmatprep.subr.mxu0 0.0
        %2478 = vmatpush1.msra.mxu0 0.0
        %2479 = vmatprep.subr.mxu0 0.0
        %2480 = vmatpush1.msra.mxu0 0.0
        %2481 = vmatprep.subr.mxu0 0.0
        %2482 = vmatpush1.msra.mxu0 0.0
        %2483 = vmatprep.subr.mxu0 0.0
        %2484 = vmatpush1.msra.mxu0 0.0
        %2485 = vmatprep.subr.mxu0 0.0
        %2486 = vmatpush1.msra.mxu0 0.0
        %2487 = vmatprep.subr.mxu0 0.0
        %2488 = vmatpush1.msra.mxu0 0.0
        %2489 = vmatprep.subr.mxu0 0.0
        %2490 = vmatpush1.msra.mxu0 0.0
        %2491 = vmatprep.subr.mxu0 0.0
        %2492 = vmatpush1.msra.mxu0 0.0
        %2493 = vmatprep.subr.mxu0 0.0
        %2494 = vmatpush1.msra.mxu0 0.0
        %2495 = vmatprep.subr.mxu0 0.0
        %2496 = vmatpush1.msra.mxu0 0.0
        %2497 = vmatprep.subr.mxu0 0.0
        %2498 = vmatpush1.msra.mxu0 0.0
        %2499 = vmatprep.subr.mxu0 0.0
        %2500 = vmatpush1.msra.mxu0 0.0
        %2501 = vmatprep.subr.mxu0 0.0
        %2502 = vmatpush1.msra.mxu0 0.0
        %2503 = vmatprep.subr.mxu0 0.0
        %2504 = vmatpush1.msra.mxu0 0.0
        %2505 = vmatprep.subr.mxu0 0.0
        %2506 = vmatpush1.msra.mxu0 0.0
        %2507 = vmatprep.subr.mxu0 0.0
        %2508 = vmatpush1.msra.mxu0 0.0
        %2509 = vmatprep.subr.mxu0 0.0
        %2510 = vmatpush1.msra.mxu0 0.0
        %2511 = vmatprep.subr.mxu0 0.0
        %2512 = vmatpush1.msra.mxu0 0.0
        %2513 = vmatprep.mubr.f32.mxu0 0.0
        %2514 = vmatmul.mubr.f32.gmra.mrb[0].mxu0 %v1993
        %v2515 = vpop.f32.mrb[0].mxu0
        %v2516 = vadd.f32 0.0, %v2515
        %v2517 = vpop.f32.mrb[0].mxu0
        %v2518 = vadd.f32 0.0, %v2517
        %2519 = vdwg.mxu0
        %v2520 = vadd.f32 %v1955, %v2090
        %v2521 = vadd.f32 %v1956, %v2092
        %v2522 = vadd.f32 %v1957, %v2161
        %v2523 = vadd.f32 %v1958, %v2163
        %v2524 = vadd.f32 %v1959, %v2232
        %v2525 = vadd.f32 %v1960, %v2234
        %v2526 = vadd.f32 %v1961, %v2303
        %v2527 = vadd.f32 %v1962, %v2305
        %v2528 = vadd.f32 %v1963, %v2374
        %v2529 = vadd.f32 %v1964, %v2376
        %v2530 = vadd.f32 %v1965, %v2445
        %v2531 = vadd.f32 %v1966, %v2447
        %v2532 = vadd.f32 %v1967, %v2516
        %v2533 = vadd.f32 %v1968, %v2518
        %v2534 = vld [vmem:[%s216 + $0x4] sm:$0xff]
        %v2535 = vld [vmem:[%s216 + $0xc] sm:$0xff]
        %v2536 = vld [vmem:[%s216 + $0x14] sm:$0xff]
        %v2537 = vld [vmem:[%s216 + $0x1c] sm:$0xff]
        %v2538 = vld [vmem:[%s216 + $0x24] sm:$0xff]
        %v2539 = vld [vmem:[%s216 + $0x2c] sm:$0xff]
        %v2540 = vld [vmem:[%s216 + $0x34] sm:$0xff]
        %v2541 = vld [vmem:[%s216 + $0x3c] sm:$0xf]
        %s2542 = scalar_lea.vmem %s220, 32
        %v2543 = vld [vmem:[%s2542] sm:$0xff]
        %v2552 = vcombine.high %v2534, %v2534
        %v2553 = vcombine.high %v2535, %v2535
        %v2554 = vcombine.high %v2536, %v2536
        %v2555 = vcombine.high %v2537, %v2537
        %v2556 = vcombine.high %v2538, %v2538
        %v2557 = vcombine.high %v2539, %v2539
        %v2558 = vcombine.high %v2540, %v2540
        %2559 = vrot.lane.b32.xlu0 %v2534, 127
        %v2560 = vpop.permute.xlu0 %2559
        %2561 = vrot.lane.b32.xlu0 %v2552, 127
        %v2562 = vpop.permute.xlu0 %2561
        %2563 = vrot.lane.b32.xlu0 %v2535, 127
        %v2564 = vpop.permute.xlu0 %2563
        %2565 = vrot.lane.b32.xlu0 %v2553, 127
        %v2566 = vpop.permute.xlu0 %2565
        %2567 = vrot.lane.b32.xlu0 %v2536, 127
        %v2568 = vpop.permute.xlu0 %2567
        %2569 = vrot.lane.b32.xlu0 %v2554, 127
        %v2570 = vpop.permute.xlu0 %2569
        %2571 = vrot.lane.b32.xlu0 %v2537, 127
        %v2572 = vpop.permute.xlu0 %2571
        %2573 = vrot.lane.b32.xlu0 %v2555, 127
        %v2574 = vpop.permute.xlu0 %2573
        %2575 = vrot.lane.b32.xlu0 %v2538, 127
        %v2576 = vpop.permute.xlu0 %2575
        %2577 = vrot.lane.b32.xlu0 %v2556, 127
        %v2578 = vpop.permute.xlu0 %2577
        %2579 = vrot.lane.b32.xlu0 %v2539, 127
        %v2580 = vpop.permute.xlu0 %2579
        %2581 = vrot.lane.b32.xlu0 %v2557, 127
        %v2582 = vpop.permute.xlu0 %2581
        %2583 = vrot.lane.b32.xlu0 %v2540, 127
        %v2584 = vpop.permute.xlu0 %2583
        %2585 = vrot.lane.b32.xlu0 %v2558, 127
        %v2586 = vpop.permute.xlu0 %2585
        %2587 = vrot.lane.b32.xlu0 %v2541, 127
        %v2588 = vpop.permute.xlu0 %2587
        %v2589 = vsel %vm284, %v2560, %v2562
        %v2590 = vsel %vm284, %v2562, %v2564
        %v2591 = vsel %vm284, %v2564, %v2566
        %v2592 = vsel %vm284, %v2566, %v2568
        %v2593 = vsel %vm284, %v2568, %v2570
        %v2594 = vsel %vm284, %v2570, %v2572
        %v2595 = vsel %vm284, %v2572, %v2574
        %v2596 = vsel %vm284, %v2574, %v2576
        %v2597 = vsel %vm284, %v2576, %v2578
        %v2598 = vsel %vm284, %v2578, %v2580
        %v2599 = vsel %vm284, %v2580, %v2582
        %v2600 = vsel %vm284, %v2582, %v2584
        %v2601 = vsel %vm284, %v2584, %v2586
        %v2602 = vsel %vm284, %v2586, %v2588
        %v2604 = vsel %vm299, %v2543, 0
        %v2606 = vsel %vm303, %v2589, 0
        %v2608 = vsel %vm303, %v2590, 0
        %v2610 = vsel %vm303, %v2591, 0
        %v2612 = vsel %vm303, %v2592, 0
        %v2614 = vsel %vm303, %v2593, 0
        %v2616 = vsel %vm303, %v2594, 0
        %v2618 = vsel %vm303, %v2595, 0
        %v2620 = vsel %vm303, %v2596, 0
        %v2622 = vsel %vm303, %v2597, 0
        %v2624 = vsel %vm303, %v2598, 0
        %v2626 = vsel %vm303, %v2599, 0
        %v2628 = vsel %vm303, %v2600, 0
        %v2630 = vsel %vm303, %v2601, 0
        %v2632 = vsel %vm303, %v2602, 0
        %2634 = vmatprep.subr.mxu0 %v2608
        %2635 = vmatpush1.msra.mxu0 %v2606
        %2636 = vmatprep.subr.mxu0 0.0
        %2637 = vmatpush1.msra.mxu0 0.0
        %2638 = vmatprep.subr.mxu0 0.0
        %2639 = vmatpush1.msra.mxu0 0.0
        %2640 = vmatprep.subr.mxu0 0.0
        %2641 = vmatpush1.msra.mxu0 0.0
        %2642 = vmatprep.subr.mxu0 0.0
        %2643 = vmatpush1.msra.mxu0 0.0
        %2644 = vmatprep.subr.mxu0 0.0
        %2645 = vmatpush1.msra.mxu0 0.0
        %2646 = vmatprep.subr.mxu0 0.0
        %2647 = vmatpush1.msra.mxu0 0.0
        %2648 = vmatprep.subr.mxu0 0.0
        %2649 = vmatpush1.msra.mxu0 0.0
        %2650 = vmatprep.subr.mxu0 0.0
        %2651 = vmatpush1.msra.mxu0 0.0
        %2652 = vmatprep.subr.mxu0 0.0
        %2653 = vmatpush1.msra.mxu0 0.0
        %2654 = vmatprep.subr.mxu0 0.0
        %2655 = vmatpush1.msra.mxu0 0.0
        %2656 = vmatprep.subr.mxu0 0.0
        %2657 = vmatpush1.msra.mxu0 0.0
        %2658 = vmatprep.subr.mxu0 0.0
        %2659 = vmatpush1.msra.mxu0 0.0
        %2660 = vmatprep.subr.mxu0 0.0
        %2661 = vmatpush1.msra.mxu0 0.0
        %2662 = vmatprep.subr.mxu0 0.0
        %2663 = vmatpush1.msra.mxu0 0.0
        %2664 = vmatprep.subr.mxu0 0.0
        %2665 = vmatpush1.msra.mxu0 0.0
        %2666 = vmatprep.subr.mxu0 0.0
        %2667 = vmatpush1.msra.mxu0 0.0
        %2668 = vmatprep.subr.mxu0 0.0
        %2669 = vmatpush1.msra.mxu0 0.0
        %2670 = vmatprep.subr.mxu0 0.0
        %2671 = vmatpush1.msra.mxu0 0.0
        %2672 = vmatprep.subr.mxu0 0.0
        %2673 = vmatpush1.msra.mxu0 0.0
        %2674 = vmatprep.subr.mxu0 0.0
        %2675 = vmatpush1.msra.mxu0 0.0
        %2676 = vmatprep.subr.mxu0 0.0
        %2677 = vmatpush1.msra.mxu0 0.0
        %2678 = vmatprep.subr.mxu0 0.0
        %2679 = vmatpush1.msra.mxu0 0.0
        %2680 = vmatprep.subr.mxu0 0.0
        %2681 = vmatpush1.msra.mxu0 0.0
        %2682 = vmatprep.subr.mxu0 0.0
        %2683 = vmatpush1.msra.mxu0 0.0
        %2684 = vmatprep.subr.mxu0 0.0
        %2685 = vmatpush1.msra.mxu0 0.0
        %2686 = vmatprep.subr.mxu0 0.0
        %2687 = vmatpush1.msra.mxu0 0.0
        %2688 = vmatprep.subr.mxu0 0.0
        %2689 = vmatpush1.msra.mxu0 0.0
        %2690 = vmatprep.subr.mxu0 0.0
        %2691 = vmatpush1.msra.mxu0 0.0
        %2692 = vmatprep.subr.mxu0 0.0
        %2693 = vmatpush1.msra.mxu0 0.0
        %2694 = vmatprep.subr.mxu0 0.0
        %2695 = vmatpush1.msra.mxu0 0.0
        %2696 = vmatprep.subr.mxu0 0.0
        %2697 = vmatpush1.msra.mxu0 0.0
        %2698 = vmatprep.mubr.f32.mxu0 0.0
        %2699 = vmatmul.mubr.f32.gmra.mrb[0].mxu0 %v2604
        %v2700 = vpop.f32.mrb[0].mxu0
        %v2701 = vadd.f32 0.0, %v2700
        %v2702 = vpop.f32.mrb[0].mxu0
        %v2703 = vadd.f32 0.0, %v2702
        %2704 = vdwg.mxu0
        %2705 = vmatprep.subr.mxu0 %v2612
        %2706 = vmatpush1.msra.mxu0 %v2610
        %2707 = vmatprep.subr.mxu0 0.0
        %2708 = vmatpush1.msra.mxu0 0.0
        %2709 = vmatprep.subr.mxu0 0.0
        %2710 = vmatpush1.msra.mxu0 0.0
        %2711 = vmatprep.subr.mxu0 0.0
        %2712 = vmatpush1.msra.mxu0 0.0
        %2713 = vmatprep.subr.mxu0 0.0
        %2714 = vmatpush1.msra.mxu0 0.0
        %2715 = vmatprep.subr.mxu0 0.0
        %2716 = vmatpush1.msra.mxu0 0.0
        %2717 = vmatprep.subr.mxu0 0.0
        %2718 = vmatpush1.msra.mxu0 0.0
        %2719 = vmatprep.subr.mxu0 0.0
        %2720 = vmatpush1.msra.mxu0 0.0
        %2721 = vmatprep.subr.mxu0 0.0
        %2722 = vmatpush1.msra.mxu0 0.0
        %2723 = vmatprep.subr.mxu0 0.0
        %2724 = vmatpush1.msra.mxu0 0.0
        %2725 = vmatprep.subr.mxu0 0.0
        %2726 = vmatpush1.msra.mxu0 0.0
        %2727 = vmatprep.subr.mxu0 0.0
        %2728 = vmatpush1.msra.mxu0 0.0
        %2729 = vmatprep.subr.mxu0 0.0
        %2730 = vmatpush1.msra.mxu0 0.0
        %2731 = vmatprep.subr.mxu0 0.0
        %2732 = vmatpush1.msra.mxu0 0.0
        %2733 = vmatprep.subr.mxu0 0.0
        %2734 = vmatpush1.msra.mxu0 0.0
        %2735 = vmatprep.subr.mxu0 0.0
        %2736 = vmatpush1.msra.mxu0 0.0
        %2737 = vmatprep.subr.mxu0 0.0
        %2738 = vmatpush1.msra.mxu0 0.0
        %2739 = vmatprep.subr.mxu0 0.0
        %2740 = vmatpush1.msra.mxu0 0.0
        %2741 = vmatprep.subr.mxu0 0.0
        %2742 = vmatpush1.msra.mxu0 0.0
        %2743 = vmatprep.subr.mxu0 0.0
        %2744 = vmatpush1.msra.mxu0 0.0
        %2745 = vmatprep.subr.mxu0 0.0
        %2746 = vmatpush1.msra.mxu0 0.0
        %2747 = vmatprep.subr.mxu0 0.0
        %2748 = vmatpush1.msra.mxu0 0.0
        %2749 = vmatprep.subr.mxu0 0.0
        %2750 = vmatpush1.msra.mxu0 0.0
        %2751 = vmatprep.subr.mxu0 0.0
        %2752 = vmatpush1.msra.mxu0 0.0
        %2753 = vmatprep.subr.mxu0 0.0
        %2754 = vmatpush1.msra.mxu0 0.0
        %2755 = vmatprep.subr.mxu0 0.0
        %2756 = vmatpush1.msra.mxu0 0.0
        %2757 = vmatprep.subr.mxu0 0.0
        %2758 = vmatpush1.msra.mxu0 0.0
        %2759 = vmatprep.subr.mxu0 0.0
        %2760 = vmatpush1.msra.mxu0 0.0
        %2761 = vmatprep.subr.mxu0 0.0
        %2762 = vmatpush1.msra.mxu0 0.0
        %2763 = vmatprep.subr.mxu0 0.0
        %2764 = vmatpush1.msra.mxu0 0.0
        %2765 = vmatprep.subr.mxu0 0.0
        %2766 = vmatpush1.msra.mxu0 0.0
        %2767 = vmatprep.subr.mxu0 0.0
        %2768 = vmatpush1.msra.mxu0 0.0
        %2769 = vmatprep.mubr.f32.mxu0 0.0
        %2770 = vmatmul.mubr.f32.gmra.mrb[0].mxu0 %v2604
        %v2771 = vpop.f32.mrb[0].mxu0
        %v2772 = vadd.f32 0.0, %v2771
        %v2773 = vpop.f32.mrb[0].mxu0
        %v2774 = vadd.f32 0.0, %v2773
        %2775 = vdwg.mxu0
        %2776 = vmatprep.subr.mxu0 %v2616
        %2777 = vmatpush1.msra.mxu0 %v2614
        %2778 = vmatprep.subr.mxu0 0.0
        %2779 = vmatpush1.msra.mxu0 0.0
        %2780 = vmatprep.subr.mxu0 0.0
        %2781 = vmatpush1.msra.mxu0 0.0
        %2782 = vmatprep.subr.mxu0 0.0
        %2783 = vmatpush1.msra.mxu0 0.0
        %2784 = vmatprep.subr.mxu0 0.0
        %2785 = vmatpush1.msra.mxu0 0.0
        %2786 = vmatprep.subr.mxu0 0.0
        %2787 = vmatpush1.msra.mxu0 0.0
        %2788 = vmatprep.subr.mxu0 0.0
        %2789 = vmatpush1.msra.mxu0 0.0
        %2790 = vmatprep.subr.mxu0 0.0
        %2791 = vmatpush1.msra.mxu0 0.0
        %2792 = vmatprep.subr.mxu0 0.0
        %2793 = vmatpush1.msra.mxu0 0.0
        %2794 = vmatprep.subr.mxu0 0.0
        %2795 = vmatpush1.msra.mxu0 0.0
        %2796 = vmatprep.subr.mxu0 0.0
        %2797 = vmatpush1.msra.mxu0 0.0
        %2798 = vmatprep.subr.mxu0 0.0
        %2799 = vmatpush1.msra.mxu0 0.0
        %2800 = vmatprep.subr.mxu0 0.0
        %2801 = vmatpush1.msra.mxu0 0.0
        %2802 = vmatprep.subr.mxu0 0.0
        %2803 = vmatpush1.msra.mxu0 0.0
        %2804 = vmatprep.subr.mxu0 0.0
        %2805 = vmatpush1.msra.mxu0 0.0
        %2806 = vmatprep.subr.mxu0 0.0
        %2807 = vmatpush1.msra.mxu0 0.0
        %2808 = vmatprep.subr.mxu0 0.0
        %2809 = vmatpush1.msra.mxu0 0.0
        %2810 = vmatprep.subr.mxu0 0.0
        %2811 = vmatpush1.msra.mxu0 0.0
        %2812 = vmatprep.subr.mxu0 0.0
        %2813 = vmatpush1.msra.mxu0 0.0
        %2814 = vmatprep.subr.mxu0 0.0
        %2815 = vmatpush1.msra.mxu0 0.0
        %2816 = vmatprep.subr.mxu0 0.0
        %2817 = vmatpush1.msra.mxu0 0.0
        %2818 = vmatprep.subr.mxu0 0.0
        %2819 = vmatpush1.msra.mxu0 0.0
        %2820 = vmatprep.subr.mxu0 0.0
        %2821 = vmatpush1.msra.mxu0 0.0
        %2822 = vmatprep.subr.mxu0 0.0
        %2823 = vmatpush1.msra.mxu0 0.0
        %2824 = vmatprep.subr.mxu0 0.0
        %2825 = vmatpush1.msra.mxu0 0.0
        %2826 = vmatprep.subr.mxu0 0.0
        %2827 = vmatpush1.msra.mxu0 0.0
        %2828 = vmatprep.subr.mxu0 0.0
        %2829 = vmatpush1.msra.mxu0 0.0
        %2830 = vmatprep.subr.mxu0 0.0
        %2831 = vmatpush1.msra.mxu0 0.0
        %2832 = vmatprep.subr.mxu0 0.0
        %2833 = vmatpush1.msra.mxu0 0.0
        %2834 = vmatprep.subr.mxu0 0.0
        %2835 = vmatpush1.msra.mxu0 0.0
        %2836 = vmatprep.subr.mxu0 0.0
        %2837 = vmatpush1.msra.mxu0 0.0
        %2838 = vmatprep.subr.mxu0 0.0
        %2839 = vmatpush1.msra.mxu0 0.0
        %2840 = vmatprep.mubr.f32.mxu0 0.0
        %2841 = vmatmul.mubr.f32.gmra.mrb[0].mxu0 %v2604
        %v2842 = vpop.f32.mrb[0].mxu0
        %v2843 = vadd.f32 0.0, %v2842
        %v2844 = vpop.f32.mrb[0].mxu0
        %v2845 = vadd.f32 0.0, %v2844
        %2846 = vdwg.mxu0
        %2847 = vmatprep.subr.mxu0 %v2620
        %2848 = vmatpush1.msra.mxu0 %v2618
        %2849 = vmatprep.subr.mxu0 0.0
        %2850 = vmatpush1.msra.mxu0 0.0
        %2851 = vmatprep.subr.mxu0 0.0
        %2852 = vmatpush1.msra.mxu0 0.0
        %2853 = vmatprep.subr.mxu0 0.0
        %2854 = vmatpush1.msra.mxu0 0.0
        %2855 = vmatprep.subr.mxu0 0.0
        %2856 = vmatpush1.msra.mxu0 0.0
        %2857 = vmatprep.subr.mxu0 0.0
        %2858 = vmatpush1.msra.mxu0 0.0
        %2859 = vmatprep.subr.mxu0 0.0
        %2860 = vmatpush1.msra.mxu0 0.0
        %2861 = vmatprep.subr.mxu0 0.0
        %2862 = vmatpush1.msra.mxu0 0.0
        %2863 = vmatprep.subr.mxu0 0.0
        %2864 = vmatpush1.msra.mxu0 0.0
        %2865 = vmatprep.subr.mxu0 0.0
        %2866 = vmatpush1.msra.mxu0 0.0
        %2867 = vmatprep.subr.mxu0 0.0
        %2868 = vmatpush1.msra.mxu0 0.0
        %2869 = vmatprep.subr.mxu0 0.0
        %2870 = vmatpush1.msra.mxu0 0.0
        %2871 = vmatprep.subr.mxu0 0.0
        %2872 = vmatpush1.msra.mxu0 0.0
        %2873 = vmatprep.subr.mxu0 0.0
        %2874 = vmatpush1.msra.mxu0 0.0
        %2875 = vmatprep.subr.mxu0 0.0
        %2876 = vmatpush1.msra.mxu0 0.0
        %2877 = vmatprep.subr.mxu0 0.0
        %2878 = vmatpush1.msra.mxu0 0.0
        %2879 = vmatprep.subr.mxu0 0.0
        %2880 = vmatpush1.msra.mxu0 0.0
        %2881 = vmatprep.subr.mxu0 0.0
        %2882 = vmatpush1.msra.mxu0 0.0
        %2883 = vmatprep.subr.mxu0 0.0
        %2884 = vmatpush1.msra.mxu0 0.0
        %2885 = vmatprep.subr.mxu0 0.0
        %2886 = vmatpush1.msra.mxu0 0.0
        %2887 = vmatprep.subr.mxu0 0.0
        %2888 = vmatpush1.msra.mxu0 0.0
        %2889 = vmatprep.subr.mxu0 0.0
        %2890 = vmatpush1.msra.mxu0 0.0
        %2891 = vmatprep.subr.mxu0 0.0
        %2892 = vmatpush1.msra.mxu0 0.0
        %2893 = vmatprep.subr.mxu0 0.0
        %2894 = vmatpush1.msra.mxu0 0.0
        %2895 = vmatprep.subr.mxu0 0.0
        %2896 = vmatpush1.msra.mxu0 0.0
        %2897 = vmatprep.subr.mxu0 0.0
        %2898 = vmatpush1.msra.mxu0 0.0
        %2899 = vmatprep.subr.mxu0 0.0
        %2900 = vmatpush1.msra.mxu0 0.0
        %2901 = vmatprep.subr.mxu0 0.0
        %2902 = vmatpush1.msra.mxu0 0.0
        %2903 = vmatprep.subr.mxu0 0.0
        %2904 = vmatpush1.msra.mxu0 0.0
        %2905 = vmatprep.subr.mxu0 0.0
        %2906 = vmatpush1.msra.mxu0 0.0
        %2907 = vmatprep.subr.mxu0 0.0
        %2908 = vmatpush1.msra.mxu0 0.0
        %2909 = vmatprep.subr.mxu0 0.0
        %2910 = vmatpush1.msra.mxu0 0.0
        %2911 = vmatprep.mubr.f32.mxu0 0.0
        %2912 = vmatmul.mubr.f32.gmra.mrb[0].mxu0 %v2604
        %v2913 = vpop.f32.mrb[0].mxu0
        %v2914 = vadd.f32 0.0, %v2913
        %v2915 = vpop.f32.mrb[0].mxu0
        %v2916 = vadd.f32 0.0, %v2915
        %2917 = vdwg.mxu0
        %2918 = vmatprep.subr.mxu0 %v2624
        %2919 = vmatpush1.msra.mxu0 %v2622
        %2920 = vmatprep.subr.mxu0 0.0
        %2921 = vmatpush1.msra.mxu0 0.0
        %2922 = vmatprep.subr.mxu0 0.0
        %2923 = vmatpush1.msra.mxu0 0.0
        %2924 = vmatprep.subr.mxu0 0.0
        %2925 = vmatpush1.msra.mxu0 0.0
        %2926 = vmatprep.subr.mxu0 0.0
        %2927 = vmatpush1.msra.mxu0 0.0
        %2928 = vmatprep.subr.mxu0 0.0
        %2929 = vmatpush1.msra.mxu0 0.0
        %2930 = vmatprep.subr.mxu0 0.0
        %2931 = vmatpush1.msra.mxu0 0.0
        %2932 = vmatprep.subr.mxu0 0.0
        %2933 = vmatpush1.msra.mxu0 0.0
        %2934 = vmatprep.subr.mxu0 0.0
        %2935 = vmatpush1.msra.mxu0 0.0
        %2936 = vmatprep.subr.mxu0 0.0
        %2937 = vmatpush1.msra.mxu0 0.0
        %2938 = vmatprep.subr.mxu0 0.0
        %2939 = vmatpush1.msra.mxu0 0.0
        %2940 = vmatprep.subr.mxu0 0.0
        %2941 = vmatpush1.msra.mxu0 0.0
        %2942 = vmatprep.subr.mxu0 0.0
        %2943 = vmatpush1.msra.mxu0 0.0
        %2944 = vmatprep.subr.mxu0 0.0
        %2945 = vmatpush1.msra.mxu0 0.0
        %2946 = vmatprep.subr.mxu0 0.0
        %2947 = vmatpush1.msra.mxu0 0.0
        %2948 = vmatprep.subr.mxu0 0.0
        %2949 = vmatpush1.msra.mxu0 0.0
        %2950 = vmatprep.subr.mxu0 0.0
        %2951 = vmatpush1.msra.mxu0 0.0
        %2952 = vmatprep.subr.mxu0 0.0
        %2953 = vmatpush1.msra.mxu0 0.0
        %2954 = vmatprep.subr.mxu0 0.0
        %2955 = vmatpush1.msra.mxu0 0.0
        %2956 = vmatprep.subr.mxu0 0.0
        %2957 = vmatpush1.msra.mxu0 0.0
        %2958 = vmatprep.subr.mxu0 0.0
        %2959 = vmatpush1.msra.mxu0 0.0
        %2960 = vmatprep.subr.mxu0 0.0
        %2961 = vmatpush1.msra.mxu0 0.0
        %2962 = vmatprep.subr.mxu0 0.0
        %2963 = vmatpush1.msra.mxu0 0.0
        %2964 = vmatprep.subr.mxu0 0.0
        %2965 = vmatpush1.msra.mxu0 0.0
        %2966 = vmatprep.subr.mxu0 0.0
        %2967 = vmatpush1.msra.mxu0 0.0
        %2968 = vmatprep.subr.mxu0 0.0
        %2969 = vmatpush1.msra.mxu0 0.0
        %2970 = vmatprep.subr.mxu0 0.0
        %2971 = vmatpush1.msra.mxu0 0.0
        %2972 = vmatprep.subr.mxu0 0.0
        %2973 = vmatpush1.msra.mxu0 0.0
        %2974 = vmatprep.subr.mxu0 0.0
        %2975 = vmatpush1.msra.mxu0 0.0
        %2976 = vmatprep.subr.mxu0 0.0
        %2977 = vmatpush1.msra.mxu0 0.0
        %2978 = vmatprep.subr.mxu0 0.0
        %2979 = vmatpush1.msra.mxu0 0.0
        %2980 = vmatprep.subr.mxu0 0.0
        %2981 = vmatpush1.msra.mxu0 0.0
        %2982 = vmatprep.mubr.f32.mxu0 0.0
        %2983 = vmatmul.mubr.f32.gmra.mrb[0].mxu0 %v2604
        %v2984 = vpop.f32.mrb[0].mxu0
        %v2985 = vadd.f32 0.0, %v2984
        %v2986 = vpop.f32.mrb[0].mxu0
        %v2987 = vadd.f32 0.0, %v2986
        %2988 = vdwg.mxu0
        %2989 = vmatprep.subr.mxu0 %v2628
        %2990 = vmatpush1.msra.mxu0 %v2626
        %2991 = vmatprep.subr.mxu0 0.0
        %2992 = vmatpush1.msra.mxu0 0.0
        %2993 = vmatprep.subr.mxu0 0.0
        %2994 = vmatpush1.msra.mxu0 0.0
        %2995 = vmatprep.subr.mxu0 0.0
        %2996 = vmatpush1.msra.mxu0 0.0
        %2997 = vmatprep.subr.mxu0 0.0
        %2998 = vmatpush1.msra.mxu0 0.0
        %2999 = vmatprep.subr.mxu0 0.0
        %3000 = vmatpush1.msra.mxu0 0.0
        %3001 = vmatprep.subr.mxu0 0.0
        %3002 = vmatpush1.msra.mxu0 0.0
        %3003 = vmatprep.subr.mxu0 0.0
        %3004 = vmatpush1.msra.mxu0 0.0
        %3005 = vmatprep.subr.mxu0 0.0
        %3006 = vmatpush1.msra.mxu0 0.0
        %3007 = vmatprep.subr.mxu0 0.0
        %3008 = vmatpush1.msra.mxu0 0.0
        %3009 = vmatprep.subr.mxu0 0.0
        %3010 = vmatpush1.msra.mxu0 0.0
        %3011 = vmatprep.subr.mxu0 0.0
        %3012 = vmatpush1.msra.mxu0 0.0
        %3013 = vmatprep.subr.mxu0 0.0
        %3014 = vmatpush1.msra.mxu0 0.0
        %3015 = vmatprep.subr.mxu0 0.0
        %3016 = vmatpush1.msra.mxu0 0.0
        %3017 = vmatprep.subr.mxu0 0.0
        %3018 = vmatpush1.msra.mxu0 0.0
        %3019 = vmatprep.subr.mxu0 0.0
        %3020 = vmatpush1.msra.mxu0 0.0
        %3021 = vmatprep.subr.mxu0 0.0
        %3022 = vmatpush1.msra.mxu0 0.0
        %3023 = vmatprep.subr.mxu0 0.0
        %3024 = vmatpush1.msra.mxu0 0.0
        %3025 = vmatprep.subr.mxu0 0.0
        %3026 = vmatpush1.msra.mxu0 0.0
        %3027 = vmatprep.subr.mxu0 0.0
        %3028 = vmatpush1.msra.mxu0 0.0
        %3029 = vmatprep.subr.mxu0 0.0
        %3030 = vmatpush1.msra.mxu0 0.0
        %3031 = vmatprep.subr.mxu0 0.0
        %3032 = vmatpush1.msra.mxu0 0.0
        %3033 = vmatprep.subr.mxu0 0.0
        %3034 = vmatpush1.msra.mxu0 0.0
        %3035 = vmatprep.subr.mxu0 0.0
        %3036 = vmatpush1.msra.mxu0 0.0
        %3037 = vmatprep.subr.mxu0 0.0
        %3038 = vmatpush1.msra.mxu0 0.0
        %3039 = vmatprep.subr.mxu0 0.0
        %3040 = vmatpush1.msra.mxu0 0.0
        %3041 = vmatprep.subr.mxu0 0.0
        %3042 = vmatpush1.msra.mxu0 0.0
        %3043 = vmatprep.subr.mxu0 0.0
        %3044 = vmatpush1.msra.mxu0 0.0
        %3045 = vmatprep.subr.mxu0 0.0
        %3046 = vmatpush1.msra.mxu0 0.0
        %3047 = vmatprep.subr.mxu0 0.0
        %3048 = vmatpush1.msra.mxu0 0.0
        %3049 = vmatprep.subr.mxu0 0.0
        %3050 = vmatpush1.msra.mxu0 0.0
        %3051 = vmatprep.subr.mxu0 0.0
        %3052 = vmatpush1.msra.mxu0 0.0
        %3053 = vmatprep.mubr.f32.mxu0 0.0
        %3054 = vmatmul.mubr.f32.gmra.mrb[0].mxu0 %v2604
        %v3055 = vpop.f32.mrb[0].mxu0
        %v3056 = vadd.f32 0.0, %v3055
        %v3057 = vpop.f32.mrb[0].mxu0
        %v3058 = vadd.f32 0.0, %v3057
        %3059 = vdwg.mxu0
        %3060 = vmatprep.subr.mxu0 %v2632
        %3061 = vmatpush1.msra.mxu0 %v2630
        %3062 = vmatprep.subr.mxu0 0.0
        %3063 = vmatpush1.msra.mxu0 0.0
        %3064 = vmatprep.subr.mxu0 0.0
        %3065 = vmatpush1.msra.mxu0 0.0
        %3066 = vmatprep.subr.mxu0 0.0
        %3067 = vmatpush1.msra.mxu0 0.0
        %3068 = vmatprep.subr.mxu0 0.0
        %3069 = vmatpush1.msra.mxu0 0.0
        %3070 = vmatprep.subr.mxu0 0.0
        %3071 = vmatpush1.msra.mxu0 0.0
        %3072 = vmatprep.subr.mxu0 0.0
        %3073 = vmatpush1.msra.mxu0 0.0
        %3074 = vmatprep.subr.mxu0 0.0
        %3075 = vmatpush1.msra.mxu0 0.0
        %3076 = vmatprep.subr.mxu0 0.0
        %3077 = vmatpush1.msra.mxu0 0.0
        %3078 = vmatprep.subr.mxu0 0.0
        %3079 = vmatpush1.msra.mxu0 0.0
        %3080 = vmatprep.subr.mxu0 0.0
        %3081 = vmatpush1.msra.mxu0 0.0
        %3082 = vmatprep.subr.mxu0 0.0
        %3083 = vmatpush1.msra.mxu0 0.0
        %3084 = vmatprep.subr.mxu0 0.0
        %3085 = vmatpush1.msra.mxu0 0.0
        %3086 = vmatprep.subr.mxu0 0.0
        %3087 = vmatpush1.msra.mxu0 0.0
        %3088 = vmatprep.subr.mxu0 0.0
        %3089 = vmatpush1.msra.mxu0 0.0
        %3090 = vmatprep.subr.mxu0 0.0
        %3091 = vmatpush1.msra.mxu0 0.0
        %3092 = vmatprep.subr.mxu0 0.0
        %3093 = vmatpush1.msra.mxu0 0.0
        %3094 = vmatprep.subr.mxu0 0.0
        %3095 = vmatpush1.msra.mxu0 0.0
        %3096 = vmatprep.subr.mxu0 0.0
        %3097 = vmatpush1.msra.mxu0 0.0
        %3098 = vmatprep.subr.mxu0 0.0
        %3099 = vmatpush1.msra.mxu0 0.0
        %3100 = vmatprep.subr.mxu0 0.0
        %3101 = vmatpush1.msra.mxu0 0.0
        %3102 = vmatprep.subr.mxu0 0.0
        %3103 = vmatpush1.msra.mxu0 0.0
        %3104 = vmatprep.subr.mxu0 0.0
        %3105 = vmatpush1.msra.mxu0 0.0
        %3106 = vmatprep.subr.mxu0 0.0
        %3107 = vmatpush1.msra.mxu0 0.0
        %3108 = vmatprep.subr.mxu0 0.0
        %3109 = vmatpush1.msra.mxu0 0.0
        %3110 = vmatprep.subr.mxu0 0.0
        %3111 = vmatpush1.msra.mxu0 0.0
        %3112 = vmatprep.subr.mxu0 0.0
        %3113 = vmatpush1.msra.mxu0 0.0
        %3114 = vmatprep.subr.mxu0 0.0
        %3115 = vmatpush1.msra.mxu0 0.0
        %3116 = vmatprep.subr.mxu0 0.0
        %3117 = vmatpush1.msra.mxu0 0.0
        %3118 = vmatprep.subr.mxu0 0.0
        %3119 = vmatpush1.msra.mxu0 0.0
        %3120 = vmatprep.subr.mxu0 0.0
        %3121 = vmatpush1.msra.mxu0 0.0
        %3122 = vmatprep.subr.mxu0 0.0
        %3123 = vmatpush1.msra.mxu0 0.0
        %3124 = vmatprep.mubr.f32.mxu0 0.0
        %3125 = vmatmul.mubr.f32.gmra.mrb[0].mxu0 %v2604
        %v3126 = vpop.f32.mrb[0].mxu0
        %v3127 = vadd.f32 0.0, %v3126
        %v3128 = vpop.f32.mrb[0].mxu0
        %v3129 = vadd.f32 0.0, %v3128
        %3130 = vdwg.mxu0
        %v3131 = vadd.f32 %v2520, %v2701
        %v3132 = vadd.f32 %v2521, %v2703
        %v3133 = vadd.f32 %v2522, %v2772
        %v3134 = vadd.f32 %v2523, %v2774
        %v3135 = vadd.f32 %v2524, %v2843
        %v3136 = vadd.f32 %v2525, %v2845
        %v3137 = vadd.f32 %v2526, %v2914
        %v3138 = vadd.f32 %v2527, %v2916
        %v3139 = vadd.f32 %v2528, %v2985
        %v3140 = vadd.f32 %v2529, %v2987
        %v3141 = vadd.f32 %v2530, %v3056
        %v3142 = vadd.f32 %v2531, %v3058
        %v3143 = vadd.f32 %v2532, %v3127
        %v3144 = vadd.f32 %v2533, %v3129
        %v3145 = vld [vmem:[%s216 + $0x4] sm:$0xff]
        %v3146 = vld [vmem:[%s216 + $0xc] sm:$0xff]
        %v3147 = vld [vmem:[%s216 + $0x14] sm:$0xff]
        %v3148 = vld [vmem:[%s216 + $0x1c] sm:$0xff]
        %v3149 = vld [vmem:[%s216 + $0x24] sm:$0xff]
        %v3150 = vld [vmem:[%s216 + $0x2c] sm:$0xff]
        %v3151 = vld [vmem:[%s216 + $0x34] sm:$0xff]
        %v3152 = vld [vmem:[%s216 + $0x3c] sm:$0xf]
        %s3153 = scalar_lea.vmem %s220, 40
        %v3154 = vld [vmem:[%s3153] sm:$0xff]
        %v3163 = vcombine.high %v3145, %v3145
        %v3164 = vcombine.high %v3146, %v3146
        %v3165 = vcombine.high %v3147, %v3147
        %v3166 = vcombine.high %v3148, %v3148
        %v3167 = vcombine.high %v3149, %v3149
        %v3168 = vcombine.high %v3150, %v3150
        %v3169 = vcombine.high %v3151, %v3151
        %3170 = vrot.lane.b32.xlu0 %v3145, 126
        %v3171 = vpop.permute.xlu0 %3170
        %3172 = vrot.lane.b32.xlu0 %v3163, 126
        %v3173 = vpop.permute.xlu0 %3172
        %3174 = vrot.lane.b32.xlu0 %v3146, 126
        %v3175 = vpop.permute.xlu0 %3174
        %3176 = vrot.lane.b32.xlu0 %v3164, 126
        %v3177 = vpop.permute.xlu0 %3176
        %3178 = vrot.lane.b32.xlu0 %v3147, 126
        %v3179 = vpop.permute.xlu0 %3178
        %3180 = vrot.lane.b32.xlu0 %v3165, 126
        %v3181 = vpop.permute.xlu0 %3180
        %3182 = vrot.lane.b32.xlu0 %v3148, 126
        %v3183 = vpop.permute.xlu0 %3182
        %3184 = vrot.lane.b32.xlu0 %v3166, 126
        %v3185 = vpop.permute.xlu0 %3184
        %3186 = vrot.lane.b32.xlu0 %v3149, 126
        %v3187 = vpop.permute.xlu0 %3186
        %3188 = vrot.lane.b32.xlu0 %v3167, 126
        %v3189 = vpop.permute.xlu0 %3188
        %3190 = vrot.lane.b32.xlu0 %v3150, 126
        %v3191 = vpop.permute.xlu0 %3190
        %3192 = vrot.lane.b32.xlu0 %v3168, 126
        %v3193 = vpop.permute.xlu0 %3192
        %3194 = vrot.lane.b32.xlu0 %v3151, 126
        %v3195 = vpop.permute.xlu0 %3194
        %3196 = vrot.lane.b32.xlu0 %v3169, 126
        %v3197 = vpop.permute.xlu0 %3196
        %3198 = vrot.lane.b32.xlu0 %v3152, 126
        %v3199 = vpop.permute.xlu0 %3198
        %v3200 = vsel %vm1412, %v3171, %v3173
        %v3201 = vsel %vm1412, %v3173, %v3175
        %v3202 = vsel %vm1412, %v3175, %v3177
        %v3203 = vsel %vm1412, %v3177, %v3179
        %v3204 = vsel %vm1412, %v3179, %v3181
        %v3205 = vsel %vm1412, %v3181, %v3183
        %v3206 = vsel %vm1412, %v3183, %v3185
        %v3207 = vsel %vm1412, %v3185, %v3187
        %v3208 = vsel %vm1412, %v3187, %v3189
        %v3209 = vsel %vm1412, %v3189, %v3191
        %v3210 = vsel %vm1412, %v3191, %v3193
        %v3211 = vsel %vm1412, %v3193, %v3195
        %v3212 = vsel %vm1412, %v3195, %v3197
        %v3213 = vsel %vm1412, %v3197, %v3199
        %v3215 = vsel %vm299, %v3154, 0
        %v3217 = vsel %vm303, %v3200, 0
        %v3219 = vsel %vm303, %v3201, 0
        %v3221 = vsel %vm303, %v3202, 0
        %v3223 = vsel %vm303, %v3203, 0
        %v3225 = vsel %vm303, %v3204, 0
        %v3227 = vsel %vm303, %v3205, 0
        %v3229 = vsel %vm303, %v3206, 0
        %v3231 = vsel %vm303, %v3207, 0
        %v3233 = vsel %vm303, %v3208, 0
        %v3235 = vsel %vm303, %v3209, 0
        %v3237 = vsel %vm303, %v3210, 0
        %v3239 = vsel %vm303, %v3211, 0
        %v3241 = vsel %vm303, %v3212, 0
        %v3243 = vsel %vm303, %v3213, 0
        %3245 = vmatprep.subr.mxu0 %v3219
        %3246 = vmatpush1.msra.mxu0 %v3217
        %3247 = vmatprep.subr.mxu0 0.0
        %3248 = vmatpush1.msra.mxu0 0.0
        %3249 = vmatprep.subr.mxu0 0.0
        %3250 = vmatpush1.msra.mxu0 0.0
        %3251 = vmatprep.subr.mxu0 0.0
        %3252 = vmatpush1.msra.mxu0 0.0
        %3253 = vmatprep.subr.mxu0 0.0
        %3254 = vmatpush1.msra.mxu0 0.0
        %3255 = vmatprep.subr.mxu0 0.0
        %3256 = vmatpush1.msra.mxu0 0.0
        %3257 = vmatprep.subr.mxu0 0.0
        %3258 = vmatpush1.msra.mxu0 0.0
        %3259 = vmatprep.subr.mxu0 0.0
        %3260 = vmatpush1.msra.mxu0 0.0
        %3261 = vmatprep.subr.mxu0 0.0
        %3262 = vmatpush1.msra.mxu0 0.0
        %3263 = vmatprep.subr.mxu0 0.0
        %3264 = vmatpush1.msra.mxu0 0.0
        %3265 = vmatprep.subr.mxu0 0.0
        %3266 = vmatpush1.msra.mxu0 0.0
        %3267 = vmatprep.subr.mxu0 0.0
        %3268 = vmatpush1.msra.mxu0 0.0
        %3269 = vmatprep.subr.mxu0 0.0
        %3270 = vmatpush1.msra.mxu0 0.0
        %3271 = vmatprep.subr.mxu0 0.0
        %3272 = vmatpush1.msra.mxu0 0.0
        %3273 = vmatprep.subr.mxu0 0.0
        %3274 = vmatpush1.msra.mxu0 0.0
        %3275 = vmatprep.subr.mxu0 0.0
        %3276 = vmatpush1.msra.mxu0 0.0
        %3277 = vmatprep.subr.mxu0 0.0
        %3278 = vmatpush1.msra.mxu0 0.0
        %3279 = vmatprep.subr.mxu0 0.0
        %3280 = vmatpush1.msra.mxu0 0.0
        %3281 = vmatprep.subr.mxu0 0.0
        %3282 = vmatpush1.msra.mxu0 0.0
        %3283 = vmatprep.subr.mxu0 0.0
        %3284 = vmatpush1.msra.mxu0 0.0
        %3285 = vmatprep.subr.mxu0 0.0
        %3286 = vmatpush1.msra.mxu0 0.0
        %3287 = vmatprep.subr.mxu0 0.0
        %3288 = vmatpush1.msra.mxu0 0.0
        %3289 = vmatprep.subr.mxu0 0.0
        %3290 = vmatpush1.msra.mxu0 0.0
        %3291 = vmatprep.subr.mxu0 0.0
        %3292 = vmatpush1.msra.mxu0 0.0
        %3293 = vmatprep.subr.mxu0 0.0
        %3294 = vmatpush1.msra.mxu0 0.0
        %3295 = vmatprep.subr.mxu0 0.0
        %3296 = vmatpush1.msra.mxu0 0.0
        %3297 = vmatprep.subr.mxu0 0.0
        %3298 = vmatpush1.msra.mxu0 0.0
        %3299 = vmatprep.subr.mxu0 0.0
        %3300 = vmatpush1.msra.mxu0 0.0
        %3301 = vmatprep.subr.mxu0 0.0
        %3302 = vmatpush1.msra.mxu0 0.0
        %3303 = vmatprep.subr.mxu0 0.0
        %3304 = vmatpush1.msra.mxu0 0.0
        %3305 = vmatprep.subr.mxu0 0.0
        %3306 = vmatpush1.msra.mxu0 0.0
        %3307 = vmatprep.subr.mxu0 0.0
        %3308 = vmatpush1.msra.mxu0 0.0
        %3309 = vmatprep.mubr.f32.mxu0 0.0
        %3310 = vmatmul.mubr.f32.gmra.mrb[0].mxu0 %v3215
        %v3311 = vpop.f32.mrb[0].mxu0
        %v3312 = vadd.f32 0.0, %v3311
        %v3313 = vpop.f32.mrb[0].mxu0
        %v3314 = vadd.f32 0.0, %v3313
        %3315 = vdwg.mxu0
        %3316 = vmatprep.subr.mxu0 %v3223
        %3317 = vmatpush1.msra.mxu0 %v3221
        %3318 = vmatprep.subr.mxu0 0.0
        %3319 = vmatpush1.msra.mxu0 0.0
        %3320 = vmatprep.subr.mxu0 0.0
        %3321 = vmatpush1.msra.mxu0 0.0
        %3322 = vmatprep.subr.mxu0 0.0
        %3323 = vmatpush1.msra.mxu0 0.0
        %3324 = vmatprep.subr.mxu0 0.0
        %3325 = vmatpush1.msra.mxu0 0.0
        %3326 = vmatprep.subr.mxu0 0.0
        %3327 = vmatpush1.msra.mxu0 0.0
        %3328 = vmatprep.subr.mxu0 0.0
        %3329 = vmatpush1.msra.mxu0 0.0
        %3330 = vmatprep.subr.mxu0 0.0
        %3331 = vmatpush1.msra.mxu0 0.0
        %3332 = vmatprep.subr.mxu0 0.0
        %3333 = vmatpush1.msra.mxu0 0.0
        %3334 = vmatprep.subr.mxu0 0.0
        %3335 = vmatpush1.msra.mxu0 0.0
        %3336 = vmatprep.subr.mxu0 0.0
        %3337 = vmatpush1.msra.mxu0 0.0
        %3338 = vmatprep.subr.mxu0 0.0
        %3339 = vmatpush1.msra.mxu0 0.0
        %3340 = vmatprep.subr.mxu0 0.0
        %3341 = vmatpush1.msra.mxu0 0.0
        %3342 = vmatprep.subr.mxu0 0.0
        %3343 = vmatpush1.msra.mxu0 0.0
        %3344 = vmatprep.subr.mxu0 0.0
        %3345 = vmatpush1.msra.mxu0 0.0
        %3346 = vmatprep.subr.mxu0 0.0
        %3347 = vmatpush1.msra.mxu0 0.0
        %3348 = vmatprep.subr.mxu0 0.0
        %3349 = vmatpush1.msra.mxu0 0.0
        %3350 = vmatprep.subr.mxu0 0.0
        %3351 = vmatpush1.msra.mxu0 0.0
        %3352 = vmatprep.subr.mxu0 0.0
        %3353 = vmatpush1.msra.mxu0 0.0
        %3354 = vmatprep.subr.mxu0 0.0
        %3355 = vmatpush1.msra.mxu0 0.0
        %3356 = vmatprep.subr.mxu0 0.0
        %3357 = vmatpush1.msra.mxu0 0.0
        %3358 = vmatprep.subr.mxu0 0.0
        %3359 = vmatpush1.msra.mxu0 0.0
        %3360 = vmatprep.subr.mxu0 0.0
        %3361 = vmatpush1.msra.mxu0 0.0
        %3362 = vmatprep.subr.mxu0 0.0
        %3363 = vmatpush1.msra.mxu0 0.0
        %3364 = vmatprep.subr.mxu0 0.0
        %3365 = vmatpush1.msra.mxu0 0.0
        %3366 = vmatprep.subr.mxu0 0.0
        %3367 = vmatpush1.msra.mxu0 0.0
        %3368 = vmatprep.subr.mxu0 0.0
        %3369 = vmatpush1.msra.mxu0 0.0
        %3370 = vmatprep.subr.mxu0 0.0
        %3371 = vmatpush1.msra.mxu0 0.0
        %3372 = vmatprep.subr.mxu0 0.0
        %3373 = vmatpush1.msra.mxu0 0.0
        %3374 = vmatprep.subr.mxu0 0.0
        %3375 = vmatpush1.msra.mxu0 0.0
        %3376 = vmatprep.subr.mxu0 0.0
        %3377 = vmatpush1.msra.mxu0 0.0
        %3378 = vmatprep.subr.mxu0 0.0
        %3379 = vmatpush1.msra.mxu0 0.0
        %3380 = vmatprep.mubr.f32.mxu0 0.0
        %3381 = vmatmul.mubr.f32.gmra.mrb[0].mxu0 %v3215
        %v3382 = vpop.f32.mrb[0].mxu0
        %v3383 = vadd.f32 0.0, %v3382
        %v3384 = vpop.f32.mrb[0].mxu0
        %v3385 = vadd.f32 0.0, %v3384
        %3386 = vdwg.mxu0
        %3387 = vmatprep.subr.mxu0 %v3227
        %3388 = vmatpush1.msra.mxu0 %v3225
        %3389 = vmatprep.subr.mxu0 0.0
        %3390 = vmatpush1.msra.mxu0 0.0
        %3391 = vmatprep.subr.mxu0 0.0
        %3392 = vmatpush1.msra.mxu0 0.0
        %3393 = vmatprep.subr.mxu0 0.0
        %3394 = vmatpush1.msra.mxu0 0.0
        %3395 = vmatprep.subr.mxu0 0.0
        %3396 = vmatpush1.msra.mxu0 0.0
        %3397 = vmatprep.subr.mxu0 0.0
        %3398 = vmatpush1.msra.mxu0 0.0
        %3399 = vmatprep.subr.mxu0 0.0
        %3400 = vmatpush1.msra.mxu0 0.0
        %3401 = vmatprep.subr.mxu0 0.0
        %3402 = vmatpush1.msra.mxu0 0.0
        %3403 = vmatprep.subr.mxu0 0.0
        %3404 = vmatpush1.msra.mxu0 0.0
        %3405 = vmatprep.subr.mxu0 0.0
        %3406 = vmatpush1.msra.mxu0 0.0
        %3407 = vmatprep.subr.mxu0 0.0
        %3408 = vmatpush1.msra.mxu0 0.0
        %3409 = vmatprep.subr.mxu0 0.0
        %3410 = vmatpush1.msra.mxu0 0.0
        %3411 = vmatprep.subr.mxu0 0.0
        %3412 = vmatpush1.msra.mxu0 0.0
        %3413 = vmatprep.subr.mxu0 0.0
        %3414 = vmatpush1.msra.mxu0 0.0
        %3415 = vmatprep.subr.mxu0 0.0
        %3416 = vmatpush1.msra.mxu0 0.0
        %3417 = vmatprep.subr.mxu0 0.0
        %3418 = vmatpush1.msra.mxu0 0.0
        %3419 = vmatprep.subr.mxu0 0.0
        %3420 = vmatpush1.msra.mxu0 0.0
        %3421 = vmatprep.subr.mxu0 0.0
        %3422 = vmatpush1.msra.mxu0 0.0
        %3423 = vmatprep.subr.mxu0 0.0
        %3424 = vmatpush1.msra.mxu0 0.0
        %3425 = vmatprep.subr.mxu0 0.0
        %3426 = vmatpush1.msra.mxu0 0.0
        %3427 = vmatprep.subr.mxu0 0.0
        %3428 = vmatpush1.msra.mxu0 0.0
        %3429 = vmatprep.subr.mxu0 0.0
        %3430 = vmatpush1.msra.mxu0 0.0
        %3431 = vmatprep.subr.mxu0 0.0
        %3432 = vmatpush1.msra.mxu0 0.0
        %3433 = vmatprep.subr.mxu0 0.0
        %3434 = vmatpush1.msra.mxu0 0.0
        %3435 = vmatprep.subr.mxu0 0.0
        %3436 = vmatpush1.msra.mxu0 0.0
        %3437 = vmatprep.subr.mxu0 0.0
        %3438 = vmatpush1.msra.mxu0 0.0
        %3439 = vmatprep.subr.mxu0 0.0
        %3440 = vmatpush1.msra.mxu0 0.0
        %3441 = vmatprep.subr.mxu0 0.0
        %3442 = vmatpush1.msra.mxu0 0.0
        %3443 = vmatprep.subr.mxu0 0.0
        %3444 = vmatpush1.msra.mxu0 0.0
        %3445 = vmatprep.subr.mxu0 0.0
        %3446 = vmatpush1.msra.mxu0 0.0
        %3447 = vmatprep.subr.mxu0 0.0
        %3448 = vmatpush1.msra.mxu0 0.0
        %3449 = vmatprep.subr.mxu0 0.0
        %3450 = vmatpush1.msra.mxu0 0.0
        %3451 = vmatprep.mubr.f32.mxu0 0.0
        %3452 = vmatmul.mubr.f32.gmra.mrb[0].mxu0 %v3215
        %v3453 = vpop.f32.mrb[0].mxu0
        %v3454 = vadd.f32 0.0, %v3453
        %v3455 = vpop.f32.mrb[0].mxu0
        %v3456 = vadd.f32 0.0, %v3455
        %3457 = vdwg.mxu0
        %3458 = vmatprep.subr.mxu0 %v3231
        %3459 = vmatpush1.msra.mxu0 %v3229
        %3460 = vmatprep.subr.mxu0 0.0
        %3461 = vmatpush1.msra.mxu0 0.0
        %3462 = vmatprep.subr.mxu0 0.0
        %3463 = vmatpush1.msra.mxu0 0.0
        %3464 = vmatprep.subr.mxu0 0.0
        %3465 = vmatpush1.msra.mxu0 0.0
        %3466 = vmatprep.subr.mxu0 0.0
        %3467 = vmatpush1.msra.mxu0 0.0
        %3468 = vmatprep.subr.mxu0 0.0
        %3469 = vmatpush1.msra.mxu0 0.0
        %3470 = vmatprep.subr.mxu0 0.0
        %3471 = vmatpush1.msra.mxu0 0.0
        %3472 = vmatprep.subr.mxu0 0.0
        %3473 = vmatpush1.msra.mxu0 0.0
        %3474 = vmatprep.subr.mxu0 0.0
        %3475 = vmatpush1.msra.mxu0 0.0
        %3476 = vmatprep.subr.mxu0 0.0
        %3477 = vmatpush1.msra.mxu0 0.0
        %3478 = vmatprep.subr.mxu0 0.0
        %3479 = vmatpush1.msra.mxu0 0.0
        %3480 = vmatprep.subr.mxu0 0.0
        %3481 = vmatpush1.msra.mxu0 0.0
        %3482 = vmatprep.subr.mxu0 0.0
        %3483 = vmatpush1.msra.mxu0 0.0
        %3484 = vmatprep.subr.mxu0 0.0
        %3485 = vmatpush1.msra.mxu0 0.0
        %3486 = vmatprep.subr.mxu0 0.0
        %3487 = vmatpush1.msra.mxu0 0.0
        %3488 = vmatprep.subr.mxu0 0.0
        %3489 = vmatpush1.msra.mxu0 0.0
        %3490 = vmatprep.subr.mxu0 0.0
        %3491 = vmatpush1.msra.mxu0 0.0
        %3492 = vmatprep.subr.mxu0 0.0
        %3493 = vmatpush1.msra.mxu0 0.0
        %3494 = vmatprep.subr.mxu0 0.0
        %3495 = vmatpush1.msra.mxu0 0.0
        %3496 = vmatprep.subr.mxu0 0.0
        %3497 = vmatpush1.msra.mxu0 0.0
        %3498 = vmatprep.subr.mxu0 0.0
        %3499 = vmatpush1.msra.mxu0 0.0
        %3500 = vmatprep.subr.mxu0 0.0
        %3501 = vmatpush1.msra.mxu0 0.0
        %3502 = vmatprep.subr.mxu0 0.0
        %3503 = vmatpush1.msra.mxu0 0.0
        %3504 = vmatprep.subr.mxu0 0.0
        %3505 = vmatpush1.msra.mxu0 0.0
        %3506 = vmatprep.subr.mxu0 0.0
        %3507 = vmatpush1.msra.mxu0 0.0
        %3508 = vmatprep.subr.mxu0 0.0
        %3509 = vmatpush1.msra.mxu0 0.0
        %3510 = vmatprep.subr.mxu0 0.0
        %3511 = vmatpush1.msra.mxu0 0.0
        %3512 = vmatprep.subr.mxu0 0.0
        %3513 = vmatpush1.msra.mxu0 0.0
        %3514 = vmatprep.subr.mxu0 0.0
        %3515 = vmatpush1.msra.mxu0 0.0
        %3516 = vmatprep.subr.mxu0 0.0
        %3517 = vmatpush1.msra.mxu0 0.0
        %3518 = vmatprep.subr.mxu0 0.0
        %3519 = vmatpush1.msra.mxu0 0.0
        %3520 = vmatprep.subr.mxu0 0.0
        %3521 = vmatpush1.msra.mxu0 0.0
        %3522 = vmatprep.mubr.f32.mxu0 0.0
        %3523 = vmatmul.mubr.f32.gmra.mrb[0].mxu0 %v3215
        %v3524 = vpop.f32.mrb[0].mxu0
        %v3525 = vadd.f32 0.0, %v3524
        %v3526 = vpop.f32.mrb[0].mxu0
        %v3527 = vadd.f32 0.0, %v3526
        %3528 = vdwg.mxu0
        %3529 = vmatprep.subr.mxu0 %v3235
        %3530 = vmatpush1.msra.mxu0 %v3233
        %3531 = vmatprep.subr.mxu0 0.0
        %3532 = vmatpush1.msra.mxu0 0.0
        %3533 = vmatprep.subr.mxu0 0.0
        %3534 = vmatpush1.msra.mxu0 0.0
        %3535 = vmatprep.subr.mxu0 0.0
        %3536 = vmatpush1.msra.mxu0 0.0
        %3537 = vmatprep.subr.mxu0 0.0
        %3538 = vmatpush1.msra.mxu0 0.0
        %3539 = vmatprep.subr.mxu0 0.0
        %3540 = vmatpush1.msra.mxu0 0.0
        %3541 = vmatprep.subr.mxu0 0.0
        %3542 = vmatpush1.msra.mxu0 0.0
        %3543 = vmatprep.subr.mxu0 0.0
        %3544 = vmatpush1.msra.mxu0 0.0
        %3545 = vmatprep.subr.mxu0 0.0
        %3546 = vmatpush1.msra.mxu0 0.0
        %3547 = vmatprep.subr.mxu0 0.0
        %3548 = vmatpush1.msra.mxu0 0.0
        %3549 = vmatprep.subr.mxu0 0.0
        %3550 = vmatpush1.msra.mxu0 0.0
        %3551 = vmatprep.subr.mxu0 0.0
        %3552 = vmatpush1.msra.mxu0 0.0
        %3553 = vmatprep.subr.mxu0 0.0
        %3554 = vmatpush1.msra.mxu0 0.0
        %3555 = vmatprep.subr.mxu0 0.0
        %3556 = vmatpush1.msra.mxu0 0.0
        %3557 = vmatprep.subr.mxu0 0.0
        %3558 = vmatpush1.msra.mxu0 0.0
        %3559 = vmatprep.subr.mxu0 0.0
        %3560 = vmatpush1.msra.mxu0 0.0
        %3561 = vmatprep.subr.mxu0 0.0
        %3562 = vmatpush1.msra.mxu0 0.0
        %3563 = vmatprep.subr.mxu0 0.0
        %3564 = vmatpush1.msra.mxu0 0.0
        %3565 = vmatprep.subr.mxu0 0.0
        %3566 = vmatpush1.msra.mxu0 0.0
        %3567 = vmatprep.subr.mxu0 0.0
        %3568 = vmatpush1.msra.mxu0 0.0
        %3569 = vmatprep.subr.mxu0 0.0
        %3570 = vmatpush1.msra.mxu0 0.0
        %3571 = vmatprep.subr.mxu0 0.0
        %3572 = vmatpush1.msra.mxu0 0.0
        %3573 = vmatprep.subr.mxu0 0.0
        %3574 = vmatpush1.msra.mxu0 0.0
        %3575 = vmatprep.subr.mxu0 0.0
        %3576 = vmatpush1.msra.mxu0 0.0
        %3577 = vmatprep.subr.mxu0 0.0
        %3578 = vmatpush1.msra.mxu0 0.0
        %3579 = vmatprep.subr.mxu0 0.0
        %3580 = vmatpush1.msra.mxu0 0.0
        %3581 = vmatprep.subr.mxu0 0.0
        %3582 = vmatpush1.msra.mxu0 0.0
        %3583 = vmatprep.subr.mxu0 0.0
        %3584 = vmatpush1.msra.mxu0 0.0
        %3585 = vmatprep.subr.mxu0 0.0
        %3586 = vmatpush1.msra.mxu0 0.0
        %3587 = vmatprep.subr.mxu0 0.0
        %3588 = vmatpush1.msra.mxu0 0.0
        %3589 = vmatprep.subr.mxu0 0.0
        %3590 = vmatpush1.msra.mxu0 0.0
        %3591 = vmatprep.subr.mxu0 0.0
        %3592 = vmatpush1.msra.mxu0 0.0
        %3593 = vmatprep.mubr.f32.mxu0 0.0
        %3594 = vmatmul.mubr.f32.gmra.mrb[0].mxu0 %v3215
        %v3595 = vpop.f32.mrb[0].mxu0
        %v3596 = vadd.f32 0.0, %v3595
        %v3597 = vpop.f32.mrb[0].mxu0
        %v3598 = vadd.f32 0.0, %v3597
        %3599 = vdwg.mxu0
        %3600 = vmatprep.subr.mxu0 %v3239
        %3601 = vmatpush1.msra.mxu0 %v3237
        %3602 = vmatprep.subr.mxu0 0.0
        %3603 = vmatpush1.msra.mxu0 0.0
        %3604 = vmatprep.subr.mxu0 0.0
        %3605 = vmatpush1.msra.mxu0 0.0
        %3606 = vmatprep.subr.mxu0 0.0
        %3607 = vmatpush1.msra.mxu0 0.0
        %3608 = vmatprep.subr.mxu0 0.0
        %3609 = vmatpush1.msra.mxu0 0.0
        %3610 = vmatprep.subr.mxu0 0.0
        %3611 = vmatpush1.msra.mxu0 0.0
        %3612 = vmatprep.subr.mxu0 0.0
        %3613 = vmatpush1.msra.mxu0 0.0
        %3614 = vmatprep.subr.mxu0 0.0
        %3615 = vmatpush1.msra.mxu0 0.0
        %3616 = vmatprep.subr.mxu0 0.0
        %3617 = vmatpush1.msra.mxu0 0.0
        %3618 = vmatprep.subr.mxu0 0.0
        %3619 = vmatpush1.msra.mxu0 0.0
        %3620 = vmatprep.subr.mxu0 0.0
        %3621 = vmatpush1.msra.mxu0 0.0
        %3622 = vmatprep.subr.mxu0 0.0
        %3623 = vmatpush1.msra.mxu0 0.0
        %3624 = vmatprep.subr.mxu0 0.0
        %3625 = vmatpush1.msra.mxu0 0.0
        %3626 = vmatprep.subr.mxu0 0.0
        %3627 = vmatpush1.msra.mxu0 0.0
        %3628 = vmatprep.subr.mxu0 0.0
        %3629 = vmatpush1.msra.mxu0 0.0
        %3630 = vmatprep.subr.mxu0 0.0
        %3631 = vmatpush1.msra.mxu0 0.0
        %3632 = vmatprep.subr.mxu0 0.0
        %3633 = vmatpush1.msra.mxu0 0.0
        %3634 = vmatprep.subr.mxu0 0.0
        %3635 = vmatpush1.msra.mxu0 0.0
        %3636 = vmatprep.subr.mxu0 0.0
        %3637 = vmatpush1.msra.mxu0 0.0
        %3638 = vmatprep.subr.mxu0 0.0
        %3639 = vmatpush1.msra.mxu0 0.0
        %3640 = vmatprep.subr.mxu0 0.0
        %3641 = vmatpush1.msra.mxu0 0.0
        %3642 = vmatprep.subr.mxu0 0.0
        %3643 = vmatpush1.msra.mxu0 0.0
        %3644 = vmatprep.subr.mxu0 0.0
        %3645 = vmatpush1.msra.mxu0 0.0
        %3646 = vmatprep.subr.mxu0 0.0
        %3647 = vmatpush1.msra.mxu0 0.0
        %3648 = vmatprep.subr.mxu0 0.0
        %3649 = vmatpush1.msra.mxu0 0.0
        %3650 = vmatprep.subr.mxu0 0.0
        %3651 = vmatpush1.msra.mxu0 0.0
        %3652 = vmatprep.subr.mxu0 0.0
        %3653 = vmatpush1.msra.mxu0 0.0
        %3654 = vmatprep.subr.mxu0 0.0
        %3655 = vmatpush1.msra.mxu0 0.0
        %3656 = vmatprep.subr.mxu0 0.0
        %3657 = vmatpush1.msra.mxu0 0.0
        %3658 = vmatprep.subr.mxu0 0.0
        %3659 = vmatpush1.msra.mxu0 0.0
        %3660 = vmatprep.subr.mxu0 0.0
        %3661 = vmatpush1.msra.mxu0 0.0
        %3662 = vmatprep.subr.mxu0 0.0
        %3663 = vmatpush1.msra.mxu0 0.0
        %3664 = vmatprep.mubr.f32.mxu0 0.0
        %3665 = vmatmul.mubr.f32.gmra.mrb[0].mxu0 %v3215
        %v3666 = vpop.f32.mrb[0].mxu0
        %v3667 = vadd.f32 0.0, %v3666
        %v3668 = vpop.f32.mrb[0].mxu0
        %v3669 = vadd.f32 0.0, %v3668
        %3670 = vdwg.mxu0
        %3671 = vmatprep.subr.mxu0 %v3243
        %3672 = vmatpush1.msra.mxu0 %v3241
        %3673 = vmatprep.subr.mxu0 0.0
        %3674 = vmatpush1.msra.mxu0 0.0
        %3675 = vmatprep.subr.mxu0 0.0
        %3676 = vmatpush1.msra.mxu0 0.0
        %3677 = vmatprep.subr.mxu0 0.0
        %3678 = vmatpush1.msra.mxu0 0.0
        %3679 = vmatprep.subr.mxu0 0.0
        %3680 = vmatpush1.msra.mxu0 0.0
        %3681 = vmatprep.subr.mxu0 0.0
        %3682 = vmatpush1.msra.mxu0 0.0
        %3683 = vmatprep.subr.mxu0 0.0
        %3684 = vmatpush1.msra.mxu0 0.0
        %3685 = vmatprep.subr.mxu0 0.0
        %3686 = vmatpush1.msra.mxu0 0.0
        %3687 = vmatprep.subr.mxu0 0.0
        %3688 = vmatpush1.msra.mxu0 0.0
        %3689 = vmatprep.subr.mxu0 0.0
        %3690 = vmatpush1.msra.mxu0 0.0
        %3691 = vmatprep.subr.mxu0 0.0
        %3692 = vmatpush1.msra.mxu0 0.0
        %3693 = vmatprep.subr.mxu0 0.0
        %3694 = vmatpush1.msra.mxu0 0.0
        %3695 = vmatprep.subr.mxu0 0.0
        %3696 = vmatpush1.msra.mxu0 0.0
        %3697 = vmatprep.subr.mxu0 0.0
        %3698 = vmatpush1.msra.mxu0 0.0
        %3699 = vmatprep.subr.mxu0 0.0
        %3700 = vmatpush1.msra.mxu0 0.0
        %3701 = vmatprep.subr.mxu0 0.0
        %3702 = vmatpush1.msra.mxu0 0.0
        %3703 = vmatprep.subr.mxu0 0.0
        %3704 = vmatpush1.msra.mxu0 0.0
        %3705 = vmatprep.subr.mxu0 0.0
        %3706 = vmatpush1.msra.mxu0 0.0
        %3707 = vmatprep.subr.mxu0 0.0
        %3708 = vmatpush1.msra.mxu0 0.0
        %3709 = vmatprep.subr.mxu0 0.0
        %3710 = vmatpush1.msra.mxu0 0.0
        %3711 = vmatprep.subr.mxu0 0.0
        %3712 = vmatpush1.msra.mxu0 0.0
        %3713 = vmatprep.subr.mxu0 0.0
        %3714 = vmatpush1.msra.mxu0 0.0
        %3715 = vmatprep.subr.mxu0 0.0
        %3716 = vmatpush1.msra.mxu0 0.0
        %3717 = vmatprep.subr.mxu0 0.0
        %3718 = vmatpush1.msra.mxu0 0.0
        %3719 = vmatprep.subr.mxu0 0.0
        %3720 = vmatpush1.msra.mxu0 0.0
        %3721 = vmatprep.subr.mxu0 0.0
        %3722 = vmatpush1.msra.mxu0 0.0
        %3723 = vmatprep.subr.mxu0 0.0
        %3724 = vmatpush1.msra.mxu0 0.0
        %3725 = vmatprep.subr.mxu0 0.0
        %3726 = vmatpush1.msra.mxu0 0.0
        %3727 = vmatprep.subr.mxu0 0.0
        %3728 = vmatpush1.msra.mxu0 0.0
        %3729 = vmatprep.subr.mxu0 0.0
        %3730 = vmatpush1.msra.mxu0 0.0
        %3731 = vmatprep.subr.mxu0 0.0
        %3732 = vmatpush1.msra.mxu0 0.0
        %3733 = vmatprep.subr.mxu0 0.0
        %3734 = vmatpush1.msra.mxu0 0.0
        %3735 = vmatprep.mubr.f32.mxu0 0.0
        %3736 = vmatmul.mubr.f32.gmra.mrb[0].mxu0 %v3215
        %v3737 = vpop.f32.mrb[0].mxu0
        %v3738 = vadd.f32 0.0, %v3737
        %v3739 = vpop.f32.mrb[0].mxu0
        %v3740 = vadd.f32 0.0, %v3739
        %3741 = vdwg.mxu0
        %v3742 = vadd.f32 %v3131, %v3312
        %v3743 = vadd.f32 %v3132, %v3314
        %v3744 = vadd.f32 %v3133, %v3383
        %v3745 = vadd.f32 %v3134, %v3385
        %v3746 = vadd.f32 %v3135, %v3454
        %v3747 = vadd.f32 %v3136, %v3456
        %v3748 = vadd.f32 %v3137, %v3525
        %v3749 = vadd.f32 %v3138, %v3527
        %v3750 = vadd.f32 %v3139, %v3596
        %v3751 = vadd.f32 %v3140, %v3598
        %v3752 = vadd.f32 %v3141, %v3667
        %v3753 = vadd.f32 %v3142, %v3669
        %v3754 = vadd.f32 %v3143, %v3738
        %v3755 = vadd.f32 %v3144, %v3740
        %v3756 = vld [vmem:[%s216 + $0x8] sm:$0xff]
        %v3757 = vld [vmem:[%s216 + $0x10] sm:$0xff]
        %v3758 = vld [vmem:[%s216 + $0x18] sm:$0xff]
        %v3759 = vld [vmem:[%s216 + $0x20] sm:$0xff]
        %v3760 = vld [vmem:[%s216 + $0x28] sm:$0xff]
        %v3761 = vld [vmem:[%s216 + $0x30] sm:$0xff]
        %v3762 = vld [vmem:[%s216 + $0x38] sm:$0xff]
        %s3763 = scalar_lea.vmem %s220, 48
        %v3764 = vld [vmem:[%s3763] sm:$0xff]
        %v3772 = vcombine.high %v3756, %v3756
        %v3773 = vcombine.high %v3757, %v3757
        %v3774 = vcombine.high %v3758, %v3758
        %v3775 = vcombine.high %v3759, %v3759
        %v3776 = vcombine.high %v3760, %v3760
        %v3777 = vcombine.high %v3761, %v3761
        %v3778 = vcombine.high %v3762, %v3762
        %v3780 = vsel %vm299, %v3764, 0
        %v3782 = vsel %vm303, %v3756, 0
        %v3784 = vsel %vm303, %v3772, 0
        %v3786 = vsel %vm303, %v3757, 0
        %v3788 = vsel %vm303, %v3773, 0
        %v3790 = vsel %vm303, %v3758, 0
        %v3792 = vsel %vm303, %v3774, 0
        %v3794 = vsel %vm303, %v3759, 0
        %v3796 = vsel %vm303, %v3775, 0
        %v3798 = vsel %vm303, %v3760, 0
        %v3800 = vsel %vm303, %v3776, 0
        %v3802 = vsel %vm303, %v3761, 0
        %v3804 = vsel %vm303, %v3777, 0
        %v3806 = vsel %vm303, %v3762, 0
        %v3808 = vsel %vm303, %v3778, 0
        %3810 = vmatprep.subr.mxu0 %v3784
        %3811 = vmatpush1.msra.mxu0 %v3782
        %3812 = vmatprep.subr.mxu0 0.0
        %3813 = vmatpush1.msra.mxu0 0.0
        %3814 = vmatprep.subr.mxu0 0.0
        %3815 = vmatpush1.msra.mxu0 0.0
        %3816 = vmatprep.subr.mxu0 0.0
        %3817 = vmatpush1.msra.mxu0 0.0
        %3818 = vmatprep.subr.mxu0 0.0
        %3819 = vmatpush1.msra.mxu0 0.0
        %3820 = vmatprep.subr.mxu0 0.0
        %3821 = vmatpush1.msra.mxu0 0.0
        %3822 = vmatprep.subr.mxu0 0.0
        %3823 = vmatpush1.msra.mxu0 0.0
        %3824 = vmatprep.subr.mxu0 0.0
        %3825 = vmatpush1.msra.mxu0 0.0
        %3826 = vmatprep.subr.mxu0 0.0
        %3827 = vmatpush1.msra.mxu0 0.0
        %3828 = vmatprep.subr.mxu0 0.0
        %3829 = vmatpush1.msra.mxu0 0.0
        %3830 = vmatprep.subr.mxu0 0.0
        %3831 = vmatpush1.msra.mxu0 0.0
        %3832 = vmatprep.subr.mxu0 0.0
        %3833 = vmatpush1.msra.mxu0 0.0
        %3834 = vmatprep.subr.mxu0 0.0
        %3835 = vmatpush1.msra.mxu0 0.0
        %3836 = vmatprep.subr.mxu0 0.0
        %3837 = vmatpush1.msra.mxu0 0.0
        %3838 = vmatprep.subr.mxu0 0.0
        %3839 = vmatpush1.msra.mxu0 0.0
        %3840 = vmatprep.subr.mxu0 0.0
        %3841 = vmatpush1.msra.mxu0 0.0
        %3842 = vmatprep.subr.mxu0 0.0
        %3843 = vmatpush1.msra.mxu0 0.0
        %3844 = vmatprep.subr.mxu0 0.0
        %3845 = vmatpush1.msra.mxu0 0.0
        %3846 = vmatprep.subr.mxu0 0.0
        %3847 = vmatpush1.msra.mxu0 0.0
        %3848 = vmatprep.subr.mxu0 0.0
        %3849 = vmatpush1.msra.mxu0 0.0
        %3850 = vmatprep.subr.mxu0 0.0
        %3851 = vmatpush1.msra.mxu0 0.0
        %3852 = vmatprep.subr.mxu0 0.0
        %3853 = vmatpush1.msra.mxu0 0.0
        %3854 = vmatprep.subr.mxu0 0.0
        %3855 = vmatpush1.msra.mxu0 0.0
        %3856 = vmatprep.subr.mxu0 0.0
        %3857 = vmatpush1.msra.mxu0 0.0
        %3858 = vmatprep.subr.mxu0 0.0
        %3859 = vmatpush1.msra.mxu0 0.0
        %3860 = vmatprep.subr.mxu0 0.0
        %3861 = vmatpush1.msra.mxu0 0.0
        %3862 = vmatprep.subr.mxu0 0.0
        %3863 = vmatpush1.msra.mxu0 0.0
        %3864 = vmatprep.subr.mxu0 0.0
        %3865 = vmatpush1.msra.mxu0 0.0
        %3866 = vmatprep.subr.mxu0 0.0
        %3867 = vmatpush1.msra.mxu0 0.0
        %3868 = vmatprep.subr.mxu0 0.0
        %3869 = vmatpush1.msra.mxu0 0.0
        %3870 = vmatprep.subr.mxu0 0.0
        %3871 = vmatpush1.msra.mxu0 0.0
        %3872 = vmatprep.subr.mxu0 0.0
        %3873 = vmatpush1.msra.mxu0 0.0
        %3874 = vmatprep.mubr.f32.mxu0 0.0
        %3875 = vmatmul.mubr.f32.gmra.mrb[0].mxu0 %v3780
        %v3876 = vpop.f32.mrb[0].mxu0
        %v3877 = vadd.f32 0.0, %v3876
        %v3878 = vpop.f32.mrb[0].mxu0
        %v3879 = vadd.f32 0.0, %v3878
        %3880 = vdwg.mxu0
        %3881 = vmatprep.subr.mxu0 %v3788
        %3882 = vmatpush1.msra.mxu0 %v3786
        %3883 = vmatprep.subr.mxu0 0.0
        %3884 = vmatpush1.msra.mxu0 0.0
        %3885 = vmatprep.subr.mxu0 0.0
        %3886 = vmatpush1.msra.mxu0 0.0
        %3887 = vmatprep.subr.mxu0 0.0
        %3888 = vmatpush1.msra.mxu0 0.0
        %3889 = vmatprep.subr.mxu0 0.0
        %3890 = vmatpush1.msra.mxu0 0.0
        %3891 = vmatprep.subr.mxu0 0.0
        %3892 = vmatpush1.msra.mxu0 0.0
        %3893 = vmatprep.subr.mxu0 0.0
        %3894 = vmatpush1.msra.mxu0 0.0
        %3895 = vmatprep.subr.mxu0 0.0
        %3896 = vmatpush1.msra.mxu0 0.0
        %3897 = vmatprep.subr.mxu0 0.0
        %3898 = vmatpush1.msra.mxu0 0.0
        %3899 = vmatprep.subr.mxu0 0.0
        %3900 = vmatpush1.msra.mxu0 0.0
        %3901 = vmatprep.subr.mxu0 0.0
        %3902 = vmatpush1.msra.mxu0 0.0
        %3903 = vmatprep.subr.mxu0 0.0
        %3904 = vmatpush1.msra.mxu0 0.0
        %3905 = vmatprep.subr.mxu0 0.0
        %3906 = vmatpush1.msra.mxu0 0.0
        %3907 = vmatprep.subr.mxu0 0.0
        %3908 = vmatpush1.msra.mxu0 0.0
        %3909 = vmatprep.subr.mxu0 0.0
        %3910 = vmatpush1.msra.mxu0 0.0
        %3911 = vmatprep.subr.mxu0 0.0
        %3912 = vmatpush1.msra.mxu0 0.0
        %3913 = vmatprep.subr.mxu0 0.0
        %3914 = vmatpush1.msra.mxu0 0.0
        %3915 = vmatprep.subr.mxu0 0.0
        %3916 = vmatpush1.msra.mxu0 0.0
        %3917 = vmatprep.subr.mxu0 0.0
        %3918 = vmatpush1.msra.mxu0 0.0
        %3919 = vmatprep.subr.mxu0 0.0
        %3920 = vmatpush1.msra.mxu0 0.0
        %3921 = vmatprep.subr.mxu0 0.0
        %3922 = vmatpush1.msra.mxu0 0.0
        %3923 = vmatprep.subr.mxu0 0.0
        %3924 = vmatpush1.msra.mxu0 0.0
        %3925 = vmatprep.subr.mxu0 0.0
        %3926 = vmatpush1.msra.mxu0 0.0
        %3927 = vmatprep.subr.mxu0 0.0
        %3928 = vmatpush1.msra.mxu0 0.0
        %3929 = vmatprep.subr.mxu0 0.0
        %3930 = vmatpush1.msra.mxu0 0.0
        %3931 = vmatprep.subr.mxu0 0.0
        %3932 = vmatpush1.msra.mxu0 0.0
        %3933 = vmatprep.subr.mxu0 0.0
        %3934 = vmatpush1.msra.mxu0 0.0
        %3935 = vmatprep.subr.mxu0 0.0
        %3936 = vmatpush1.msra.mxu0 0.0
        %3937 = vmatprep.subr.mxu0 0.0
        %3938 = vmatpush1.msra.mxu0 0.0
        %3939 = vmatprep.subr.mxu0 0.0
        %3940 = vmatpush1.msra.mxu0 0.0
        %3941 = vmatprep.subr.mxu0 0.0
        %3942 = vmatpush1.msra.mxu0 0.0
        %3943 = vmatprep.subr.mxu0 0.0
        %3944 = vmatpush1.msra.mxu0 0.0
        %3945 = vmatprep.mubr.f32.mxu0 0.0
        %3946 = vmatmul.mubr.f32.gmra.mrb[0].mxu0 %v3780
        %v3947 = vpop.f32.mrb[0].mxu0
        %v3948 = vadd.f32 0.0, %v3947
        %v3949 = vpop.f32.mrb[0].mxu0
        %v3950 = vadd.f32 0.0, %v3949
        %3951 = vdwg.mxu0
        %3952 = vmatprep.subr.mxu0 %v3792
        %3953 = vmatpush1.msra.mxu0 %v3790
        %3954 = vmatprep.subr.mxu0 0.0
        %3955 = vmatpush1.msra.mxu0 0.0
        %3956 = vmatprep.subr.mxu0 0.0
        %3957 = vmatpush1.msra.mxu0 0.0
        %3958 = vmatprep.subr.mxu0 0.0
        %3959 = vmatpush1.msra.mxu0 0.0
        %3960 = vmatprep.subr.mxu0 0.0
        %3961 = vmatpush1.msra.mxu0 0.0
        %3962 = vmatprep.subr.mxu0 0.0
        %3963 = vmatpush1.msra.mxu0 0.0
        %3964 = vmatprep.subr.mxu0 0.0
        %3965 = vmatpush1.msra.mxu0 0.0
        %3966 = vmatprep.subr.mxu0 0.0
        %3967 = vmatpush1.msra.mxu0 0.0
        %3968 = vmatprep.subr.mxu0 0.0
        %3969 = vmatpush1.msra.mxu0 0.0
        %3970 = vmatprep.subr.mxu0 0.0
        %3971 = vmatpush1.msra.mxu0 0.0
        %3972 = vmatprep.subr.mxu0 0.0
        %3973 = vmatpush1.msra.mxu0 0.0
        %3974 = vmatprep.subr.mxu0 0.0
        %3975 = vmatpush1.msra.mxu0 0.0
        %3976 = vmatprep.subr.mxu0 0.0
        %3977 = vmatpush1.msra.mxu0 0.0
        %3978 = vmatprep.subr.mxu0 0.0
        %3979 = vmatpush1.msra.mxu0 0.0
        %3980 = vmatprep.subr.mxu0 0.0
        %3981 = vmatpush1.msra.mxu0 0.0
        %3982 = vmatprep.subr.mxu0 0.0
        %3983 = vmatpush1.msra.mxu0 0.0
        %3984 = vmatprep.subr.mxu0 0.0
        %3985 = vmatpush1.msra.mxu0 0.0
        %3986 = vmatprep.subr.mxu0 0.0
        %3987 = vmatpush1.msra.mxu0 0.0
        %3988 = vmatprep.subr.mxu0 0.0
        %3989 = vmatpush1.msra.mxu0 0.0
        %3990 = vmatprep.subr.mxu0 0.0
        %3991 = vmatpush1.msra.mxu0 0.0
        %3992 = vmatprep.subr.mxu0 0.0
        %3993 = vmatpush1.msra.mxu0 0.0
        %3994 = vmatprep.subr.mxu0 0.0
        %3995 = vmatpush1.msra.mxu0 0.0
        %3996 = vmatprep.subr.mxu0 0.0
        %3997 = vmatpush1.msra.mxu0 0.0
        %3998 = vmatprep.subr.mxu0 0.0
        %3999 = vmatpush1.msra.mxu0 0.0
        %4000 = vmatprep.subr.mxu0 0.0
        %4001 = vmatpush1.msra.mxu0 0.0
        %4002 = vmatprep.subr.mxu0 0.0
        %4003 = vmatpush1.msra.mxu0 0.0
        %4004 = vmatprep.subr.mxu0 0.0
        %4005 = vmatpush1.msra.mxu0 0.0
        %4006 = vmatprep.subr.mxu0 0.0
        %4007 = vmatpush1.msra.mxu0 0.0
        %4008 = vmatprep.subr.mxu0 0.0
        %4009 = vmatpush1.msra.mxu0 0.0
        %4010 = vmatprep.subr.mxu0 0.0
        %4011 = vmatpush1.msra.mxu0 0.0
        %4012 = vmatprep.subr.mxu0 0.0
        %4013 = vmatpush1.msra.mxu0 0.0
        %4014 = vmatprep.subr.mxu0 0.0
        %4015 = vmatpush1.msra.mxu0 0.0
        %4016 = vmatprep.mubr.f32.mxu0 0.0
        %4017 = vmatmul.mubr.f32.gmra.mrb[0].mxu0 %v3780
        %v4018 = vpop.f32.mrb[0].mxu0
        %v4019 = vadd.f32 0.0, %v4018
        %v4020 = vpop.f32.mrb[0].mxu0
        %v4021 = vadd.f32 0.0, %v4020
        %4022 = vdwg.mxu0
        %4023 = vmatprep.subr.mxu0 %v3796
        %4024 = vmatpush1.msra.mxu0 %v3794
        %4025 = vmatprep.subr.mxu0 0.0
        %4026 = vmatpush1.msra.mxu0 0.0
        %4027 = vmatprep.subr.mxu0 0.0
        %4028 = vmatpush1.msra.mxu0 0.0
        %4029 = vmatprep.subr.mxu0 0.0
        %4030 = vmatpush1.msra.mxu0 0.0
        %4031 = vmatprep.subr.mxu0 0.0
        %4032 = vmatpush1.msra.mxu0 0.0
        %4033 = vmatprep.subr.mxu0 0.0
        %4034 = vmatpush1.msra.mxu0 0.0
        %4035 = vmatprep.subr.mxu0 0.0
        %4036 = vmatpush1.msra.mxu0 0.0
        %4037 = vmatprep.subr.mxu0 0.0
        %4038 = vmatpush1.msra.mxu0 0.0
        %4039 = vmatprep.subr.mxu0 0.0
        %4040 = vmatpush1.msra.mxu0 0.0
        %4041 = vmatprep.subr.mxu0 0.0
        %4042 = vmatpush1.msra.mxu0 0.0
        %4043 = vmatprep.subr.mxu0 0.0
        %4044 = vmatpush1.msra.mxu0 0.0
        %4045 = vmatprep.subr.mxu0 0.0
        %4046 = vmatpush1.msra.mxu0 0.0
        %4047 = vmatprep.subr.mxu0 0.0
        %4048 = vmatpush1.msra.mxu0 0.0
        %4049 = vmatprep.subr.mxu0 0.0
        %4050 = vmatpush1.msra.mxu0 0.0
        %4051 = vmatprep.subr.mxu0 0.0
        %4052 = vmatpush1.msra.mxu0 0.0
        %4053 = vmatprep.subr.mxu0 0.0
        %4054 = vmatpush1.msra.mxu0 0.0
        %4055 = vmatprep.subr.mxu0 0.0
        %4056 = vmatpush1.msra.mxu0 0.0
        %4057 = vmatprep.subr.mxu0 0.0
        %4058 = vmatpush1.msra.mxu0 0.0
        %4059 = vmatprep.subr.mxu0 0.0
        %4060 = vmatpush1.msra.mxu0 0.0
        %4061 = vmatprep.subr.mxu0 0.0
        %4062 = vmatpush1.msra.mxu0 0.0
        %4063 = vmatprep.subr.mxu0 0.0
        %4064 = vmatpush1.msra.mxu0 0.0
        %4065 = vmatprep.subr.mxu0 0.0
        %4066 = vmatpush1.msra.mxu0 0.0
        %4067 = vmatprep.subr.mxu0 0.0
        %4068 = vmatpush1.msra.mxu0 0.0
        %4069 = vmatprep.subr.mxu0 0.0
        %4070 = vmatpush1.msra.mxu0 0.0
        %4071 = vmatprep.subr.mxu0 0.0
        %4072 = vmatpush1.msra.mxu0 0.0
        %4073 = vmatprep.subr.mxu0 0.0
        %4074 = vmatpush1.msra.mxu0 0.0
        %4075 = vmatprep.subr.mxu0 0.0
        %4076 = vmatpush1.msra.mxu0 0.0
        %4077 = vmatprep.subr.mxu0 0.0
        %4078 = vmatpush1.msra.mxu0 0.0
        %4079 = vmatprep.subr.mxu0 0.0
        %4080 = vmatpush1.msra.mxu0 0.0
        %4081 = vmatprep.subr.mxu0 0.0
        %4082 = vmatpush1.msra.mxu0 0.0
        %4083 = vmatprep.subr.mxu0 0.0
        %4084 = vmatpush1.msra.mxu0 0.0
        %4085 = vmatprep.subr.mxu0 0.0
        %4086 = vmatpush1.msra.mxu0 0.0
        %4087 = vmatprep.mubr.f32.mxu0 0.0
        %4088 = vmatmul.mubr.f32.gmra.mrb[0].mxu0 %v3780
        %v4089 = vpop.f32.mrb[0].mxu0
        %v4090 = vadd.f32 0.0, %v4089
        %v4091 = vpop.f32.mrb[0].mxu0
        %v4092 = vadd.f32 0.0, %v4091
        %4093 = vdwg.mxu0
        %4094 = vmatprep.subr.mxu0 %v3800
        %4095 = vmatpush1.msra.mxu0 %v3798
        %4096 = vmatprep.subr.mxu0 0.0
        %4097 = vmatpush1.msra.mxu0 0.0
        %4098 = vmatprep.subr.mxu0 0.0
        %4099 = vmatpush1.msra.mxu0 0.0
        %4100 = vmatprep.subr.mxu0 0.0
        %4101 = vmatpush1.msra.mxu0 0.0
        %4102 = vmatprep.subr.mxu0 0.0
        %4103 = vmatpush1.msra.mxu0 0.0
        %4104 = vmatprep.subr.mxu0 0.0
        %4105 = vmatpush1.msra.mxu0 0.0
        %4106 = vmatprep.subr.mxu0 0.0
        %4107 = vmatpush1.msra.mxu0 0.0
        %4108 = vmatprep.subr.mxu0 0.0
        %4109 = vmatpush1.msra.mxu0 0.0
        %4110 = vmatprep.subr.mxu0 0.0
        %4111 = vmatpush1.msra.mxu0 0.0
        %4112 = vmatprep.subr.mxu0 0.0
        %4113 = vmatpush1.msra.mxu0 0.0
        %4114 = vmatprep.subr.mxu0 0.0
        %4115 = vmatpush1.msra.mxu0 0.0
        %4116 = vmatprep.subr.mxu0 0.0
        %4117 = vmatpush1.msra.mxu0 0.0
        %4118 = vmatprep.subr.mxu0 0.0
        %4119 = vmatpush1.msra.mxu0 0.0
        %4120 = vmatprep.subr.mxu0 0.0
        %4121 = vmatpush1.msra.mxu0 0.0
        %4122 = vmatprep.subr.mxu0 0.0
        %4123 = vmatpush1.msra.mxu0 0.0
        %4124 = vmatprep.subr.mxu0 0.0
        %4125 = vmatpush1.msra.mxu0 0.0
        %4126 = vmatprep.subr.mxu0 0.0
        %4127 = vmatpush1.msra.mxu0 0.0
        %4128 = vmatprep.subr.mxu0 0.0
        %4129 = vmatpush1.msra.mxu0 0.0
        %4130 = vmatprep.subr.mxu0 0.0
        %4131 = vmatpush1.msra.mxu0 0.0
        %4132 = vmatprep.subr.mxu0 0.0
        %4133 = vmatpush1.msra.mxu0 0.0
        %4134 = vmatprep.subr.mxu0 0.0
        %4135 = vmatpush1.msra.mxu0 0.0
        %4136 = vmatprep.subr.mxu0 0.0
        %4137 = vmatpush1.msra.mxu0 0.0
        %4138 = vmatprep.subr.mxu0 0.0
        %4139 = vmatpush1.msra.mxu0 0.0
        %4140 = vmatprep.subr.mxu0 0.0
        %4141 = vmatpush1.msra.mxu0 0.0
        %4142 = vmatprep.subr.mxu0 0.0
        %4143 = vmatpush1.msra.mxu0 0.0
        %4144 = vmatprep.subr.mxu0 0.0
        %4145 = vmatpush1.msra.mxu0 0.0
        %4146 = vmatprep.subr.mxu0 0.0
        %4147 = vmatpush1.msra.mxu0 0.0
        %4148 = vmatprep.subr.mxu0 0.0
        %4149 = vmatpush1.msra.mxu0 0.0
        %4150 = vmatprep.subr.mxu0 0.0
        %4151 = vmatpush1.msra.mxu0 0.0
        %4152 = vmatprep.subr.mxu0 0.0
        %4153 = vmatpush1.msra.mxu0 0.0
        %4154 = vmatprep.subr.mxu0 0.0
        %4155 = vmatpush1.msra.mxu0 0.0
        %4156 = vmatprep.subr.mxu0 0.0
        %4157 = vmatpush1.msra.mxu0 0.0
        %4158 = vmatprep.mubr.f32.mxu0 0.0
        %4159 = vmatmul.mubr.f32.gmra.mrb[0].mxu0 %v3780
        %v4160 = vpop.f32.mrb[0].mxu0
        %v4161 = vadd.f32 0.0, %v4160
        %v4162 = vpop.f32.mrb[0].mxu0
        %v4163 = vadd.f32 0.0, %v4162
        %4164 = vdwg.mxu0
        %4165 = vmatprep.subr.mxu0 %v3804
        %4166 = vmatpush1.msra.mxu0 %v3802
        %4167 = vmatprep.subr.mxu0 0.0
        %4168 = vmatpush1.msra.mxu0 0.0
        %4169 = vmatprep.subr.mxu0 0.0
        %4170 = vmatpush1.msra.mxu0 0.0
        %4171 = vmatprep.subr.mxu0 0.0
        %4172 = vmatpush1.msra.mxu0 0.0
        %4173 = vmatprep.subr.mxu0 0.0
        %4174 = vmatpush1.msra.mxu0 0.0
        %4175 = vmatprep.subr.mxu0 0.0
        %4176 = vmatpush1.msra.mxu0 0.0
        %4177 = vmatprep.subr.mxu0 0.0
        %4178 = vmatpush1.msra.mxu0 0.0
        %4179 = vmatprep.subr.mxu0 0.0
        %4180 = vmatpush1.msra.mxu0 0.0
        %4181 = vmatprep.subr.mxu0 0.0
        %4182 = vmatpush1.msra.mxu0 0.0
        %4183 = vmatprep.subr.mxu0 0.0
        %4184 = vmatpush1.msra.mxu0 0.0
        %4185 = vmatprep.subr.mxu0 0.0
        %4186 = vmatpush1.msra.mxu0 0.0
        %4187 = vmatprep.subr.mxu0 0.0
        %4188 = vmatpush1.msra.mxu0 0.0
        %4189 = vmatprep.subr.mxu0 0.0
        %4190 = vmatpush1.msra.mxu0 0.0
        %4191 = vmatprep.subr.mxu0 0.0
        %4192 = vmatpush1.msra.mxu0 0.0
        %4193 = vmatprep.subr.mxu0 0.0
        %4194 = vmatpush1.msra.mxu0 0.0
        %4195 = vmatprep.subr.mxu0 0.0
        %4196 = vmatpush1.msra.mxu0 0.0
        %4197 = vmatprep.subr.mxu0 0.0
        %4198 = vmatpush1.msra.mxu0 0.0
        %4199 = vmatprep.subr.mxu0 0.0
        %4200 = vmatpush1.msra.mxu0 0.0
        %4201 = vmatprep.subr.mxu0 0.0
        %4202 = vmatpush1.msra.mxu0 0.0
        %4203 = vmatprep.subr.mxu0 0.0
        %4204 = vmatpush1.msra.mxu0 0.0
        %4205 = vmatprep.subr.mxu0 0.0
        %4206 = vmatpush1.msra.mxu0 0.0
        %4207 = vmatprep.subr.mxu0 0.0
        %4208 = vmatpush1.msra.mxu0 0.0
        %4209 = vmatprep.subr.mxu0 0.0
        %4210 = vmatpush1.msra.mxu0 0.0
        %4211 = vmatprep.subr.mxu0 0.0
        %4212 = vmatpush1.msra.mxu0 0.0
        %4213 = vmatprep.subr.mxu0 0.0
        %4214 = vmatpush1.msra.mxu0 0.0
        %4215 = vmatprep.subr.mxu0 0.0
        %4216 = vmatpush1.msra.mxu0 0.0
        %4217 = vmatprep.subr.mxu0 0.0
        %4218 = vmatpush1.msra.mxu0 0.0
        %4219 = vmatprep.subr.mxu0 0.0
        %4220 = vmatpush1.msra.mxu0 0.0
        %4221 = vmatprep.subr.mxu0 0.0
        %4222 = vmatpush1.msra.mxu0 0.0
        %4223 = vmatprep.subr.mxu0 0.0
        %4224 = vmatpush1.msra.mxu0 0.0
        %4225 = vmatprep.subr.mxu0 0.0
        %4226 = vmatpush1.msra.mxu0 0.0
        %4227 = vmatprep.subr.mxu0 0.0
        %4228 = vmatpush1.msra.mxu0 0.0
        %4229 = vmatprep.mubr.f32.mxu0 0.0
        %4230 = vmatmul.mubr.f32.gmra.mrb[0].mxu0 %v3780
        %v4231 = vpop.f32.mrb[0].mxu0
        %v4232 = vadd.f32 0.0, %v4231
        %v4233 = vpop.f32.mrb[0].mxu0
        %v4234 = vadd.f32 0.0, %v4233
        %4235 = vdwg.mxu0
        %4236 = vmatprep.subr.mxu0 %v3808
        %4237 = vmatpush1.msra.mxu0 %v3806
        %4238 = vmatprep.subr.mxu0 0.0
        %4239 = vmatpush1.msra.mxu0 0.0
        %4240 = vmatprep.subr.mxu0 0.0
        %4241 = vmatpush1.msra.mxu0 0.0
        %4242 = vmatprep.subr.mxu0 0.0
        %4243 = vmatpush1.msra.mxu0 0.0
        %4244 = vmatprep.subr.mxu0 0.0
        %4245 = vmatpush1.msra.mxu0 0.0
        %4246 = vmatprep.subr.mxu0 0.0
        %4247 = vmatpush1.msra.mxu0 0.0
        %4248 = vmatprep.subr.mxu0 0.0
        %4249 = vmatpush1.msra.mxu0 0.0
        %4250 = vmatprep.subr.mxu0 0.0
        %4251 = vmatpush1.msra.mxu0 0.0
        %4252 = vmatprep.subr.mxu0 0.0
        %4253 = vmatpush1.msra.mxu0 0.0
        %4254 = vmatprep.subr.mxu0 0.0
        %4255 = vmatpush1.msra.mxu0 0.0
        %4256 = vmatprep.subr.mxu0 0.0
        %4257 = vmatpush1.msra.mxu0 0.0
        %4258 = vmatprep.subr.mxu0 0.0
        %4259 = vmatpush1.msra.mxu0 0.0
        %4260 = vmatprep.subr.mxu0 0.0
        %4261 = vmatpush1.msra.mxu0 0.0
        %4262 = vmatprep.subr.mxu0 0.0
        %4263 = vmatpush1.msra.mxu0 0.0
        %4264 = vmatprep.subr.mxu0 0.0
        %4265 = vmatpush1.msra.mxu0 0.0
        %4266 = vmatprep.subr.mxu0 0.0
        %4267 = vmatpush1.msra.mxu0 0.0
        %4268 = vmatprep.subr.mxu0 0.0
        %4269 = vmatpush1.msra.mxu0 0.0
        %4270 = vmatprep.subr.mxu0 0.0
        %4271 = vmatpush1.msra.mxu0 0.0
        %4272 = vmatprep.subr.mxu0 0.0
        %4273 = vmatpush1.msra.mxu0 0.0
        %4274 = vmatprep.subr.mxu0 0.0
        %4275 = vmatpush1.msra.mxu0 0.0
        %4276 = vmatprep.subr.mxu0 0.0
        %4277 = vmatpush1.msra.mxu0 0.0
        %4278 = vmatprep.subr.mxu0 0.0
        %4279 = vmatpush1.msra.mxu0 0.0
        %4280 = vmatprep.subr.mxu0 0.0
        %4281 = vmatpush1.msra.mxu0 0.0
        %4282 = vmatprep.subr.mxu0 0.0
        %4283 = vmatpush1.msra.mxu0 0.0
        %4284 = vmatprep.subr.mxu0 0.0
        %4285 = vmatpush1.msra.mxu0 0.0
        %4286 = vmatprep.subr.mxu0 0.0
        %4287 = vmatpush1.msra.mxu0 0.0
        %4288 = vmatprep.subr.mxu0 0.0
        %4289 = vmatpush1.msra.mxu0 0.0
        %4290 = vmatprep.subr.mxu0 0.0
        %4291 = vmatpush1.msra.mxu0 0.0
        %4292 = vmatprep.subr.mxu0 0.0
        %4293 = vmatpush1.msra.mxu0 0.0
        %4294 = vmatprep.subr.mxu0 0.0
        %4295 = vmatpush1.msra.mxu0 0.0
        %4296 = vmatprep.subr.mxu0 0.0
        %4297 = vmatpush1.msra.mxu0 0.0
        %4298 = vmatprep.subr.mxu0 0.0
        %4299 = vmatpush1.msra.mxu0 0.0
        %4300 = vmatprep.mubr.f32.mxu0 0.0
        %4301 = vmatmul.mubr.f32.gmra.mrb[0].mxu0 %v3780
        %v4302 = vpop.f32.mrb[0].mxu0
        %v4303 = vadd.f32 0.0, %v4302
        %v4304 = vpop.f32.mrb[0].mxu0
        %v4305 = vadd.f32 0.0, %v4304
        %4306 = vdwg.mxu0
        %v4307 = vadd.f32 %v3742, %v3877
        %v4308 = vadd.f32 %v3743, %v3879
        %v4309 = vadd.f32 %v3744, %v3948
        %v4310 = vadd.f32 %v3745, %v3950
        %v4311 = vadd.f32 %v3746, %v4019
        %v4312 = vadd.f32 %v3747, %v4021
        %v4313 = vadd.f32 %v3748, %v4090
        %v4314 = vadd.f32 %v3749, %v4092
        %v4315 = vadd.f32 %v3750, %v4161
        %v4316 = vadd.f32 %v3751, %v4163
        %v4317 = vadd.f32 %v3752, %v4232
        %v4318 = vadd.f32 %v3753, %v4234
        %v4319 = vadd.f32 %v3754, %v4303
        %v4320 = vadd.f32 %v3755, %v4305
        %v4321 = vld [vmem:[%s216 + $0x8] sm:$0xff]
        %v4322 = vld [vmem:[%s216 + $0x10] sm:$0xff]
        %v4323 = vld [vmem:[%s216 + $0x18] sm:$0xff]
        %v4324 = vld [vmem:[%s216 + $0x20] sm:$0xff]
        %v4325 = vld [vmem:[%s216 + $0x28] sm:$0xff]
        %v4326 = vld [vmem:[%s216 + $0x30] sm:$0xff]
        %v4327 = vld [vmem:[%s216 + $0x38] sm:$0xff]
        %v4328 = vld [vmem:[%s216 + $0x40] sm:$0xf]
        %s4329 = scalar_lea.vmem %s220, 56
        %v4330 = vld [vmem:[%s4329] sm:$0xff]
        %v4339 = vcombine.high %v4321, %v4321
        %v4340 = vcombine.high %v4322, %v4322
        %v4341 = vcombine.high %v4323, %v4323
        %v4342 = vcombine.high %v4324, %v4324
        %v4343 = vcombine.high %v4325, %v4325
        %v4344 = vcombine.high %v4326, %v4326
        %v4345 = vcombine.high %v4327, %v4327
        %4346 = vrot.lane.b32.xlu0 %v4321, 127
        %v4347 = vpop.permute.xlu0 %4346
        %4348 = vrot.lane.b32.xlu0 %v4339, 127
        %v4349 = vpop.permute.xlu0 %4348
        %4350 = vrot.lane.b32.xlu0 %v4322, 127
        %v4351 = vpop.permute.xlu0 %4350
        %4352 = vrot.lane.b32.xlu0 %v4340, 127
        %v4353 = vpop.permute.xlu0 %4352
        %4354 = vrot.lane.b32.xlu0 %v4323, 127
        %v4355 = vpop.permute.xlu0 %4354
        %4356 = vrot.lane.b32.xlu0 %v4341, 127
        %v4357 = vpop.permute.xlu0 %4356
        %4358 = vrot.lane.b32.xlu0 %v4324, 127
        %v4359 = vpop.permute.xlu0 %4358
        %4360 = vrot.lane.b32.xlu0 %v4342, 127
        %v4361 = vpop.permute.xlu0 %4360
        %4362 = vrot.lane.b32.xlu0 %v4325, 127
        %v4363 = vpop.permute.xlu0 %4362
        %4364 = vrot.lane.b32.xlu0 %v4343, 127
        %v4365 = vpop.permute.xlu0 %4364
        %4366 = vrot.lane.b32.xlu0 %v4326, 127
        %v4367 = vpop.permute.xlu0 %4366
        %4368 = vrot.lane.b32.xlu0 %v4344, 127
        %v4369 = vpop.permute.xlu0 %4368
        %4370 = vrot.lane.b32.xlu0 %v4327, 127
        %v4371 = vpop.permute.xlu0 %4370
        %4372 = vrot.lane.b32.xlu0 %v4345, 127
        %v4373 = vpop.permute.xlu0 %4372
        %4374 = vrot.lane.b32.xlu0 %v4328, 127
        %v4375 = vpop.permute.xlu0 %4374
        %v4376 = vsel %vm284, %v4347, %v4349
        %v4377 = vsel %vm284, %v4349, %v4351
        %v4378 = vsel %vm284, %v4351, %v4353
        %v4379 = vsel %vm284, %v4353, %v4355
        %v4380 = vsel %vm284, %v4355, %v4357
        %v4381 = vsel %vm284, %v4357, %v4359
        %v4382 = vsel %vm284, %v4359, %v4361
        %v4383 = vsel %vm284, %v4361, %v4363
        %v4384 = vsel %vm284, %v4363, %v4365
        %v4385 = vsel %vm284, %v4365, %v4367
        %v4386 = vsel %vm284, %v4367, %v4369
        %v4387 = vsel %vm284, %v4369, %v4371
        %v4388 = vsel %vm284, %v4371, %v4373
        %v4389 = vsel %vm284, %v4373, %v4375
        %v4391 = vsel %vm299, %v4330, 0
        %v4393 = vsel %vm303, %v4376, 0
        %v4395 = vsel %vm303, %v4377, 0
        %v4397 = vsel %vm303, %v4378, 0
        %v4399 = vsel %vm303, %v4379, 0
        %v4401 = vsel %vm303, %v4380, 0
        %v4403 = vsel %vm303, %v4381, 0
        %v4405 = vsel %vm303, %v4382, 0
        %v4407 = vsel %vm303, %v4383, 0
        %v4409 = vsel %vm303, %v4384, 0
        %v4411 = vsel %vm303, %v4385, 0
        %v4413 = vsel %vm303, %v4386, 0
        %v4415 = vsel %vm303, %v4387, 0
        %v4417 = vsel %vm303, %v4388, 0
        %v4419 = vsel %vm303, %v4389, 0
        %4421 = vmatprep.subr.mxu0 %v4395
        %4422 = vmatpush1.msra.mxu0 %v4393
        %4423 = vmatprep.subr.mxu0 0.0
        %4424 = vmatpush1.msra.mxu0 0.0
        %4425 = vmatprep.subr.mxu0 0.0
        %4426 = vmatpush1.msra.mxu0 0.0
        %4427 = vmatprep.subr.mxu0 0.0
        %4428 = vmatpush1.msra.mxu0 0.0
        %4429 = vmatprep.subr.mxu0 0.0
        %4430 = vmatpush1.msra.mxu0 0.0
        %4431 = vmatprep.subr.mxu0 0.0
        %4432 = vmatpush1.msra.mxu0 0.0
        %4433 = vmatprep.subr.mxu0 0.0
        %4434 = vmatpush1.msra.mxu0 0.0
        %4435 = vmatprep.subr.mxu0 0.0
        %4436 = vmatpush1.msra.mxu0 0.0
        %4437 = vmatprep.subr.mxu0 0.0
        %4438 = vmatpush1.msra.mxu0 0.0
        %4439 = vmatprep.subr.mxu0 0.0
        %4440 = vmatpush1.msra.mxu0 0.0
        %4441 = vmatprep.subr.mxu0 0.0
        %4442 = vmatpush1.msra.mxu0 0.0
        %4443 = vmatprep.subr.mxu0 0.0
        %4444 = vmatpush1.msra.mxu0 0.0
        %4445 = vmatprep.subr.mxu0 0.0
        %4446 = vmatpush1.msra.mxu0 0.0
        %4447 = vmatprep.subr.mxu0 0.0
        %4448 = vmatpush1.msra.mxu0 0.0
        %4449 = vmatprep.subr.mxu0 0.0
        %4450 = vmatpush1.msra.mxu0 0.0
        %4451 = vmatprep.subr.mxu0 0.0
        %4452 = vmatpush1.msra.mxu0 0.0
        %4453 = vmatprep.subr.mxu0 0.0
        %4454 = vmatpush1.msra.mxu0 0.0
        %4455 = vmatprep.subr.mxu0 0.0
        %4456 = vmatpush1.msra.mxu0 0.0
        %4457 = vmatprep.subr.mxu0 0.0
        %4458 = vmatpush1.msra.mxu0 0.0
        %4459 = vmatprep.subr.mxu0 0.0
        %4460 = vmatpush1.msra.mxu0 0.0
        %4461 = vmatprep.subr.mxu0 0.0
        %4462 = vmatpush1.msra.mxu0 0.0
        %4463 = vmatprep.subr.mxu0 0.0
        %4464 = vmatpush1.msra.mxu0 0.0
        %4465 = vmatprep.subr.mxu0 0.0
        %4466 = vmatpush1.msra.mxu0 0.0
        %4467 = vmatprep.subr.mxu0 0.0
        %4468 = vmatpush1.msra.mxu0 0.0
        %4469 = vmatprep.subr.mxu0 0.0
        %4470 = vmatpush1.msra.mxu0 0.0
        %4471 = vmatprep.subr.mxu0 0.0
        %4472 = vmatpush1.msra.mxu0 0.0
        %4473 = vmatprep.subr.mxu0 0.0
        %4474 = vmatpush1.msra.mxu0 0.0
        %4475 = vmatprep.subr.mxu0 0.0
        %4476 = vmatpush1.msra.mxu0 0.0
        %4477 = vmatprep.subr.mxu0 0.0
        %4478 = vmatpush1.msra.mxu0 0.0
        %4479 = vmatprep.subr.mxu0 0.0
        %4480 = vmatpush1.msra.mxu0 0.0
        %4481 = vmatprep.subr.mxu0 0.0
        %4482 = vmatpush1.msra.mxu0 0.0
        %4483 = vmatprep.subr.mxu0 0.0
        %4484 = vmatpush1.msra.mxu0 0.0
        %4485 = vmatprep.mubr.f32.mxu0 0.0
        %4486 = vmatmul.mubr.f32.gmra.mrb[0].mxu0 %v4391
        %v4487 = vpop.f32.mrb[0].mxu0
        %v4488 = vadd.f32 0.0, %v4487
        %v4489 = vpop.f32.mrb[0].mxu0
        %v4490 = vadd.f32 0.0, %v4489
        %4491 = vdwg.mxu0
        %4492 = vmatprep.subr.mxu0 %v4399
        %4493 = vmatpush1.msra.mxu0 %v4397
        %4494 = vmatprep.subr.mxu0 0.0
        %4495 = vmatpush1.msra.mxu0 0.0
        %4496 = vmatprep.subr.mxu0 0.0
        %4497 = vmatpush1.msra.mxu0 0.0
        %4498 = vmatprep.subr.mxu0 0.0
        %4499 = vmatpush1.msra.mxu0 0.0
        %4500 = vmatprep.subr.mxu0 0.0
        %4501 = vmatpush1.msra.mxu0 0.0
        %4502 = vmatprep.subr.mxu0 0.0
        %4503 = vmatpush1.msra.mxu0 0.0
        %4504 = vmatprep.subr.mxu0 0.0
        %4505 = vmatpush1.msra.mxu0 0.0
        %4506 = vmatprep.subr.mxu0 0.0
        %4507 = vmatpush1.msra.mxu0 0.0
        %4508 = vmatprep.subr.mxu0 0.0
        %4509 = vmatpush1.msra.mxu0 0.0
        %4510 = vmatprep.subr.mxu0 0.0
        %4511 = vmatpush1.msra.mxu0 0.0
        %4512 = vmatprep.subr.mxu0 0.0
        %4513 = vmatpush1.msra.mxu0 0.0
        %4514 = vmatprep.subr.mxu0 0.0
        %4515 = vmatpush1.msra.mxu0 0.0
        %4516 = vmatprep.subr.mxu0 0.0
        %4517 = vmatpush1.msra.mxu0 0.0
        %4518 = vmatprep.subr.mxu0 0.0
        %4519 = vmatpush1.msra.mxu0 0.0
        %4520 = vmatprep.subr.mxu0 0.0
        %4521 = vmatpush1.msra.mxu0 0.0
        %4522 = vmatprep.subr.mxu0 0.0
        %4523 = vmatpush1.msra.mxu0 0.0
        %4524 = vmatprep.subr.mxu0 0.0
        %4525 = vmatpush1.msra.mxu0 0.0
        %4526 = vmatprep.subr.mxu0 0.0
        %4527 = vmatpush1.msra.mxu0 0.0
        %4528 = vmatprep.subr.mxu0 0.0
        %4529 = vmatpush1.msra.mxu0 0.0
        %4530 = vmatprep.subr.mxu0 0.0
        %4531 = vmatpush1.msra.mxu0 0.0
        %4532 = vmatprep.subr.mxu0 0.0
        %4533 = vmatpush1.msra.mxu0 0.0
        %4534 = vmatprep.subr.mxu0 0.0
        %4535 = vmatpush1.msra.mxu0 0.0
        %4536 = vmatprep.subr.mxu0 0.0
        %4537 = vmatpush1.msra.mxu0 0.0
        %4538 = vmatprep.subr.mxu0 0.0
        %4539 = vmatpush1.msra.mxu0 0.0
        %4540 = vmatprep.subr.mxu0 0.0
        %4541 = vmatpush1.msra.mxu0 0.0
        %4542 = vmatprep.subr.mxu0 0.0
        %4543 = vmatpush1.msra.mxu0 0.0
        %4544 = vmatprep.subr.mxu0 0.0
        %4545 = vmatpush1.msra.mxu0 0.0
        %4546 = vmatprep.subr.mxu0 0.0
        %4547 = vmatpush1.msra.mxu0 0.0
        %4548 = vmatprep.subr.mxu0 0.0
        %4549 = vmatpush1.msra.mxu0 0.0
        %4550 = vmatprep.subr.mxu0 0.0
        %4551 = vmatpush1.msra.mxu0 0.0
        %4552 = vmatprep.subr.mxu0 0.0
        %4553 = vmatpush1.msra.mxu0 0.0
        %4554 = vmatprep.subr.mxu0 0.0
        %4555 = vmatpush1.msra.mxu0 0.0
        %4556 = vmatprep.mubr.f32.mxu0 0.0
        %4557 = vmatmul.mubr.f32.gmra.mrb[0].mxu0 %v4391
        %v4558 = vpop.f32.mrb[0].mxu0
        %v4559 = vadd.f32 0.0, %v4558
        %v4560 = vpop.f32.mrb[0].mxu0
        %v4561 = vadd.f32 0.0, %v4560
        %4562 = vdwg.mxu0
        %4563 = vmatprep.subr.mxu0 %v4403
        %4564 = vmatpush1.msra.mxu0 %v4401
        %4565 = vmatprep.subr.mxu0 0.0
        %4566 = vmatpush1.msra.mxu0 0.0
        %4567 = vmatprep.subr.mxu0 0.0
        %4568 = vmatpush1.msra.mxu0 0.0
        %4569 = vmatprep.subr.mxu0 0.0
        %4570 = vmatpush1.msra.mxu0 0.0
        %4571 = vmatprep.subr.mxu0 0.0
        %4572 = vmatpush1.msra.mxu0 0.0
        %4573 = vmatprep.subr.mxu0 0.0
        %4574 = vmatpush1.msra.mxu0 0.0
        %4575 = vmatprep.subr.mxu0 0.0
        %4576 = vmatpush1.msra.mxu0 0.0
        %4577 = vmatprep.subr.mxu0 0.0
        %4578 = vmatpush1.msra.mxu0 0.0
        %4579 = vmatprep.subr.mxu0 0.0
        %4580 = vmatpush1.msra.mxu0 0.0
        %4581 = vmatprep.subr.mxu0 0.0
        %4582 = vmatpush1.msra.mxu0 0.0
        %4583 = vmatprep.subr.mxu0 0.0
        %4584 = vmatpush1.msra.mxu0 0.0
        %4585 = vmatprep.subr.mxu0 0.0
        %4586 = vmatpush1.msra.mxu0 0.0
        %4587 = vmatprep.subr.mxu0 0.0
        %4588 = vmatpush1.msra.mxu0 0.0
        %4589 = vmatprep.subr.mxu0 0.0
        %4590 = vmatpush1.msra.mxu0 0.0
        %4591 = vmatprep.subr.mxu0 0.0
        %4592 = vmatpush1.msra.mxu0 0.0
        %4593 = vmatprep.subr.mxu0 0.0
        %4594 = vmatpush1.msra.mxu0 0.0
        %4595 = vmatprep.subr.mxu0 0.0
        %4596 = vmatpush1.msra.mxu0 0.0
        %4597 = vmatprep.subr.mxu0 0.0
        %4598 = vmatpush1.msra.mxu0 0.0
        %4599 = vmatprep.subr.mxu0 0.0
        %4600 = vmatpush1.msra.mxu0 0.0
        %4601 = vmatprep.subr.mxu0 0.0
        %4602 = vmatpush1.msra.mxu0 0.0
        %4603 = vmatprep.subr.mxu0 0.0
        %4604 = vmatpush1.msra.mxu0 0.0
        %4605 = vmatprep.subr.mxu0 0.0
        %4606 = vmatpush1.msra.mxu0 0.0
        %4607 = vmatprep.subr.mxu0 0.0
        %4608 = vmatpush1.msra.mxu0 0.0
        %4609 = vmatprep.subr.mxu0 0.0
        %4610 = vmatpush1.msra.mxu0 0.0
        %4611 = vmatprep.subr.mxu0 0.0
        %4612 = vmatpush1.msra.mxu0 0.0
        %4613 = vmatprep.subr.mxu0 0.0
        %4614 = vmatpush1.msra.mxu0 0.0
        %4615 = vmatprep.subr.mxu0 0.0
        %4616 = vmatpush1.msra.mxu0 0.0
        %4617 = vmatprep.subr.mxu0 0.0
        %4618 = vmatpush1.msra.mxu0 0.0
        %4619 = vmatprep.subr.mxu0 0.0
        %4620 = vmatpush1.msra.mxu0 0.0
        %4621 = vmatprep.subr.mxu0 0.0
        %4622 = vmatpush1.msra.mxu0 0.0
        %4623 = vmatprep.subr.mxu0 0.0
        %4624 = vmatpush1.msra.mxu0 0.0
        %4625 = vmatprep.subr.mxu0 0.0
        %4626 = vmatpush1.msra.mxu0 0.0
        %4627 = vmatprep.mubr.f32.mxu0 0.0
        %4628 = vmatmul.mubr.f32.gmra.mrb[0].mxu0 %v4391
        %v4629 = vpop.f32.mrb[0].mxu0
        %v4630 = vadd.f32 0.0, %v4629
        %v4631 = vpop.f32.mrb[0].mxu0
        %v4632 = vadd.f32 0.0, %v4631
        %4633 = vdwg.mxu0
        %4634 = vmatprep.subr.mxu0 %v4407
        %4635 = vmatpush1.msra.mxu0 %v4405
        %4636 = vmatprep.subr.mxu0 0.0
        %4637 = vmatpush1.msra.mxu0 0.0
        %4638 = vmatprep.subr.mxu0 0.0
        %4639 = vmatpush1.msra.mxu0 0.0
        %4640 = vmatprep.subr.mxu0 0.0
        %4641 = vmatpush1.msra.mxu0 0.0
        %4642 = vmatprep.subr.mxu0 0.0
        %4643 = vmatpush1.msra.mxu0 0.0
        %4644 = vmatprep.subr.mxu0 0.0
        %4645 = vmatpush1.msra.mxu0 0.0
        %4646 = vmatprep.subr.mxu0 0.0
        %4647 = vmatpush1.msra.mxu0 0.0
        %4648 = vmatprep.subr.mxu0 0.0
        %4649 = vmatpush1.msra.mxu0 0.0
        %4650 = vmatprep.subr.mxu0 0.0
        %4651 = vmatpush1.msra.mxu0 0.0
        %4652 = vmatprep.subr.mxu0 0.0
        %4653 = vmatpush1.msra.mxu0 0.0
        %4654 = vmatprep.subr.mxu0 0.0
        %4655 = vmatpush1.msra.mxu0 0.0
        %4656 = vmatprep.subr.mxu0 0.0
        %4657 = vmatpush1.msra.mxu0 0.0
        %4658 = vmatprep.subr.mxu0 0.0
        %4659 = vmatpush1.msra.mxu0 0.0
        %4660 = vmatprep.subr.mxu0 0.0
        %4661 = vmatpush1.msra.mxu0 0.0
        %4662 = vmatprep.subr.mxu0 0.0
        %4663 = vmatpush1.msra.mxu0 0.0
        %4664 = vmatprep.subr.mxu0 0.0
        %4665 = vmatpush1.msra.mxu0 0.0
        %4666 = vmatprep.subr.mxu0 0.0
        %4667 = vmatpush1.msra.mxu0 0.0
        %4668 = vmatprep.subr.mxu0 0.0
        %4669 = vmatpush1.msra.mxu0 0.0
        %4670 = vmatprep.subr.mxu0 0.0
        %4671 = vmatpush1.msra.mxu0 0.0
        %4672 = vmatprep.subr.mxu0 0.0
        %4673 = vmatpush1.msra.mxu0 0.0
        %4674 = vmatprep.subr.mxu0 0.0
        %4675 = vmatpush1.msra.mxu0 0.0
        %4676 = vmatprep.subr.mxu0 0.0
        %4677 = vmatpush1.msra.mxu0 0.0
        %4678 = vmatprep.subr.mxu0 0.0
        %4679 = vmatpush1.msra.mxu0 0.0
        %4680 = vmatprep.subr.mxu0 0.0
        %4681 = vmatpush1.msra.mxu0 0.0
        %4682 = vmatprep.subr.mxu0 0.0
        %4683 = vmatpush1.msra.mxu0 0.0
        %4684 = vmatprep.subr.mxu0 0.0
        %4685 = vmatpush1.msra.mxu0 0.0
        %4686 = vmatprep.subr.mxu0 0.0
        %4687 = vmatpush1.msra.mxu0 0.0
        %4688 = vmatprep.subr.mxu0 0.0
        %4689 = vmatpush1.msra.mxu0 0.0
        %4690 = vmatprep.subr.mxu0 0.0
        %4691 = vmatpush1.msra.mxu0 0.0
        %4692 = vmatprep.subr.mxu0 0.0
        %4693 = vmatpush1.msra.mxu0 0.0
        %4694 = vmatprep.subr.mxu0 0.0
        %4695 = vmatpush1.msra.mxu0 0.0
        %4696 = vmatprep.subr.mxu0 0.0
        %4697 = vmatpush1.msra.mxu0 0.0
        %4698 = vmatprep.mubr.f32.mxu0 0.0
        %4699 = vmatmul.mubr.f32.gmra.mrb[0].mxu0 %v4391
        %v4700 = vpop.f32.mrb[0].mxu0
        %v4701 = vadd.f32 0.0, %v4700
        %v4702 = vpop.f32.mrb[0].mxu0
        %v4703 = vadd.f32 0.0, %v4702
        %4704 = vdwg.mxu0
        %4705 = vmatprep.subr.mxu0 %v4411
        %4706 = vmatpush1.msra.mxu0 %v4409
        %4707 = vmatprep.subr.mxu0 0.0
        %4708 = vmatpush1.msra.mxu0 0.0
        %4709 = vmatprep.subr.mxu0 0.0
        %4710 = vmatpush1.msra.mxu0 0.0
        %4711 = vmatprep.subr.mxu0 0.0
        %4712 = vmatpush1.msra.mxu0 0.0
        %4713 = vmatprep.subr.mxu0 0.0
        %4714 = vmatpush1.msra.mxu0 0.0
        %4715 = vmatprep.subr.mxu0 0.0
        %4716 = vmatpush1.msra.mxu0 0.0
        %4717 = vmatprep.subr.mxu0 0.0
        %4718 = vmatpush1.msra.mxu0 0.0
        %4719 = vmatprep.subr.mxu0 0.0
        %4720 = vmatpush1.msra.mxu0 0.0
        %4721 = vmatprep.subr.mxu0 0.0
        %4722 = vmatpush1.msra.mxu0 0.0
        %4723 = vmatprep.subr.mxu0 0.0
        %4724 = vmatpush1.msra.mxu0 0.0
        %4725 = vmatprep.subr.mxu0 0.0
        %4726 = vmatpush1.msra.mxu0 0.0
        %4727 = vmatprep.subr.mxu0 0.0
        %4728 = vmatpush1.msra.mxu0 0.0
        %4729 = vmatprep.subr.mxu0 0.0
        %4730 = vmatpush1.msra.mxu0 0.0
        %4731 = vmatprep.subr.mxu0 0.0
        %4732 = vmatpush1.msra.mxu0 0.0
        %4733 = vmatprep.subr.mxu0 0.0
        %4734 = vmatpush1.msra.mxu0 0.0
        %4735 = vmatprep.subr.mxu0 0.0
        %4736 = vmatpush1.msra.mxu0 0.0
        %4737 = vmatprep.subr.mxu0 0.0
        %4738 = vmatpush1.msra.mxu0 0.0
        %4739 = vmatprep.subr.mxu0 0.0
        %4740 = vmatpush1.msra.mxu0 0.0
        %4741 = vmatprep.subr.mxu0 0.0
        %4742 = vmatpush1.msra.mxu0 0.0
        %4743 = vmatprep.subr.mxu0 0.0
        %4744 = vmatpush1.msra.mxu0 0.0
        %4745 = vmatprep.subr.mxu0 0.0
        %4746 = vmatpush1.msra.mxu0 0.0
        %4747 = vmatprep.subr.mxu0 0.0
        %4748 = vmatpush1.msra.mxu0 0.0
        %4749 = vmatprep.subr.mxu0 0.0
        %4750 = vmatpush1.msra.mxu0 0.0
        %4751 = vmatprep.subr.mxu0 0.0
        %4752 = vmatpush1.msra.mxu0 0.0
        %4753 = vmatprep.subr.mxu0 0.0
        %4754 = vmatpush1.msra.mxu0 0.0
        %4755 = vmatprep.subr.mxu0 0.0
        %4756 = vmatpush1.msra.mxu0 0.0
        %4757 = vmatprep.subr.mxu0 0.0
        %4758 = vmatpush1.msra.mxu0 0.0
        %4759 = vmatprep.subr.mxu0 0.0
        %4760 = vmatpush1.msra.mxu0 0.0
        %4761 = vmatprep.subr.mxu0 0.0
        %4762 = vmatpush1.msra.mxu0 0.0
        %4763 = vmatprep.subr.mxu0 0.0
        %4764 = vmatpush1.msra.mxu0 0.0
        %4765 = vmatprep.subr.mxu0 0.0
        %4766 = vmatpush1.msra.mxu0 0.0
        %4767 = vmatprep.subr.mxu0 0.0
        %4768 = vmatpush1.msra.mxu0 0.0
        %4769 = vmatprep.mubr.f32.mxu0 0.0
        %4770 = vmatmul.mubr.f32.gmra.mrb[0].mxu0 %v4391
        %v4771 = vpop.f32.mrb[0].mxu0
        %v4772 = vadd.f32 0.0, %v4771
        %v4773 = vpop.f32.mrb[0].mxu0
        %v4774 = vadd.f32 0.0, %v4773
        %4775 = vdwg.mxu0
        %4776 = vmatprep.subr.mxu0 %v4415
        %4777 = vmatpush1.msra.mxu0 %v4413
        %4778 = vmatprep.subr.mxu0 0.0
        %4779 = vmatpush1.msra.mxu0 0.0
        %4780 = vmatprep.subr.mxu0 0.0
        %4781 = vmatpush1.msra.mxu0 0.0
        %4782 = vmatprep.subr.mxu0 0.0
        %4783 = vmatpush1.msra.mxu0 0.0
        %4784 = vmatprep.subr.mxu0 0.0
        %4785 = vmatpush1.msra.mxu0 0.0
        %4786 = vmatprep.subr.mxu0 0.0
        %4787 = vmatpush1.msra.mxu0 0.0
        %4788 = vmatprep.subr.mxu0 0.0
        %4789 = vmatpush1.msra.mxu0 0.0
        %4790 = vmatprep.subr.mxu0 0.0
        %4791 = vmatpush1.msra.mxu0 0.0
        %4792 = vmatprep.subr.mxu0 0.0
        %4793 = vmatpush1.msra.mxu0 0.0
        %4794 = vmatprep.subr.mxu0 0.0
        %4795 = vmatpush1.msra.mxu0 0.0
        %4796 = vmatprep.subr.mxu0 0.0
        %4797 = vmatpush1.msra.mxu0 0.0
        %4798 = vmatprep.subr.mxu0 0.0
        %4799 = vmatpush1.msra.mxu0 0.0
        %4800 = vmatprep.subr.mxu0 0.0
        %4801 = vmatpush1.msra.mxu0 0.0
        %4802 = vmatprep.subr.mxu0 0.0
        %4803 = vmatpush1.msra.mxu0 0.0
        %4804 = vmatprep.subr.mxu0 0.0
        %4805 = vmatpush1.msra.mxu0 0.0
        %4806 = vmatprep.subr.mxu0 0.0
        %4807 = vmatpush1.msra.mxu0 0.0
        %4808 = vmatprep.subr.mxu0 0.0
        %4809 = vmatpush1.msra.mxu0 0.0
        %4810 = vmatprep.subr.mxu0 0.0
        %4811 = vmatpush1.msra.mxu0 0.0
        %4812 = vmatprep.subr.mxu0 0.0
        %4813 = vmatpush1.msra.mxu0 0.0
        %4814 = vmatprep.subr.mxu0 0.0
        %4815 = vmatpush1.msra.mxu0 0.0
        %4816 = vmatprep.subr.mxu0 0.0
        %4817 = vmatpush1.msra.mxu0 0.0
        %4818 = vmatprep.subr.mxu0 0.0
        %4819 = vmatpush1.msra.mxu0 0.0
        %4820 = vmatprep.subr.mxu0 0.0
        %4821 = vmatpush1.msra.mxu0 0.0
        %4822 = vmatprep.subr.mxu0 0.0
        %4823 = vmatpush1.msra.mxu0 0.0
        %4824 = vmatprep.subr.mxu0 0.0
        %4825 = vmatpush1.msra.mxu0 0.0
        %4826 = vmatprep.subr.mxu0 0.0
        %4827 = vmatpush1.msra.mxu0 0.0
        %4828 = vmatprep.subr.mxu0 0.0
        %4829 = vmatpush1.msra.mxu0 0.0
        %4830 = vmatprep.subr.mxu0 0.0
        %4831 = vmatpush1.msra.mxu0 0.0
        %4832 = vmatprep.subr.mxu0 0.0
        %4833 = vmatpush1.msra.mxu0 0.0
        %4834 = vmatprep.subr.mxu0 0.0
        %4835 = vmatpush1.msra.mxu0 0.0
        %4836 = vmatprep.subr.mxu0 0.0
        %4837 = vmatpush1.msra.mxu0 0.0
        %4838 = vmatprep.subr.mxu0 0.0
        %4839 = vmatpush1.msra.mxu0 0.0
        %4840 = vmatprep.mubr.f32.mxu0 0.0
        %4841 = vmatmul.mubr.f32.gmra.mrb[0].mxu0 %v4391
        %v4842 = vpop.f32.mrb[0].mxu0
        %v4843 = vadd.f32 0.0, %v4842
        %v4844 = vpop.f32.mrb[0].mxu0
        %v4845 = vadd.f32 0.0, %v4844
        %4846 = vdwg.mxu0
        %4847 = vmatprep.subr.mxu0 %v4419
        %4848 = vmatpush1.msra.mxu0 %v4417
        %4849 = vmatprep.subr.mxu0 0.0
        %4850 = vmatpush1.msra.mxu0 0.0
        %4851 = vmatprep.subr.mxu0 0.0
        %4852 = vmatpush1.msra.mxu0 0.0
        %4853 = vmatprep.subr.mxu0 0.0
        %4854 = vmatpush1.msra.mxu0 0.0
        %4855 = vmatprep.subr.mxu0 0.0
        %4856 = vmatpush1.msra.mxu0 0.0
        %4857 = vmatprep.subr.mxu0 0.0
        %4858 = vmatpush1.msra.mxu0 0.0
        %4859 = vmatprep.subr.mxu0 0.0
        %4860 = vmatpush1.msra.mxu0 0.0
        %4861 = vmatprep.subr.mxu0 0.0
        %4862 = vmatpush1.msra.mxu0 0.0
        %4863 = vmatprep.subr.mxu0 0.0
        %4864 = vmatpush1.msra.mxu0 0.0
        %4865 = vmatprep.subr.mxu0 0.0
        %4866 = vmatpush1.msra.mxu0 0.0
        %4867 = vmatprep.subr.mxu0 0.0
        %4868 = vmatpush1.msra.mxu0 0.0
        %4869 = vmatprep.subr.mxu0 0.0
        %4870 = vmatpush1.msra.mxu0 0.0
        %4871 = vmatprep.subr.mxu0 0.0
        %4872 = vmatpush1.msra.mxu0 0.0
        %4873 = vmatprep.subr.mxu0 0.0
        %4874 = vmatpush1.msra.mxu0 0.0
        %4875 = vmatprep.subr.mxu0 0.0
        %4876 = vmatpush1.msra.mxu0 0.0
        %4877 = vmatprep.subr.mxu0 0.0
        %4878 = vmatpush1.msra.mxu0 0.0
        %4879 = vmatprep.subr.mxu0 0.0
        %4880 = vmatpush1.msra.mxu0 0.0
        %4881 = vmatprep.subr.mxu0 0.0
        %4882 = vmatpush1.msra.mxu0 0.0
        %4883 = vmatprep.subr.mxu0 0.0
        %4884 = vmatpush1.msra.mxu0 0.0
        %4885 = vmatprep.subr.mxu0 0.0
        %4886 = vmatpush1.msra.mxu0 0.0
        %4887 = vmatprep.subr.mxu0 0.0
        %4888 = vmatpush1.msra.mxu0 0.0
        %4889 = vmatprep.subr.mxu0 0.0
        %4890 = vmatpush1.msra.mxu0 0.0
        %4891 = vmatprep.subr.mxu0 0.0
        %4892 = vmatpush1.msra.mxu0 0.0
        %4893 = vmatprep.subr.mxu0 0.0
        %4894 = vmatpush1.msra.mxu0 0.0
        %4895 = vmatprep.subr.mxu0 0.0
        %4896 = vmatpush1.msra.mxu0 0.0
        %4897 = vmatprep.subr.mxu0 0.0
        %4898 = vmatpush1.msra.mxu0 0.0
        %4899 = vmatprep.subr.mxu0 0.0
        %4900 = vmatpush1.msra.mxu0 0.0
        %4901 = vmatprep.subr.mxu0 0.0
        %4902 = vmatpush1.msra.mxu0 0.0
        %4903 = vmatprep.subr.mxu0 0.0
        %4904 = vmatpush1.msra.mxu0 0.0
        %4905 = vmatprep.subr.mxu0 0.0
        %4906 = vmatpush1.msra.mxu0 0.0
        %4907 = vmatprep.subr.mxu0 0.0
        %4908 = vmatpush1.msra.mxu0 0.0
        %4909 = vmatprep.subr.mxu0 0.0
        %4910 = vmatpush1.msra.mxu0 0.0
        %4911 = vmatprep.mubr.f32.mxu0 0.0
        %4912 = vmatmul.mubr.f32.gmra.mrb[0].mxu0 %v4391
        %v4913 = vpop.f32.mrb[0].mxu0
        %v4914 = vadd.f32 0.0, %v4913
        %v4915 = vpop.f32.mrb[0].mxu0
        %v4916 = vadd.f32 0.0, %v4915
        %4917 = vdwg.mxu0
        %v4918 = vadd.f32 %v4307, %v4488
        %v4919 = vadd.f32 %v4308, %v4490
        %v4920 = vadd.f32 %v4309, %v4559
        %v4921 = vadd.f32 %v4310, %v4561
        %v4922 = vadd.f32 %v4311, %v4630
        %v4923 = vadd.f32 %v4312, %v4632
        %v4924 = vadd.f32 %v4313, %v4701
        %v4925 = vadd.f32 %v4314, %v4703
        %v4926 = vadd.f32 %v4315, %v4772
        %v4927 = vadd.f32 %v4316, %v4774
        %v4928 = vadd.f32 %v4317, %v4843
        %v4929 = vadd.f32 %v4318, %v4845
        %v4930 = vadd.f32 %v4319, %v4914
        %v4931 = vadd.f32 %v4320, %v4916
        %v4932 = vld [vmem:[%s216 + $0x8] sm:$0xff]
        %v4933 = vld [vmem:[%s216 + $0x10] sm:$0xff]
        %v4934 = vld [vmem:[%s216 + $0x18] sm:$0xff]
        %v4935 = vld [vmem:[%s216 + $0x20] sm:$0xff]
        %v4936 = vld [vmem:[%s216 + $0x28] sm:$0xff]
        %v4937 = vld [vmem:[%s216 + $0x30] sm:$0xff]
        %v4938 = vld [vmem:[%s216 + $0x38] sm:$0xff]
        %v4939 = vld [vmem:[%s216 + $0x40] sm:$0xf]
        %s4940 = scalar_lea.vmem %s220, 64
        %v4941 = vld [vmem:[%s4940] sm:$0xff]
        %v4950 = vcombine.high %v4932, %v4932
        %v4951 = vcombine.high %v4933, %v4933
        %v4952 = vcombine.high %v4934, %v4934
        %v4953 = vcombine.high %v4935, %v4935
        %v4954 = vcombine.high %v4936, %v4936
        %v4955 = vcombine.high %v4937, %v4937
        %v4956 = vcombine.high %v4938, %v4938
        %4957 = vrot.lane.b32.xlu0 %v4932, 126
        %v4958 = vpop.permute.xlu0 %4957
        %4959 = vrot.lane.b32.xlu0 %v4950, 126
        %v4960 = vpop.permute.xlu0 %4959
        %4961 = vrot.lane.b32.xlu0 %v4933, 126
        %v4962 = vpop.permute.xlu0 %4961
        %4963 = vrot.lane.b32.xlu0 %v4951, 126
        %v4964 = vpop.permute.xlu0 %4963
        %4965 = vrot.lane.b32.xlu0 %v4934, 126
        %v4966 = vpop.permute.xlu0 %4965
        %4967 = vrot.lane.b32.xlu0 %v4952, 126
        %v4968 = vpop.permute.xlu0 %4967
        %4969 = vrot.lane.b32.xlu0 %v4935, 126
        %v4970 = vpop.permute.xlu0 %4969
        %4971 = vrot.lane.b32.xlu0 %v4953, 126
        %v4972 = vpop.permute.xlu0 %4971
        %4973 = vrot.lane.b32.xlu0 %v4936, 126
        %v4974 = vpop.permute.xlu0 %4973
        %4975 = vrot.lane.b32.xlu0 %v4954, 126
        %v4976 = vpop.permute.xlu0 %4975
        %4977 = vrot.lane.b32.xlu0 %v4937, 126
        %v4978 = vpop.permute.xlu0 %4977
        %4979 = vrot.lane.b32.xlu0 %v4955, 126
        %v4980 = vpop.permute.xlu0 %4979
        %4981 = vrot.lane.b32.xlu0 %v4938, 126
        %v4982 = vpop.permute.xlu0 %4981
        %4983 = vrot.lane.b32.xlu0 %v4956, 126
        %v4984 = vpop.permute.xlu0 %4983
        %4985 = vrot.lane.b32.xlu0 %v4939, 126
        %v4986 = vpop.permute.xlu0 %4985
        %v4987 = vsel %vm1412, %v4958, %v4960
        %v4988 = vsel %vm1412, %v4960, %v4962
        %v4989 = vsel %vm1412, %v4962, %v4964
        %v4990 = vsel %vm1412, %v4964, %v4966
        %v4991 = vsel %vm1412, %v4966, %v4968
        %v4992 = vsel %vm1412, %v4968, %v4970
        %v4993 = vsel %vm1412, %v4970, %v4972
        %v4994 = vsel %vm1412, %v4972, %v4974
        %v4995 = vsel %vm1412, %v4974, %v4976
        %v4996 = vsel %vm1412, %v4976, %v4978
        %v4997 = vsel %vm1412, %v4978, %v4980
        %v4998 = vsel %vm1412, %v4980, %v4982
        %v4999 = vsel %vm1412, %v4982, %v4984
        %v5000 = vsel %vm1412, %v4984, %v4986
        %v5002 = vsel %vm299, %v4941, 0
        %v5004 = vsel %vm303, %v4987, 0
        %v5006 = vsel %vm303, %v4988, 0
        %v5008 = vsel %vm303, %v4989, 0
        %v5010 = vsel %vm303, %v4990, 0
        %v5012 = vsel %vm303, %v4991, 0
        %v5014 = vsel %vm303, %v4992, 0
        %v5016 = vsel %vm303, %v4993, 0
        %v5018 = vsel %vm303, %v4994, 0
        %v5020 = vsel %vm303, %v4995, 0
        %v5022 = vsel %vm303, %v4996, 0
        %v5024 = vsel %vm303, %v4997, 0
        %v5026 = vsel %vm303, %v4998, 0
        %v5028 = vsel %vm303, %v4999, 0
        %v5030 = vsel %vm303, %v5000, 0
        %5032 = vmatprep.subr.mxu0 %v5006
        %5033 = vmatpush1.msra.mxu0 %v5004
        %5034 = vmatprep.subr.mxu0 0.0
        %5035 = vmatpush1.msra.mxu0 0.0
        %5036 = vmatprep.subr.mxu0 0.0
        %5037 = vmatpush1.msra.mxu0 0.0
        %5038 = vmatprep.subr.mxu0 0.0
        %5039 = vmatpush1.msra.mxu0 0.0
        %5040 = vmatprep.subr.mxu0 0.0
        %5041 = vmatpush1.msra.mxu0 0.0
        %5042 = vmatprep.subr.mxu0 0.0
        %5043 = vmatpush1.msra.mxu0 0.0
        %5044 = vmatprep.subr.mxu0 0.0
        %5045 = vmatpush1.msra.mxu0 0.0
        %5046 = vmatprep.subr.mxu0 0.0
        %5047 = vmatpush1.msra.mxu0 0.0
        %5048 = vmatprep.subr.mxu0 0.0
        %5049 = vmatpush1.msra.mxu0 0.0
        %5050 = vmatprep.subr.mxu0 0.0
        %5051 = vmatpush1.msra.mxu0 0.0
        %5052 = vmatprep.subr.mxu0 0.0
        %5053 = vmatpush1.msra.mxu0 0.0
        %5054 = vmatprep.subr.mxu0 0.0
        %5055 = vmatpush1.msra.mxu0 0.0
        %5056 = vmatprep.subr.mxu0 0.0
        %5057 = vmatpush1.msra.mxu0 0.0
        %5058 = vmatprep.subr.mxu0 0.0
        %5059 = vmatpush1.msra.mxu0 0.0
        %5060 = vmatprep.subr.mxu0 0.0
        %5061 = vmatpush1.msra.mxu0 0.0
        %5062 = vmatprep.subr.mxu0 0.0
        %5063 = vmatpush1.msra.mxu0 0.0
        %5064 = vmatprep.subr.mxu0 0.0
        %5065 = vmatpush1.msra.mxu0 0.0
        %5066 = vmatprep.subr.mxu0 0.0
        %5067 = vmatpush1.msra.mxu0 0.0
        %5068 = vmatprep.subr.mxu0 0.0
        %5069 = vmatpush1.msra.mxu0 0.0
        %5070 = vmatprep.subr.mxu0 0.0
        %5071 = vmatpush1.msra.mxu0 0.0
        %5072 = vmatprep.subr.mxu0 0.0
        %5073 = vmatpush1.msra.mxu0 0.0
        %5074 = vmatprep.subr.mxu0 0.0
        %5075 = vmatpush1.msra.mxu0 0.0
        %5076 = vmatprep.subr.mxu0 0.0
        %5077 = vmatpush1.msra.mxu0 0.0
        %5078 = vmatprep.subr.mxu0 0.0
        %5079 = vmatpush1.msra.mxu0 0.0
        %5080 = vmatprep.subr.mxu0 0.0
        %5081 = vmatpush1.msra.mxu0 0.0
        %5082 = vmatprep.subr.mxu0 0.0
        %5083 = vmatpush1.msra.mxu0 0.0
        %5084 = vmatprep.subr.mxu0 0.0
        %5085 = vmatpush1.msra.mxu0 0.0
        %5086 = vmatprep.subr.mxu0 0.0
        %5087 = vmatpush1.msra.mxu0 0.0
        %5088 = vmatprep.subr.mxu0 0.0
        %5089 = vmatpush1.msra.mxu0 0.0
        %5090 = vmatprep.subr.mxu0 0.0
        %5091 = vmatpush1.msra.mxu0 0.0
        %5092 = vmatprep.subr.mxu0 0.0
        %5093 = vmatpush1.msra.mxu0 0.0
        %5094 = vmatprep.subr.mxu0 0.0
        %5095 = vmatpush1.msra.mxu0 0.0
        %5096 = vmatprep.mubr.f32.mxu0 0.0
        %5097 = vmatmul.mubr.f32.gmra.mrb[0].mxu0 %v5002
        %v5098 = vpop.f32.mrb[0].mxu0
        %v5099 = vadd.f32 0.0, %v5098
        %v5100 = vpop.f32.mrb[0].mxu0
        %v5101 = vadd.f32 0.0, %v5100
        %5102 = vdwg.mxu0
        %5103 = vmatprep.subr.mxu0 %v5010
        %5104 = vmatpush1.msra.mxu0 %v5008
        %5105 = vmatprep.subr.mxu0 0.0
        %5106 = vmatpush1.msra.mxu0 0.0
        %5107 = vmatprep.subr.mxu0 0.0
        %5108 = vmatpush1.msra.mxu0 0.0
        %5109 = vmatprep.subr.mxu0 0.0
        %5110 = vmatpush1.msra.mxu0 0.0
        %5111 = vmatprep.subr.mxu0 0.0
        %5112 = vmatpush1.msra.mxu0 0.0
        %5113 = vmatprep.subr.mxu0 0.0
        %5114 = vmatpush1.msra.mxu0 0.0
        %5115 = vmatprep.subr.mxu0 0.0
        %5116 = vmatpush1.msra.mxu0 0.0
        %5117 = vmatprep.subr.mxu0 0.0
        %5118 = vmatpush1.msra.mxu0 0.0
        %5119 = vmatprep.subr.mxu0 0.0
        %5120 = vmatpush1.msra.mxu0 0.0
        %5121 = vmatprep.subr.mxu0 0.0
        %5122 = vmatpush1.msra.mxu0 0.0
        %5123 = vmatprep.subr.mxu0 0.0
        %5124 = vmatpush1.msra.mxu0 0.0
        %5125 = vmatprep.subr.mxu0 0.0
        %5126 = vmatpush1.msra.mxu0 0.0
        %5127 = vmatprep.subr.mxu0 0.0
        %5128 = vmatpush1.msra.mxu0 0.0
        %5129 = vmatprep.subr.mxu0 0.0
        %5130 = vmatpush1.msra.mxu0 0.0
        %5131 = vmatprep.subr.mxu0 0.0
        %5132 = vmatpush1.msra.mxu0 0.0
        %5133 = vmatprep.subr.mxu0 0.0
        %5134 = vmatpush1.msra.mxu0 0.0
        %5135 = vmatprep.subr.mxu0 0.0
        %5136 = vmatpush1.msra.mxu0 0.0
        %5137 = vmatprep.subr.mxu0 0.0
        %5138 = vmatpush1.msra.mxu0 0.0
        %5139 = vmatprep.subr.mxu0 0.0
        %5140 = vmatpush1.msra.mxu0 0.0
        %5141 = vmatprep.subr.mxu0 0.0
        %5142 = vmatpush1.msra.mxu0 0.0
        %5143 = vmatprep.subr.mxu0 0.0
        %5144 = vmatpush1.msra.mxu0 0.0
        %5145 = vmatprep.subr.mxu0 0.0
        %5146 = vmatpush1.msra.mxu0 0.0
        %5147 = vmatprep.subr.mxu0 0.0
        %5148 = vmatpush1.msra.mxu0 0.0
        %5149 = vmatprep.subr.mxu0 0.0
        %5150 = vmatpush1.msra.mxu0 0.0
        %5151 = vmatprep.subr.mxu0 0.0
        %5152 = vmatpush1.msra.mxu0 0.0
        %5153 = vmatprep.subr.mxu0 0.0
        %5154 = vmatpush1.msra.mxu0 0.0
        %5155 = vmatprep.subr.mxu0 0.0
        %5156 = vmatpush1.msra.mxu0 0.0
        %5157 = vmatprep.subr.mxu0 0.0
        %5158 = vmatpush1.msra.mxu0 0.0
        %5159 = vmatprep.subr.mxu0 0.0
        %5160 = vmatpush1.msra.mxu0 0.0
        %5161 = vmatprep.subr.mxu0 0.0
        %5162 = vmatpush1.msra.mxu0 0.0
        %5163 = vmatprep.subr.mxu0 0.0
        %5164 = vmatpush1.msra.mxu0 0.0
        %5165 = vmatprep.subr.mxu0 0.0
        %5166 = vmatpush1.msra.mxu0 0.0
        %5167 = vmatprep.mubr.f32.mxu0 0.0
        %5168 = vmatmul.mubr.f32.gmra.mrb[0].mxu0 %v5002
        %v5169 = vpop.f32.mrb[0].mxu0
        %v5170 = vadd.f32 0.0, %v5169
        %v5171 = vpop.f32.mrb[0].mxu0
        %v5172 = vadd.f32 0.0, %v5171
        %5173 = vdwg.mxu0
        %5174 = vmatprep.subr.mxu0 %v5014
        %5175 = vmatpush1.msra.mxu0 %v5012
        %5176 = vmatprep.subr.mxu0 0.0
        %5177 = vmatpush1.msra.mxu0 0.0
        %5178 = vmatprep.subr.mxu0 0.0
        %5179 = vmatpush1.msra.mxu0 0.0
        %5180 = vmatprep.subr.mxu0 0.0
        %5181 = vmatpush1.msra.mxu0 0.0
        %5182 = vmatprep.subr.mxu0 0.0
        %5183 = vmatpush1.msra.mxu0 0.0
        %5184 = vmatprep.subr.mxu0 0.0
        %5185 = vmatpush1.msra.mxu0 0.0
        %5186 = vmatprep.subr.mxu0 0.0
        %5187 = vmatpush1.msra.mxu0 0.0
        %5188 = vmatprep.subr.mxu0 0.0
        %5189 = vmatpush1.msra.mxu0 0.0
        %5190 = vmatprep.subr.mxu0 0.0
        %5191 = vmatpush1.msra.mxu0 0.0
        %5192 = vmatprep.subr.mxu0 0.0
        %5193 = vmatpush1.msra.mxu0 0.0
        %5194 = vmatprep.subr.mxu0 0.0
        %5195 = vmatpush1.msra.mxu0 0.0
        %5196 = vmatprep.subr.mxu0 0.0
        %5197 = vmatpush1.msra.mxu0 0.0
        %5198 = vmatprep.subr.mxu0 0.0
        %5199 = vmatpush1.msra.mxu0 0.0
        %5200 = vmatprep.subr.mxu0 0.0
        %5201 = vmatpush1.msra.mxu0 0.0
        %5202 = vmatprep.subr.mxu0 0.0
        %5203 = vmatpush1.msra.mxu0 0.0
        %5204 = vmatprep.subr.mxu0 0.0
        %5205 = vmatpush1.msra.mxu0 0.0
        %5206 = vmatprep.subr.mxu0 0.0
        %5207 = vmatpush1.msra.mxu0 0.0
        %5208 = vmatprep.subr.mxu0 0.0
        %5209 = vmatpush1.msra.mxu0 0.0
        %5210 = vmatprep.subr.mxu0 0.0
        %5211 = vmatpush1.msra.mxu0 0.0
        %5212 = vmatprep.subr.mxu0 0.0
        %5213 = vmatpush1.msra.mxu0 0.0
        %5214 = vmatprep.subr.mxu0 0.0
        %5215 = vmatpush1.msra.mxu0 0.0
        %5216 = vmatprep.subr.mxu0 0.0
        %5217 = vmatpush1.msra.mxu0 0.0
        %5218 = vmatprep.subr.mxu0 0.0
        %5219 = vmatpush1.msra.mxu0 0.0
        %5220 = vmatprep.subr.mxu0 0.0
        %5221 = vmatpush1.msra.mxu0 0.0
        %5222 = vmatprep.subr.mxu0 0.0
        %5223 = vmatpush1.msra.mxu0 0.0
        %5224 = vmatprep.subr.mxu0 0.0
        %5225 = vmatpush1.msra.mxu0 0.0
        %5226 = vmatprep.subr.mxu0 0.0
        %5227 = vmatpush1.msra.mxu0 0.0
        %5228 = vmatprep.subr.mxu0 0.0
        %5229 = vmatpush1.msra.mxu0 0.0
        %5230 = vmatprep.subr.mxu0 0.0
        %5231 = vmatpush1.msra.mxu0 0.0
        %5232 = vmatprep.subr.mxu0 0.0
        %5233 = vmatpush1.msra.mxu0 0.0
        %5234 = vmatprep.subr.mxu0 0.0
        %5235 = vmatpush1.msra.mxu0 0.0
        %5236 = vmatprep.subr.mxu0 0.0
        %5237 = vmatpush1.msra.mxu0 0.0
        %5238 = vmatprep.mubr.f32.mxu0 0.0
        %5239 = vmatmul.mubr.f32.gmra.mrb[0].mxu0 %v5002
        %v5240 = vpop.f32.mrb[0].mxu0
        %v5241 = vadd.f32 0.0, %v5240
        %v5242 = vpop.f32.mrb[0].mxu0
        %v5243 = vadd.f32 0.0, %v5242
        %5244 = vdwg.mxu0
        %5245 = vmatprep.subr.mxu0 %v5018
        %5246 = vmatpush1.msra.mxu0 %v5016
        %5247 = vmatprep.subr.mxu0 0.0
        %5248 = vmatpush1.msra.mxu0 0.0
        %5249 = vmatprep.subr.mxu0 0.0
        %5250 = vmatpush1.msra.mxu0 0.0
        %5251 = vmatprep.subr.mxu0 0.0
        %5252 = vmatpush1.msra.mxu0 0.0
        %5253 = vmatprep.subr.mxu0 0.0
        %5254 = vmatpush1.msra.mxu0 0.0
        %5255 = vmatprep.subr.mxu0 0.0
        %5256 = vmatpush1.msra.mxu0 0.0
        %5257 = vmatprep.subr.mxu0 0.0
        %5258 = vmatpush1.msra.mxu0 0.0
        %5259 = vmatprep.subr.mxu0 0.0
        %5260 = vmatpush1.msra.mxu0 0.0
        %5261 = vmatprep.subr.mxu0 0.0
        %5262 = vmatpush1.msra.mxu0 0.0
        %5263 = vmatprep.subr.mxu0 0.0
        %5264 = vmatpush1.msra.mxu0 0.0
        %5265 = vmatprep.subr.mxu0 0.0
        %5266 = vmatpush1.msra.mxu0 0.0
        %5267 = vmatprep.subr.mxu0 0.0
        %5268 = vmatpush1.msra.mxu0 0.0
        %5269 = vmatprep.subr.mxu0 0.0
        %5270 = vmatpush1.msra.mxu0 0.0
        %5271 = vmatprep.subr.mxu0 0.0
        %5272 = vmatpush1.msra.mxu0 0.0
        %5273 = vmatprep.subr.mxu0 0.0
        %5274 = vmatpush1.msra.mxu0 0.0
        %5275 = vmatprep.subr.mxu0 0.0
        %5276 = vmatpush1.msra.mxu0 0.0
        %5277 = vmatprep.subr.mxu0 0.0
        %5278 = vmatpush1.msra.mxu0 0.0
        %5279 = vmatprep.subr.mxu0 0.0
        %5280 = vmatpush1.msra.mxu0 0.0
        %5281 = vmatprep.subr.mxu0 0.0
        %5282 = vmatpush1.msra.mxu0 0.0
        %5283 = vmatprep.subr.mxu0 0.0
        %5284 = vmatpush1.msra.mxu0 0.0
        %5285 = vmatprep.subr.mxu0 0.0
        %5286 = vmatpush1.msra.mxu0 0.0
        %5287 = vmatprep.subr.mxu0 0.0
        %5288 = vmatpush1.msra.mxu0 0.0
        %5289 = vmatprep.subr.mxu0 0.0
        %5290 = vmatpush1.msra.mxu0 0.0
        %5291 = vmatprep.subr.mxu0 0.0
        %5292 = vmatpush1.msra.mxu0 0.0
        %5293 = vmatprep.subr.mxu0 0.0
        %5294 = vmatpush1.msra.mxu0 0.0
        %5295 = vmatprep.subr.mxu0 0.0
        %5296 = vmatpush1.msra.mxu0 0.0
        %5297 = vmatprep.subr.mxu0 0.0
        %5298 = vmatpush1.msra.mxu0 0.0
        %5299 = vmatprep.subr.mxu0 0.0
        %5300 = vmatpush1.msra.mxu0 0.0
        %5301 = vmatprep.subr.mxu0 0.0
        %5302 = vmatpush1.msra.mxu0 0.0
        %5303 = vmatprep.subr.mxu0 0.0
        %5304 = vmatpush1.msra.mxu0 0.0
        %5305 = vmatprep.subr.mxu0 0.0
        %5306 = vmatpush1.msra.mxu0 0.0
        %5307 = vmatprep.subr.mxu0 0.0
        %5308 = vmatpush1.msra.mxu0 0.0
        %5309 = vmatprep.mubr.f32.mxu0 0.0
        %5310 = vmatmul.mubr.f32.gmra.mrb[0].mxu0 %v5002
        %v5311 = vpop.f32.mrb[0].mxu0
        %v5312 = vadd.f32 0.0, %v5311
        %v5313 = vpop.f32.mrb[0].mxu0
        %v5314 = vadd.f32 0.0, %v5313
        %5315 = vdwg.mxu0
        %5316 = vmatprep.subr.mxu0 %v5022
        %5317 = vmatpush1.msra.mxu0 %v5020
        %5318 = vmatprep.subr.mxu0 0.0
        %5319 = vmatpush1.msra.mxu0 0.0
        %5320 = vmatprep.subr.mxu0 0.0
        %5321 = vmatpush1.msra.mxu0 0.0
        %5322 = vmatprep.subr.mxu0 0.0
        %5323 = vmatpush1.msra.mxu0 0.0
        %5324 = vmatprep.subr.mxu0 0.0
        %5325 = vmatpush1.msra.mxu0 0.0
        %5326 = vmatprep.subr.mxu0 0.0
        %5327 = vmatpush1.msra.mxu0 0.0
        %5328 = vmatprep.subr.mxu0 0.0
        %5329 = vmatpush1.msra.mxu0 0.0
        %5330 = vmatprep.subr.mxu0 0.0
        %5331 = vmatpush1.msra.mxu0 0.0
        %5332 = vmatprep.subr.mxu0 0.0
        %5333 = vmatpush1.msra.mxu0 0.0
        %5334 = vmatprep.subr.mxu0 0.0
        %5335 = vmatpush1.msra.mxu0 0.0
        %5336 = vmatprep.subr.mxu0 0.0
        %5337 = vmatpush1.msra.mxu0 0.0
        %5338 = vmatprep.subr.mxu0 0.0
        %5339 = vmatpush1.msra.mxu0 0.0
        %5340 = vmatprep.subr.mxu0 0.0
        %5341 = vmatpush1.msra.mxu0 0.0
        %5342 = vmatprep.subr.mxu0 0.0
        %5343 = vmatpush1.msra.mxu0 0.0
        %5344 = vmatprep.subr.mxu0 0.0
        %5345 = vmatpush1.msra.mxu0 0.0
        %5346 = vmatprep.subr.mxu0 0.0
        %5347 = vmatpush1.msra.mxu0 0.0
        %5348 = vmatprep.subr.mxu0 0.0
        %5349 = vmatpush1.msra.mxu0 0.0
        %5350 = vmatprep.subr.mxu0 0.0
        %5351 = vmatpush1.msra.mxu0 0.0
        %5352 = vmatprep.subr.mxu0 0.0
        %5353 = vmatpush1.msra.mxu0 0.0
        %5354 = vmatprep.subr.mxu0 0.0
        %5355 = vmatpush1.msra.mxu0 0.0
        %5356 = vmatprep.subr.mxu0 0.0
        %5357 = vmatpush1.msra.mxu0 0.0
        %5358 = vmatprep.subr.mxu0 0.0
        %5359 = vmatpush1.msra.mxu0 0.0
        %5360 = vmatprep.subr.mxu0 0.0
        %5361 = vmatpush1.msra.mxu0 0.0
        %5362 = vmatprep.subr.mxu0 0.0
        %5363 = vmatpush1.msra.mxu0 0.0
        %5364 = vmatprep.subr.mxu0 0.0
        %5365 = vmatpush1.msra.mxu0 0.0
        %5366 = vmatprep.subr.mxu0 0.0
        %5367 = vmatpush1.msra.mxu0 0.0
        %5368 = vmatprep.subr.mxu0 0.0
        %5369 = vmatpush1.msra.mxu0 0.0
        %5370 = vmatprep.subr.mxu0 0.0
        %5371 = vmatpush1.msra.mxu0 0.0
        %5372 = vmatprep.subr.mxu0 0.0
        %5373 = vmatpush1.msra.mxu0 0.0
        %5374 = vmatprep.subr.mxu0 0.0
        %5375 = vmatpush1.msra.mxu0 0.0
        %5376 = vmatprep.subr.mxu0 0.0
        %5377 = vmatpush1.msra.mxu0 0.0
        %5378 = vmatprep.subr.mxu0 0.0
        %5379 = vmatpush1.msra.mxu0 0.0
        %5380 = vmatprep.mubr.f32.mxu0 0.0
        %5381 = vmatmul.mubr.f32.gmra.mrb[0].mxu0 %v5002
        %v5382 = vpop.f32.mrb[0].mxu0
        %v5383 = vadd.f32 0.0, %v5382
        %v5384 = vpop.f32.mrb[0].mxu0
        %v5385 = vadd.f32 0.0, %v5384
        %5386 = vdwg.mxu0
        %5387 = vmatprep.subr.mxu0 %v5026
        %5388 = vmatpush1.msra.mxu0 %v5024
        %5389 = vmatprep.subr.mxu0 0.0
        %5390 = vmatpush1.msra.mxu0 0.0
        %5391 = vmatprep.subr.mxu0 0.0
        %5392 = vmatpush1.msra.mxu0 0.0
        %5393 = vmatprep.subr.mxu0 0.0
        %5394 = vmatpush1.msra.mxu0 0.0
        %5395 = vmatprep.subr.mxu0 0.0
        %5396 = vmatpush1.msra.mxu0 0.0
        %5397 = vmatprep.subr.mxu0 0.0
        %5398 = vmatpush1.msra.mxu0 0.0
        %5399 = vmatprep.subr.mxu0 0.0
        %5400 = vmatpush1.msra.mxu0 0.0
        %5401 = vmatprep.subr.mxu0 0.0
        %5402 = vmatpush1.msra.mxu0 0.0
        %5403 = vmatprep.subr.mxu0 0.0
        %5404 = vmatpush1.msra.mxu0 0.0
        %5405 = vmatprep.subr.mxu0 0.0
        %5406 = vmatpush1.msra.mxu0 0.0
        %5407 = vmatprep.subr.mxu0 0.0
        %5408 = vmatpush1.msra.mxu0 0.0
        %5409 = vmatprep.subr.mxu0 0.0
        %5410 = vmatpush1.msra.mxu0 0.0
        %5411 = vmatprep.subr.mxu0 0.0
        %5412 = vmatpush1.msra.mxu0 0.0
        %5413 = vmatprep.subr.mxu0 0.0
        %5414 = vmatpush1.msra.mxu0 0.0
        %5415 = vmatprep.subr.mxu0 0.0
        %5416 = vmatpush1.msra.mxu0 0.0
        %5417 = vmatprep.subr.mxu0 0.0
        %5418 = vmatpush1.msra.mxu0 0.0
        %5419 = vmatprep.subr.mxu0 0.0
        %5420 = vmatpush1.msra.mxu0 0.0
        %5421 = vmatprep.subr.mxu0 0.0
        %5422 = vmatpush1.msra.mxu0 0.0
        %5423 = vmatprep.subr.mxu0 0.0
        %5424 = vmatpush1.msra.mxu0 0.0
        %5425 = vmatprep.subr.mxu0 0.0
        %5426 = vmatpush1.msra.mxu0 0.0
        %5427 = vmatprep.subr.mxu0 0.0
        %5428 = vmatpush1.msra.mxu0 0.0
        %5429 = vmatprep.subr.mxu0 0.0
        %5430 = vmatpush1.msra.mxu0 0.0
        %5431 = vmatprep.subr.mxu0 0.0
        %5432 = vmatpush1.msra.mxu0 0.0
        %5433 = vmatprep.subr.mxu0 0.0
        %5434 = vmatpush1.msra.mxu0 0.0
        %5435 = vmatprep.subr.mxu0 0.0
        %5436 = vmatpush1.msra.mxu0 0.0
        %5437 = vmatprep.subr.mxu0 0.0
        %5438 = vmatpush1.msra.mxu0 0.0
        %5439 = vmatprep.subr.mxu0 0.0
        %5440 = vmatpush1.msra.mxu0 0.0
        %5441 = vmatprep.subr.mxu0 0.0
        %5442 = vmatpush1.msra.mxu0 0.0
        %5443 = vmatprep.subr.mxu0 0.0
        %5444 = vmatpush1.msra.mxu0 0.0
        %5445 = vmatprep.subr.mxu0 0.0
        %5446 = vmatpush1.msra.mxu0 0.0
        %5447 = vmatprep.subr.mxu0 0.0
        %5448 = vmatpush1.msra.mxu0 0.0
        %5449 = vmatprep.subr.mxu0 0.0
        %5450 = vmatpush1.msra.mxu0 0.0
        %5451 = vmatprep.mubr.f32.mxu0 0.0
        %5452 = vmatmul.mubr.f32.gmra.mrb[0].mxu0 %v5002
        %v5453 = vpop.f32.mrb[0].mxu0
        %v5454 = vadd.f32 0.0, %v5453
        %v5455 = vpop.f32.mrb[0].mxu0
        %v5456 = vadd.f32 0.0, %v5455
        %5457 = vdwg.mxu0
        %5458 = vmatprep.subr.mxu0 %v5030
        %5459 = vmatpush1.msra.mxu0 %v5028
        %5460 = vmatprep.subr.mxu0 0.0
        %5461 = vmatpush1.msra.mxu0 0.0
        %5462 = vmatprep.subr.mxu0 0.0
        %5463 = vmatpush1.msra.mxu0 0.0
        %5464 = vmatprep.subr.mxu0 0.0
        %5465 = vmatpush1.msra.mxu0 0.0
        %5466 = vmatprep.subr.mxu0 0.0
        %5467 = vmatpush1.msra.mxu0 0.0
        %5468 = vmatprep.subr.mxu0 0.0
        %5469 = vmatpush1.msra.mxu0 0.0
        %5470 = vmatprep.subr.mxu0 0.0
        %5471 = vmatpush1.msra.mxu0 0.0
        %5472 = vmatprep.subr.mxu0 0.0
        %5473 = vmatpush1.msra.mxu0 0.0
        %5474 = vmatprep.subr.mxu0 0.0
        %5475 = vmatpush1.msra.mxu0 0.0
        %5476 = vmatprep.subr.mxu0 0.0
        %5477 = vmatpush1.msra.mxu0 0.0
        %5478 = vmatprep.subr.mxu0 0.0
        %5479 = vmatpush1.msra.mxu0 0.0
        %5480 = vmatprep.subr.mxu0 0.0
        %5481 = vmatpush1.msra.mxu0 0.0
        %5482 = vmatprep.subr.mxu0 0.0
        %5483 = vmatpush1.msra.mxu0 0.0
        %5484 = vmatprep.subr.mxu0 0.0
        %5485 = vmatpush1.msra.mxu0 0.0
        %5486 = vmatprep.subr.mxu0 0.0
        %5487 = vmatpush1.msra.mxu0 0.0
        %5488 = vmatprep.subr.mxu0 0.0
        %5489 = vmatpush1.msra.mxu0 0.0
        %5490 = vmatprep.subr.mxu0 0.0
        %5491 = vmatpush1.msra.mxu0 0.0
        %5492 = vmatprep.subr.mxu0 0.0
        %5493 = vmatpush1.msra.mxu0 0.0
        %5494 = vmatprep.subr.mxu0 0.0
        %5495 = vmatpush1.msra.mxu0 0.0
        %5496 = vmatprep.subr.mxu0 0.0
        %5497 = vmatpush1.msra.mxu0 0.0
        %5498 = vmatprep.subr.mxu0 0.0
        %5499 = vmatpush1.msra.mxu0 0.0
        %5500 = vmatprep.subr.mxu0 0.0
        %5501 = vmatpush1.msra.mxu0 0.0
        %5502 = vmatprep.subr.mxu0 0.0
        %5503 = vmatpush1.msra.mxu0 0.0
        %5504 = vmatprep.subr.mxu0 0.0
        %5505 = vmatpush1.msra.mxu0 0.0
        %5506 = vmatprep.subr.mxu0 0.0
        %5507 = vmatpush1.msra.mxu0 0.0
        %5508 = vmatprep.subr.mxu0 0.0
        %5509 = vmatpush1.msra.mxu0 0.0
        %5510 = vmatprep.subr.mxu0 0.0
        %5511 = vmatpush1.msra.mxu0 0.0
        %5512 = vmatprep.subr.mxu0 0.0
        %5513 = vmatpush1.msra.mxu0 0.0
        %5514 = vmatprep.subr.mxu0 0.0
        %5515 = vmatpush1.msra.mxu0 0.0
        %5516 = vmatprep.subr.mxu0 0.0
        %5517 = vmatpush1.msra.mxu0 0.0
        %5518 = vmatprep.subr.mxu0 0.0
        %5519 = vmatpush1.msra.mxu0 0.0
        %5520 = vmatprep.subr.mxu0 0.0
        %5521 = vmatpush1.msra.mxu0 0.0
        %5522 = vmatprep.mubr.f32.mxu0 0.0
        %5523 = vmatmul.mubr.f32.gmra.mrb[0].mxu0 %v5002
        %v5524 = vpop.f32.mrb[0].mxu0
        %v5525 = vadd.f32 0.0, %v5524
        %v5526 = vpop.f32.mrb[0].mxu0
        %v5527 = vadd.f32 0.0, %v5526
        %5528 = vdwg.mxu0
        %v5529 = vadd.f32 %v4918, %v5099
        %v5530 = vadd.f32 %v4919, %v5101
        %v5531 = vadd.f32 %v4920, %v5170
        %v5532 = vadd.f32 %v4921, %v5172
        %v5533 = vadd.f32 %v4922, %v5241
        %v5534 = vadd.f32 %v4923, %v5243
        %v5535 = vadd.f32 %v4924, %v5312
        %v5536 = vadd.f32 %v4925, %v5314
        %v5537 = vadd.f32 %v4926, %v5383
        %v5538 = vadd.f32 %v4927, %v5385
        %v5539 = vadd.f32 %v4928, %v5454
        %v5540 = vadd.f32 %v4929, %v5456
        %v5541 = vadd.f32 %v4930, %v5525
        %v5542 = vadd.f32 %v4931, %v5527
        %v5543 = vld [vmem:[%s227] sm:$0xff]
        %5545 = vset.pattern.permute.xlu0 0
        %5546 = vperm.xlu0 %5545, %v5543
        %v5547 = vpop.permute.xlu0 %5546
        %v5549 = vadd.f32 %v5529, %v5547
        %v5550 = vadd.f32 %v5530, %v5547
        %v5551 = vadd.f32 %v5531, %v5547
        %v5552 = vadd.f32 %v5532, %v5547
        %v5553 = vadd.f32 %v5533, %v5547
        %v5554 = vadd.f32 %v5534, %v5547
        %v5555 = vadd.f32 %v5535, %v5547
        %v5556 = vadd.f32 %v5536, %v5547
        %v5557 = vadd.f32 %v5537, %v5547
        %v5558 = vadd.f32 %v5538, %v5547
        %v5559 = vadd.f32 %v5539, %v5547
        %v5560 = vadd.f32 %v5540, %v5547
        %v5561 = vadd.f32 %v5541, %v5547
        %v5562 = vadd.f32 %v5542, %v5547
        %5563 = vst [vmem:[%s211] sm:$0xff] %v5549
        %5564 = vst [vmem:[%s211 + $0x8] sm:$0xff] %v5550
        %5565 = vst [vmem:[%s211 + $0x10] sm:$0xff] %v5551
        %5566 = vst [vmem:[%s211 + $0x18] sm:$0xff] %v5552
        %5567 = vst [vmem:[%s211 + $0x20] sm:$0xff] %v5553
        %5568 = vst [vmem:[%s211 + $0x28] sm:$0xff] %v5554
        %5569 = vst [vmem:[%s211 + $0x30] sm:$0xff] %v5555
        %5570 = vst [vmem:[%s211 + $0x38] sm:$0xff] %v5556
        %5571 = vst [vmem:[%s211 + $0x40] sm:$0xff] %v5557
        %5572 = vst [vmem:[%s211 + $0x48] sm:$0xff] %v5558
        %5573 = vst [vmem:[%s211 + $0x50] sm:$0xff] %v5559
        %5574 = vst [vmem:[%s211 + $0x58] sm:$0xff] %v5560
        %5575 = vst [vmem:[%s211 + $0x60] sm:$0xff] %v5561
        %5576 = vst [vmem:[%s211 + $0x68] sm:$0xff] %v5562
        %s5577 = sand.u32 %s119, 1
        %s5578 = scalar_lea.sflag [#allocation3], %s5577
        %s5579 = sand.u32 %s119, 1
        %s5580 = smul.addr %s5579, 112
        %s5581 = scalar_lea.vmem [#allocation2], %s5580
        // Predicated region
        $region33: #{contextual_conv2d.1} parent=31 // pred_check
          %p5582 = pneg %p129
        $region34: #{contextual_conv2d.1} parent=31 // pred_check_branch
          %5584 = sbr.rel (%p5582) target = $region36
        $region35: #{contextual_conv2d.1} parent=31 // pred_region
          %s5586 = ssub.s32 1792, 1792
          %5587 = vsyncadd %s5578, %s5586
          %s5588 = smul.addr %s22, 14
          %s5589 = smul.addr %s21, 14
          %s5590 = sadd.s32 %s5588, %s5589
          %s5591 = smul.addr %s5590, 128
          %s5592 = scalar_lea.hbm %s3, %s5591
          %s5594 = sshll.u32 %s5581, 4
          %s5595 = int_to_ptr.vmem [resolvable:$true] %s5594
          %5597 = dma.vmem_to_hbm [thread:$0]  %s5595, 1792, %s5592, %s5578
        $region36: #{contextual_conv2d.1} parent=31 // pred_fallthru
          _
      $region32: #{contextual_conv2d.1} parent=5 // pred_fallthru
        _
      %p5598 = scmp.le.s32.totalorder 2, %s12
      // Predicated region
      $region37: #{contextual_conv2d.1} parent=5 // pred_check
        %p5599 = pneg %p5598
      $region38: #{contextual_conv2d.1} parent=5 // pred_check_branch
        %5601 = sbr.rel (%p5599) target = $region40
      $region39: #{contextual_conv2d.1} parent=5 // pred_region
        %s5602 = ssub.s32 %s12, 2
        // Predicated region
        $region41: #{contextual_conv2d.1} parent=39 // pred_check
          %p5603 = pneg %p135
        $region42: #{contextual_conv2d.1} parent=39 // pred_check_branch
          %5605 = sbr.rel (%p5603) target = $region44
        $region43: #{contextual_conv2d.1} parent=39 // pred_region
          %s5606 = sand.u32 %s120, 1
          %s5607 = scalar_lea.sflag [#allocation3], %s5606
          %s5608 = sand.u32 %s120, 1
          %s5609 = smul.addr %s5608, 112
          %s5610 = scalar_lea.vmem [#allocation2], %s5609
          %5611 = dma.done %s5607, 1792
        $region44: #{contextual_conv2d.1} parent=39 // pred_fallthru
          _
      $region40: #{contextual_conv2d.1} parent=5 // pred_fallthru
        _
    $region6: #{contextual_conv2d.1} parent=1 // loop_footer
      %s16 = sadd.s32 1, %s12
    $region7: #{contextual_conv2d.1} parent=1 // loop_footer_branch
      %11 = sbr.rel target = $region3
    $region8: #{contextual_conv2d.1} parent=1 // loop_exit
      _
    %5612 = vsyncpa [#allocation3], 1
    %s5613 = scalar_lea.sflag [#allocation3], 1
    %5614 = vsyncpa %s5613, 1

</llo_original>
